<compile_context>
chip_gen: v7x
topology: tpu7x:2x2x1
jax: 0.10.0
libtpu: 0.0.40
codegen_flags: <defaults>
</compile_context>

<pallas_src>
import functools

import jax
import jax.numpy as jnp
from jax.experimental import pallas as pl
from jax.experimental.pallas import tpu as pltpu


def _round_up(x, m):
    return ((x + m - 1) // m) * m


def _pick_time_chunk(seq_len, tb, in_dim, hidden_p, out_bytes,
                     budget_bytes, max_chunk):
    """Largest time chunk whose double-buffered blocks + scratch fit the budget."""
    g = 4 * hidden_p
    per_t = tb * (2 * in_dim * 2            # x block (bf16), double buffered
                  + 2 * hidden_p * out_bytes  # out block, double buffered
                  + g * 4)                    # xg scratch (f32)
    fixed = (2 * in_dim * g * 2             # W_ih^T (bf16), double buffered
             + 2 * hidden_p * g * 2         # W_hh^T (bf16), double buffered
             + 2 * g * 4                    # bias
             + 2 * 2 * tb * hidden_p * 4    # h_T / c_T output buffers
             + 2 * tb * hidden_p * 4)       # h / c scratch
    avail = budget_bytes - fixed
    tc = avail // per_t if per_t > 0 else max_chunk
    return int(max(1, min(max_chunk, seq_len, tc)))


# ----------------------------------------------------------------------------
# Pallas kernel: one LSTM layer.  Grid = (batch_tiles, time_chunks).
# Each grid step:
#   1) one MXU matmul: x_chunk @ W_ih^T + b  -> VMEM f32 scratch (fused input
#      projection; never touches HBM),
#   2) t_chunk recurrent steps: gates += h_prev @ W_hh^T, gate nonlinearities,
#      state update, output store.  PyTorch gate ordering: [i, f, g, o].
# ----------------------------------------------------------------------------
def _lstm_layer_kernel(x_ref, wih_t_ref, whh_t_ref, bias_ref,      # inputs
                       out_ref, hT_ref, cT_ref,                    # outputs
                       h_scr, c_scr, xg_scr,                       # VMEM scratch
                       *, hidden_p, t_chunk, seq_len, unroll, mask_time):
    tci = pl.program_id(1)                                         # time-chunk idx

    @pl.when(tci == 0)
    def _():
        h_scr[...] = jnp.zeros_like(h_scr)
        c_scr[...] = jnp.zeros_like(c_scr)

    tc, tb, in_dim = x_ref.shape
    gdim = 4 * hidden_p

    # ---- fused time-independent input projection for the whole chunk -------
    x_flat = x_ref[...].reshape(tc * tb, in_dim)                   # bf16
    xg = jnp.dot(x_flat, wih_t_ref[...], preferred_element_type=jnp.float32)
    xg_scr[...] = (xg + bias_ref[...]).reshape(tc, tb, gdim)       # f32

    whh_t = whh_t_ref[...]                                         # (H_pad, 4*H_pad) bf16

    def _sigmoid(v):
        # sigmoid(x) = 0.5*tanh(0.5*x) + 0.5 : one EUP pass, mul/add on VPU.
        return 0.5 * jnp.tanh(0.5 * v) + 0.5

    def step(i, carry):
        h_prev, c_prev = carry                                     # f32 (tb, H_pad)
        gates = xg_scr[i] + jnp.dot(h_prev.astype(whh_t.dtype), whh_t,
                                    preferred_element_type=jnp.float32)
        i_g = _sigmoid(gates[:, 0 * hidden_p:1 * hidden_p])
        f_g = _sigmoid(gates[:, 1 * hidden_p:2 * hidden_p])
        g_g = jnp.tanh(gates[:, 2 * hidden_p:3 * hidden_p])
        o_g = _sigmoid(gates[:, 3 * hidden_p:4 * hidden_p])
        c_new = f_g * c_prev + i_g * g_g
        h_new = o_g * jnp.tanh(c_new)
        if mask_time:  # static flag: only emitted when S was padded in time
            valid = (tci * t_chunk + i) < seq_len
            h_new = jnp.where(valid, h_new, h_prev)
            c_new = jnp.where(valid, c_new, c_prev)
        out_ref[i] = h_new.astype(out_ref.dtype)
        return (h_new, c_new)

    h_fin, c_fin = jax.lax.fori_loop(0, t_chunk, step,
                                     (h_scr[...], c_scr[...]),
                                     unroll=unroll)
    h_scr[...] = h_fin
    c_scr[...] = c_fin

    @pl.when(tci == pl.num_programs(1) - 1)
    def _():
        hT_ref[...] = h_fin
        cT_ref[...] = c_fin


def _lstm_layer(x_tm, wih_t, whh_t, bias, out_dtype, *, hidden_p, t_chunk, tb,
                seq_len, unroll, vmem_limit_bytes):
    """x_tm: (S_pad, B_pad, in_dim) bf16 time-major layer input."""
    s_pad, b_pad, in_dim = x_tm.shape
    gdim = 4 * hidden_p
    grid = (b_pad // tb, s_pad // t_chunk)
    mask_time = (grid[1] * t_chunk) != seq_len
    kernel = functools.partial(
        _lstm_layer_kernel, hidden_p=hidden_p, t_chunk=t_chunk,
        seq_len=seq_len, unroll=max(1, min(unroll, t_chunk)),
        mask_time=mask_time)

    out, h_t, c_t = pl.pallas_call(
        kernel,
        out_shape=(jax.ShapeDtypeStruct((s_pad, b_pad, hidden_p), out_dtype),
                   jax.ShapeDtypeStruct((b_pad, hidden_p), jnp.float32),
                   jax.ShapeDtypeStruct((b_pad, hidden_p), jnp.float32)),
        grid_spec=pltpu.PrefetchScalarGridSpec(
            num_scalar_prefetch=0,
            grid=grid,
            in_specs=[
                pl.BlockSpec((t_chunk, tb, in_dim), lambda b, t: (t, b, 0)),  # x chunk
                pl.BlockSpec((in_dim, gdim), lambda b, t: (0, 0)),            # W_ih^T (invariant)
                pl.BlockSpec((hidden_p, gdim), lambda b, t: (0, 0)),          # W_hh^T (invariant)
                pl.BlockSpec((1, gdim), lambda b, t: (0, 0)),                 # fused bias
            ],
            out_specs=(
                pl.BlockSpec((t_chunk, tb, hidden_p), lambda b, t: (t, b, 0)),  # out chunk
                pl.BlockSpec((tb, hidden_p), lambda b, t: (b, 0)),              # h_T
                pl.BlockSpec((tb, hidden_p), lambda b, t: (b, 0)),              # c_T
            ),
            scratch_shapes=[pltpu.VMEM((tb, hidden_p), jnp.float32),            # h state
                            pltpu.VMEM((tb, hidden_p), jnp.float32),            # c state
                            pltpu.VMEM((t_chunk, tb, gdim), jnp.float32)]),     # xg chunk
        compiler_params=pltpu.CompilerParams(
            dimension_semantics=("parallel", "arbitrary"),
            vmem_limit_bytes=vmem_limit_bytes),
    )(x_tm, wih_t, whh_t, bias)
    return out, h_t, c_t


# ----------------------------------------------------------------------------
# Parameter handling
# ----------------------------------------------------------------------------
def init_encoder_params(key, input_size, hidden_size, num_layers):
    """Deterministic init matching nn.LSTM shapes (U(-k, k), k = 1/sqrt(H))."""
    params = []
    k = 1.0 / jnp.sqrt(jnp.float32(hidden_size))
    for layer in range(num_layers):
        in_dim = input_size if layer == 0 else hidden_size
        key, k1, k2, k3, k4 = jax.random.split(key, 5)
        params.append({
            "w_ih": jax.random.uniform(k1, (4 * hidden_size, in_dim), jnp.float32, -k, k),
            "w_hh": jax.random.uniform(k2, (4 * hidden_size, hidden_size), jnp.float32, -k, k),
            "b_ih": jax.random.uniform(k3, (4 * hidden_size,), jnp.float32, -k, k),
            "b_hh": jax.random.uniform(k4, (4 * hidden_size,), jnp.float32, -k, k),
        })
    return params


def _prepare_layer(p, layer_idx, hidden_size, hidden_p, matmul_dtype):
    """Pad each gate block H -> H_pad (zeros keep padded lanes inert),
    pre-transpose weights, fuse biases, cast matmul operands to bf16."""
    h, pad_h = hidden_size, hidden_p - hidden_size
    w_ih, w_hh = p["w_ih"], p["w_hh"]
    bias = p["b_ih"] + p["b_hh"]
    in_dim = w_ih.shape[1]

    w_ih4 = jnp.pad(w_ih.reshape(4, h, in_dim), ((0, 0), (0, pad_h), (0, 0)))
    if layer_idx > 0:
        # inputs of this layer come from the previous layer, padded to H_pad lanes
        w_ih4 = jnp.pad(w_ih4, ((0, 0), (0, 0), (0, pad_h)))
    w_ih_p = w_ih4.reshape(4 * hidden_p, -1)

    w_hh4 = jnp.pad(w_hh.reshape(4, h, h), ((0, 0), (0, pad_h), (0, pad_h)))
    w_hh_p = w_hh4.reshape(4 * hidden_p, hidden_p)

    bias_p = jnp.pad(bias.reshape(4, h), ((0, 0), (0, pad_h))).reshape(1, 4 * hidden_p)

    return {
        "wih_t": w_ih_p.T.astype(matmul_dtype),   # (in_dim[_pad], 4*H_pad)
        "whh_t": w_hh_p.T.astype(matmul_dtype),   # (H_pad, 4*H_pad)
        "bias": bias_p.astype(jnp.float32),       # (1, 4*H_pad)
    }


# ----------------------------------------------------------------------------
# Encoder wrapper (mirrors the PyTorch module's forward)
# ----------------------------------------------------------------------------
def encoder_forward(params, x, hidden_size, *, matmul_dtype=jnp.bfloat16,
                    max_time_chunk=64, unroll=8,
                    vmem_budget_bytes=28 * 1024 * 1024,
                    vmem_limit_bytes=48 * 1024 * 1024):
    """x: (batch, seq, input_size) -> (out, (h_n, c_n)) as in the PyTorch module."""
    B, S, input_size = x.shape
    H = hidden_size
    H_pad = _round_up(H, 128)

    # Batch tile: for B > 8 target >= 2 tiles so the 'parallel' batch axis can
    # span both v7x TensorCores; otherwise one small tile (avoid wasted padding).
    if B > 8:
        tb = min(_round_up(-(-B // 2), 8), 128)
    else:
        tb = _round_up(B, 8)
    B_pad = _round_up(B, tb)

    # One time chunk for all layers, sized from the VMEM budget (worst-case
    # in_dim and f32 output block).
    in_dim_budget = max(input_size, H_pad)
    t_chunk = _pick_time_chunk(S, tb, in_dim_budget, H_pad, 4,
                               vmem_budget_bytes, max_time_chunk)
    S_pad = _round_up(S, t_chunk)

    # time-major, pad batch (sublanes) and time (chunk multiple); cast to bf16.
    x_tm = jnp.transpose(x, (1, 0, 2)).astype(matmul_dtype)
    x_tm = jnp.pad(x_tm, ((0, S_pad - S), (0, B_pad - B), (0, 0)))

    num_layers = len(params)
    layer_in = x_tm
    hs, cs = [], []
    for li, p_raw in enumerate(params):
        p = _prepare_layer(p_raw, li, H, H_pad, matmul_dtype)
        # intermediate layers stream bf16 activations; final layer writes x.dtype
        out_dtype = x.dtype if li == num_layers - 1 else matmul_dtype
        layer_out, h_T, c_T = _lstm_layer(
            layer_in, p["wih_t"], p["whh_t"], p["bias"], out_dtype,
            hidden_p=H_pad, t_chunk=t_chunk, tb=tb, seq_len=S,
            unroll=unroll, vmem_limit_bytes=vmem_limit_bytes)
        hs.append(h_T[:B, :H].astype(x.dtype))
        cs.append(c_T[:B, :H].astype(x.dtype))
        layer_in = layer_out                                   # (S_pad, B_pad, H_pad)

    out = jnp.transpose(layer_in[:S, :B, :H], (1, 0, 2))       # (B, S, H)
    hidden_state = jnp.stack(hs, axis=0)                       # (num_layers, B, H)
    cell_state = jnp.stack(cs, axis=0)                         # (num_layers, B, H)
    return out, (hidden_state, cell_state)


# ----------------------------------------------------------------------------
# Pure-JAX reference (lax.scan, f32) for a correctness sanity check
# ----------------------------------------------------------------------------
def _reference_forward(params, x, hidden_size):
    x_tm = jnp.transpose(x, (1, 0, 2))
    hs, cs = [], []
    layer_in = x_tm
    B = x.shape[0]
    for p in params:
        bias = (p["b_ih"] + p["b_hh"])[None, :]
        h0 = jnp.zeros((B, hidden_size), jnp.float32)
        c0 = jnp.zeros((B, hidden_size), jnp.float32)

        def step(carry, x_t, p=p, bias=bias):
            h, c = carry
            gates = x_t @ p["w_ih"].T + h @ p["w_hh"].T + bias
            i = jax.nn.sigmoid(gates[:, 0 * hidden_size:1 * hidden_size])
            f = jax.nn.sigmoid(gates[:, 1 * hidden_size:2 * hidden_size])
            g = jnp.tanh(gates[:, 2 * hidden_size:3 * hidden_size])
            o = jax.nn.sigmoid(gates[:, 3 * hidden_size:4 * hidden_size])
            c_new = f * c + i * g
            h_new = o * jnp.tanh(c_new)
            return (h_new, c_new), h_new

        (h_T, c_T), outs = jax.lax.scan(step, (h0, c0), layer_in)
        hs.append(h_T)
        cs.append(c_T)
        layer_in = outs
    return (jnp.transpose(layer_in, (1, 0, 2)),
            (jnp.stack(hs, 0), jnp.stack(cs, 0)))


if __name__ == "__main__":
    batch, seq, input_size, hidden_size, num_layers = 2, 8, 16, 32, 2

    key = jax.random.PRNGKey(0)
    key, pkey, xkey = jax.random.split(key, 3)
    params = init_encoder_params(pkey, input_size, hidden_size, num_layers)
    x = jax.random.normal(xkey, (batch, seq, input_size), jnp.float32)

    fwd = jax.jit(functools.partial(encoder_forward, hidden_size=hidden_size))
    out, (h_n, c_n) = fwd(params, x)
    jax.block_until_ready((out, h_n, c_n))

    # sanity check vs pure-JAX f32 reference (kernel matmuls run in bf16 with
    # f32 accumulation, hence the loose tolerance)
    out_ref, (h_ref, c_ref) = _reference_forward(params, x, hidden_size)
    assert out.shape == (batch, seq, hidden_size)
    assert h_n.shape == (num_layers, batch, hidden_size)
    assert c_n.shape == (num_layers, batch, hidden_size)
    assert jnp.allclose(out, out_ref, atol=5e-2)
    assert jnp.allclose(h_n, h_ref, atol=5e-2)
    assert jnp.allclose(c_n, c_ref, atol=5e-2)

    print("KERNEL_OK")
</pallas_src>

<mosaic_0001>
module attributes {stable_mosaic.version = 11 : i64} {
  func.func @_lstm_layer_kernel(%arg0: i32, %arg1: i32, %arg2: memref<8x8x16xbf16, #tpu.memory_space<vmem>>, %arg3: memref<16x512xbf16, #tpu.memory_space<vmem>>, %arg4: memref<128x512xbf16, #tpu.memory_space<vmem>>, %arg5: memref<1x512xf32, #tpu.memory_space<vmem>>, %arg6: memref<8x8x128xbf16, #tpu.memory_space<vmem>>, %arg7: memref<8x128xf32, #tpu.memory_space<vmem>>, %arg8: memref<8x128xf32, #tpu.memory_space<vmem>>, %arg9: memref<8x128xf32, #tpu.memory_space<vmem>>, %arg10: memref<8x128xf32, #tpu.memory_space<vmem>>, %arg11: memref<8x8x512xf32, #tpu.memory_space<vmem>>) attributes {dimension_semantics = [#tpu.dimension_semantics<parallel>, #tpu.dimension_semantics<arbitrary>], iteration_bounds = array<i64: 1, 1>, scalar_prefetch = 0 : i64, scratch_operands = 3 : i64, tpu.core_type = #tpu.core_type<tc>, window_params = [{transform_indices = @transform_0, window_bounds = array<i64: 8, 8, 16>}, {pipeline_mode = #tpu.pipeline_mode<synchronous>, transform_indices = @transform_1, window_bounds = array<i64: 16, 512>}, {pipeline_mode = #tpu.pipeline_mode<synchronous>, transform_indices = @transform_2, window_bounds = array<i64: 128, 512>}, {pipeline_mode = #tpu.pipeline_mode<synchronous>, transform_indices = @transform_3, window_bounds = array<i64: 1, 512>}, {transform_indices = @transform_4, window_bounds = array<i64: 8, 8, 128>}, {transform_indices = @transform_5, window_bounds = array<i64: 8, 128>}, {transform_indices = @transform_6, window_bounds = array<i64: 8, 128>}]} {
    %c0_i32 = arith.constant 0 : i32
    %0 = arith.cmpi eq, %arg1, %c0_i32 : i32
    %1 = arith.extui %0 : i1 to i32
    %c0_i32_0 = arith.constant 0 : i32
    %2 = arith.cmpi ne, %1, %c0_i32_0 : i32
    scf.if %2 {
      %cst_135 = arith.constant 0.000000e+00 : f32
      %356 = vector.broadcast %cst_135 : f32 to vector<8x128xf32>
      %c0_136 = arith.constant 0 : index
      %c0_137 = arith.constant 0 : index
      %357 = vector.load %arg9[%c0_136, %c0_137] : memref<8x128xf32, #tpu.memory_space<vmem>>, vector<8x128xf32>
      tpu.vector_store %arg9[%c0_136, %c0_137], %356 {strides = array<i32>} : memref<8x128xf32, #tpu.memory_space<vmem>>, vector<8x128xf32>,
      %cst_138 = arith.constant 0.000000e+00 : f32
      %358 = vector.broadcast %cst_138 : f32 to vector<8x128xf32>
      %c0_139 = arith.constant 0 : index
      %c0_140 = arith.constant 0 : index
      %359 = vector.load %arg10[%c0_139, %c0_140] : memref<8x128xf32, #tpu.memory_space<vmem>>, vector<8x128xf32>
      tpu.vector_store %arg10[%c0_139, %c0_140], %358 {strides = array<i32>} : memref<8x128xf32, #tpu.memory_space<vmem>>, vector<8x128xf32>,
    } else {
    }
    %c0 = arith.constant 0 : index
    %c0_1 = arith.constant 0 : index
    %c0_2 = arith.constant 0 : index
    %3 = vector.load %arg2[%c0, %c0_1, %c0_2] : memref<8x8x16xbf16, #tpu.memory_space<vmem>>, vector<8x8x16xbf16>
    %4 = vector.shape_cast %3 : vector<8x8x16xbf16> to vector<64x16xbf16>
    %c0_3 = arith.constant 0 : index
    %c0_4 = arith.constant 0 : index
    %5 = vector.load %arg3[%c0_3, %c0_4] : memref<16x512xbf16, #tpu.memory_space<vmem>>, vector<16x512xbf16>
    %cst = arith.constant dense<0.000000e+00> : vector<64x512xf32>
    %6 = tpu.matmul %4, %5, %cst {dimension_numbers = #tpu.dot_dimension_numbers<[1], [0], [0], [1], [0, 0, 1, 1], [], []>} : vector<64x16xbf16>, vector<16x512xbf16>, vector<64x512xf32> -> vector<64x512xf32>
    %c0_5 = arith.constant 0 : index
    %c0_6 = arith.constant 0 : index
    %7 = vector.load %arg5[%c0_5, %c0_6] : memref<1x512xf32, #tpu.memory_space<vmem>>, vector<1x512xf32>
    %8 = vector.broadcast %7 : vector<1x512xf32> to vector<64x512xf32>
    %9 = arith.addf %6, %8 : vector<64x512xf32>
    %10 = vector.shape_cast %9 : vector<64x512xf32> to vector<8x8x512xf32>
    %c0_7 = arith.constant 0 : index
    %c0_8 = arith.constant 0 : index
    %c0_9 = arith.constant 0 : index
    %11 = vector.load %arg11[%c0_7, %c0_8, %c0_9] : memref<8x8x512xf32, #tpu.memory_space<vmem>>, vector<8x8x512xf32>
    tpu.vector_store %arg11[%c0_7, %c0_8, %c0_9], %10 {strides = array<i32>} : memref<8x8x512xf32, #tpu.memory_space<vmem>>, vector<8x8x512xf32>,
    %c0_10 = arith.constant 0 : index
    %c0_11 = arith.constant 0 : index
    %12 = vector.load %arg4[%c0_10, %c0_11] : memref<128x512xbf16, #tpu.memory_space<vmem>>, vector<128x512xbf16>
    %c0_12 = arith.constant 0 : index
    %c0_13 = arith.constant 0 : index
    %13 = vector.load %arg9[%c0_12, %c0_13] : memref<8x128xf32, #tpu.memory_space<vmem>>, vector<8x128xf32>
    %c0_14 = arith.constant 0 : index
    %c0_15 = arith.constant 0 : index
    %14 = vector.load %arg10[%c0_14, %c0_15] : memref<8x128xf32, #tpu.memory_space<vmem>>, vector<8x128xf32>
    %c0_i32_16 = arith.constant 0 : i32
    %15 = arith.index_cast %c0_i32_16 : i32 to index
    %c0_17 = arith.constant 0 : index
    %c0_18 = arith.constant 0 : index
    %16 = vector.load %arg11[%15, %c0_17, %c0_18] : memref<8x8x512xf32, #tpu.memory_space<vmem>>, vector<1x8x512xf32>
    %17 = vector.shape_cast %16 : vector<1x8x512xf32> to vector<8x512xf32>
    %18 = arith.truncf %13 : vector<8x128xf32> to vector<8x128xbf16>
    %cst_19 = arith.constant dense<0.000000e+00> : vector<8x512xf32>
    %19 = tpu.matmul %18, %12, %cst_19 {dimension_numbers = #tpu.dot_dimension_numbers<[1], [0], [0], [1], [0, 0, 1, 1], [], []>} : vector<8x128xbf16>, vector<128x512xbf16>, vector<8x512xf32> -> vector<8x512xf32>
    %20 = arith.addf %17, %19 : vector<8x512xf32>
    %21 = vector.extract_strided_slice %20 {offsets = [0, 0], sizes = [8, 128], strides = [1, 1]} : vector<8x512xf32> to vector<8x128xf32>
    %cst_20 = arith.constant 5.000000e-01 : f32
    %22 = vector.broadcast %cst_20 : f32 to vector<8x128xf32>
    %23 = arith.mulf %22, %21 : vector<8x128xf32>
    %24 = math.tanh %23 : vector<8x128xf32>
    %cst_21 = arith.constant 5.000000e-01 : f32
    %25 = vector.broadcast %cst_21 : f32 to vector<8x128xf32>
    %26 = arith.mulf %25, %24 : vector<8x128xf32>
    %cst_22 = arith.constant 5.000000e-01 : f32
    %27 = vector.broadcast %cst_22 : f32 to vector<8x128xf32>
    %28 = arith.addf %26, %27 : vector<8x128xf32>
    %29 = vector.extract_strided_slice %20 {offsets = [0, 128], sizes = [8, 128], strides = [1, 1]} : vector<8x512xf32> to vector<8x128xf32>
    %cst_23 = arith.constant 5.000000e-01 : f32
    %30 = vector.broadcast %cst_23 : f32 to vector<8x128xf32>
    %31 = arith.mulf %30, %29 : vector<8x128xf32>
    %32 = math.tanh %31 : vector<8x128xf32>
    %cst_24 = arith.constant 5.000000e-01 : f32
    %33 = vector.broadcast %cst_24 : f32 to vector<8x128xf32>
    %34 = arith.mulf %33, %32 : vector<8x128xf32>
    %cst_25 = arith.constant 5.000000e-01 : f32
    %35 = vector.broadcast %cst_25 : f32 to vector<8x128xf32>
    %36 = arith.addf %34, %35 : vector<8x128xf32>
    %37 = vector.extract_strided_slice %20 {offsets = [0, 256], sizes = [8, 128], strides = [1, 1]} : vector<8x512xf32> to vector<8x128xf32>
    %38 = math.tanh %37 : vector<8x128xf32>
    %39 = vector.extract_strided_slice %20 {offsets = [0, 384], sizes = [8, 128], strides = [1, 1]} : vector<8x512xf32> to vector<8x128xf32>
    %cst_26 = arith.constant 5.000000e-01 : f32
    %40 = vector.broadcast %cst_26 : f32 to vector<8x128xf32>
    %41 = arith.mulf %40, %39 : vector<8x128xf32>
    %42 = math.tanh %41 : vector<8x128xf32>
    %cst_27 = arith.constant 5.000000e-01 : f32
    %43 = vector.broadcast %cst_27 : f32 to vector<8x128xf32>
    %44 = arith.mulf %43, %42 : vector<8x128xf32>
    %cst_28 = arith.constant 5.000000e-01 : f32
    %45 = vector.broadcast %cst_28 : f32 to vector<8x128xf32>
    %46 = arith.addf %44, %45 : vector<8x128xf32>
    %47 = arith.mulf %36, %14 : vector<8x128xf32>
    %48 = arith.mulf %28, %38 : vector<8x128xf32>
    %49 = arith.addf %47, %48 : vector<8x128xf32>
    %50 = math.tanh %49 : vector<8x128xf32>
    %51 = arith.mulf %46, %50 : vector<8x128xf32>
    %52 = arith.truncf %51 : vector<8x128xf32> to vector<8x128xbf16>
    %53 = arith.index_cast %c0_i32_16 : i32 to index
    %c0_29 = arith.constant 0 : index
    %c0_30 = arith.constant 0 : index
    %54 = vector.load %arg6[%53, %c0_29, %c0_30] : memref<8x8x128xbf16, #tpu.memory_space<vmem>>, vector<1x8x128xbf16>
    %55 = vector.shape_cast %54 : vector<1x8x128xbf16> to vector<8x128xbf16>
    %56 = vector.shape_cast %52 : vector<8x128xbf16> to vector<1x8x128xbf16>
    tpu.vector_store %arg6[%53, %c0_29, %c0_30], %56 {strides = array<i32>} : memref<8x8x128xbf16, #tpu.memory_space<vmem>>, vector<1x8x128xbf16>,
    %c1_i32 = arith.constant 1 : i32
    %57 = arith.index_cast %c1_i32 : i32 to index
    %c0_31 = arith.constant 0 : index
    %c0_32 = arith.constant 0 : index
    %58 = vector.load %arg11[%57, %c0_31, %c0_32] : memref<8x8x512xf32, #tpu.memory_space<vmem>>, vector<1x8x512xf32>
    %59 = vector.shape_cast %58 : vector<1x8x512xf32> to vector<8x512xf32>
    %60 = arith.truncf %51 : vector<8x128xf32> to vector<8x128xbf16>
    %cst_33 = arith.constant dense<0.000000e+00> : vector<8x512xf32>
    %61 = tpu.matmul %60, %12, %cst_33 {dimension_numbers = #tpu.dot_dimension_numbers<[1], [0], [0], [1], [0, 0, 1, 1], [], []>} : vector<8x128xbf16>, vector<128x512xbf16>, vector<8x512xf32> -> vector<8x512xf32>
    %62 = arith.addf %59, %61 : vector<8x512xf32>
    %63 = vector.extract_strided_slice %62 {offsets = [0, 0], sizes = [8, 128], strides = [1, 1]} : vector<8x512xf32> to vector<8x128xf32>
    %cst_34 = arith.constant 5.000000e-01 : f32
    %64 = vector.broadcast %cst_34 : f32 to vector<8x128xf32>
    %65 = arith.mulf %64, %63 : vector<8x128xf32>
    %66 = math.tanh %65 : vector<8x128xf32>
    %cst_35 = arith.constant 5.000000e-01 : f32
    %67 = vector.broadcast %cst_35 : f32 to vector<8x128xf32>
    %68 = arith.mulf %67, %66 : vector<8x128xf32>
    %cst_36 = arith.constant 5.000000e-01 : f32
    %69 = vector.broadcast %cst_36 : f32 to vector<8x128xf32>
    %70 = arith.addf %68, %69 : vector<8x128xf32>
    %71 = vector.extract_strided_slice %62 {offsets = [0, 128], sizes = [8, 128], strides = [1, 1]} : vector<8x512xf32> to vector<8x128xf32>
    %cst_37 = arith.constant 5.000000e-01 : f32
    %72 = vector.broadcast %cst_37 : f32 to vector<8x128xf32>
    %73 = arith.mulf %72, %71 : vector<8x128xf32>
    %74 = math.tanh %73 : vector<8x128xf32>
    %cst_38 = arith.constant 5.000000e-01 : f32
    %75 = vector.broadcast %cst_38 : f32 to vector<8x128xf32>
    %76 = arith.mulf %75, %74 : vector<8x128xf32>
    %cst_39 = arith.constant 5.000000e-01 : f32
    %77 = vector.broadcast %cst_39 : f32 to vector<8x128xf32>
    %78 = arith.addf %76, %77 : vector<8x128xf32>
    %79 = vector.extract_strided_slice %62 {offsets = [0, 256], sizes = [8, 128], strides = [1, 1]} : vector<8x512xf32> to vector<8x128xf32>
    %80 = math.tanh %79 : vector<8x128xf32>
    %81 = vector.extract_strided_slice %62 {offsets = [0, 384], sizes = [8, 128], strides = [1, 1]} : vector<8x512xf32> to vector<8x128xf32>
    %cst_40 = arith.constant 5.000000e-01 : f32
    %82 = vector.broadcast %cst_40 : f32 to vector<8x128xf32>
    %83 = arith.mulf %82, %81 : vector<8x128xf32>
    %84 = math.tanh %83 : vector<8x128xf32>
    %cst_41 = arith.constant 5.000000e-01 : f32
    %85 = vector.broadcast %cst_41 : f32 to vector<8x128xf32>
    %86 = arith.mulf %85, %84 : vector<8x128xf32>
    %cst_42 = arith.constant 5.000000e-01 : f32
    %87 = vector.broadcast %cst_42 : f32 to vector<8x128xf32>
    %88 = arith.addf %86, %87 : vector<8x128xf32>
    %89 = arith.mulf %78, %49 : vector<8x128xf32>
    %90 = arith.mulf %70, %80 : vector<8x128xf32>
    %91 = arith.addf %89, %90 : vector<8x128xf32>
    %92 = math.tanh %91 : vector<8x128xf32>
    %93 = arith.mulf %88, %92 : vector<8x128xf32>
    %94 = arith.truncf %93 : vector<8x128xf32> to vector<8x128xbf16>
    %95 = arith.index_cast %c1_i32 : i32 to index
    %c0_43 = arith.constant 0 : index
    %c0_44 = arith.constant 0 : index
    %96 = vector.load %arg6[%95, %c0_43, %c0_44] : memref<8x8x128xbf16, #tpu.memory_space<vmem>>, vector<1x8x128xbf16>
    %97 = vector.shape_cast %96 : vector<1x8x128xbf16> to vector<8x128xbf16>
    %98 = vector.shape_cast %94 : vector<8x128xbf16> to vector<1x8x128xbf16>
    tpu.vector_store %arg6[%95, %c0_43, %c0_44], %98 {strides = array<i32>} : memref<8x8x128xbf16, #tpu.memory_space<vmem>>, vector<1x8x128xbf16>,
    %c2_i32 = arith.constant 2 : i32
    %99 = arith.index_cast %c2_i32 : i32 to index
    %c0_45 = arith.constant 0 : index
    %c0_46 = arith.constant 0 : index
    %100 = vector.load %arg11[%99, %c0_45, %c0_46] : memref<8x8x512xf32, #tpu.memory_space<vmem>>, vector<1x8x512xf32>
    %101 = vector.shape_cast %100 : vector<1x8x512xf32> to vector<8x512xf32>
    %102 = arith.truncf %93 : vector<8x128xf32> to vector<8x128xbf16>
    %cst_47 = arith.constant dense<0.000000e+00> : vector<8x512xf32>
    %103 = tpu.matmul %102, %12, %cst_47 {dimension_numbers = #tpu.dot_dimension_numbers<[1], [0], [0], [1], [0, 0, 1, 1], [], []>} : vector<8x128xbf16>, vector<128x512xbf16>, vector<8x512xf32> -> vector<8x512xf32>
    %104 = arith.addf %101, %103 : vector<8x512xf32>
    %105 = vector.extract_strided_slice %104 {offsets = [0, 0], sizes = [8, 128], strides = [1, 1]} : vector<8x512xf32> to vector<8x128xf32>
    %cst_48 = arith.constant 5.000000e-01 : f32
    %106 = vector.broadcast %cst_48 : f32 to vector<8x128xf32>
    %107 = arith.mulf %106, %105 : vector<8x128xf32>
    %108 = math.tanh %107 : vector<8x128xf32>
    %cst_49 = arith.constant 5.000000e-01 : f32
    %109 = vector.broadcast %cst_49 : f32 to vector<8x128xf32>
    %110 = arith.mulf %109, %108 : vector<8x128xf32>
    %cst_50 = arith.constant 5.000000e-01 : f32
    %111 = vector.broadcast %cst_50 : f32 to vector<8x128xf32>
    %112 = arith.addf %110, %111 : vector<8x128xf32>
    %113 = vector.extract_strided_slice %104 {offsets = [0, 128], sizes = [8, 128], strides = [1, 1]} : vector<8x512xf32> to vector<8x128xf32>
    %cst_51 = arith.constant 5.000000e-01 : f32
    %114 = vector.broadcast %cst_51 : f32 to vector<8x128xf32>
    %115 = arith.mulf %114, %113 : vector<8x128xf32>
    %116 = math.tanh %115 : vector<8x128xf32>
    %cst_52 = arith.constant 5.000000e-01 : f32
    %117 = vector.broadcast %cst_52 : f32 to vector<8x128xf32>
    %118 = arith.mulf %117, %116 : vector<8x128xf32>
    %cst_53 = arith.constant 5.000000e-01 : f32
    %119 = vector.broadcast %cst_53 : f32 to vector<8x128xf32>
    %120 = arith.addf %118, %119 : vector<8x128xf32>
    %121 = vector.extract_strided_slice %104 {offsets = [0, 256], sizes = [8, 128], strides = [1, 1]} : vector<8x512xf32> to vector<8x128xf32>
    %122 = math.tanh %121 : vector<8x128xf32>
    %123 = vector.extract_strided_slice %104 {offsets = [0, 384], sizes = [8, 128], strides = [1, 1]} : vector<8x512xf32> to vector<8x128xf32>
    %cst_54 = arith.constant 5.000000e-01 : f32
    %124 = vector.broadcast %cst_54 : f32 to vector<8x128xf32>
    %125 = arith.mulf %124, %123 : vector<8x128xf32>
    %126 = math.tanh %125 : vector<8x128xf32>
    %cst_55 = arith.constant 5.000000e-01 : f32
    %127 = vector.broadcast %cst_55 : f32 to vector<8x128xf32>
    %128 = arith.mulf %127, %126 : vector<8x128xf32>
    %cst_56 = arith.constant 5.000000e-01 : f32
    %129 = vector.broadcast %cst_56 : f32 to vector<8x128xf32>
    %130 = arith.addf %128, %129 : vector<8x128xf32>
    %131 = arith.mulf %120, %91 : vector<8x128xf32>
    %132 = arith.mulf %112, %122 : vector<8x128xf32>
    %133 = arith.addf %131, %132 : vector<8x128xf32>
    %134 = math.tanh %133 : vector<8x128xf32>
    %135 = arith.mulf %130, %134 : vector<8x128xf32>
    %136 = arith.truncf %135 : vector<8x128xf32> to vector<8x128xbf16>
    %137 = arith.index_cast %c2_i32 : i32 to index
    %c0_57 = arith.constant 0 : index
    %c0_58 = arith.constant 0 : index
    %138 = vector.load %arg6[%137, %c0_57, %c0_58] : memref<8x8x128xbf16, #tpu.memory_space<vmem>>, vector<1x8x128xbf16>
    %139 = vector.shape_cast %138 : vector<1x8x128xbf16> to vector<8x128xbf16>
    %140 = vector.shape_cast %136 : vector<8x128xbf16> to vector<1x8x128xbf16>
    tpu.vector_store %arg6[%137, %c0_57, %c0_58], %140 {strides = array<i32>} : memref<8x8x128xbf16, #tpu.memory_space<vmem>>, vector<1x8x128xbf16>,
    %c3_i32 = arith.constant 3 : i32
    %141 = arith.index_cast %c3_i32 : i32 to index
    %c0_59 = arith.constant 0 : index
    %c0_60 = arith.constant 0 : index
    %142 = vector.load %arg11[%141, %c0_59, %c0_60] : memref<8x8x512xf32, #tpu.memory_space<vmem>>, vector<1x8x512xf32>
    %143 = vector.shape_cast %142 : vector<1x8x512xf32> to vector<8x512xf32>
    %144 = arith.truncf %135 : vector<8x128xf32> to vector<8x128xbf16>
    %cst_61 = arith.constant dense<0.000000e+00> : vector<8x512xf32>
    %145 = tpu.matmul %144, %12, %cst_61 {dimension_numbers = #tpu.dot_dimension_numbers<[1], [0], [0], [1], [0, 0, 1, 1], [], []>} : vector<8x128xbf16>, vector<128x512xbf16>, vector<8x512xf32> -> vector<8x512xf32>
    %146 = arith.addf %143, %145 : vector<8x512xf32>
    %147 = vector.extract_strided_slice %146 {offsets = [0, 0], sizes = [8, 128], strides = [1, 1]} : vector<8x512xf32> to vector<8x128xf32>
    %cst_62 = arith.constant 5.000000e-01 : f32
    %148 = vector.broadcast %cst_62 : f32 to vector<8x128xf32>
    %149 = arith.mulf %148, %147 : vector<8x128xf32>
    %150 = math.tanh %149 : vector<8x128xf32>
    %cst_63 = arith.constant 5.000000e-01 : f32
    %151 = vector.broadcast %cst_63 : f32 to vector<8x128xf32>
    %152 = arith.mulf %151, %150 : vector<8x128xf32>
    %cst_64 = arith.constant 5.000000e-01 : f32
    %153 = vector.broadcast %cst_64 : f32 to vector<8x128xf32>
    %154 = arith.addf %152, %153 : vector<8x128xf32>
    %155 = vector.extract_strided_slice %146 {offsets = [0, 128], sizes = [8, 128], strides = [1, 1]} : vector<8x512xf32> to vector<8x128xf32>
    %cst_65 = arith.constant 5.000000e-01 : f32
    %156 = vector.broadcast %cst_65 : f32 to vector<8x128xf32>
    %157 = arith.mulf %156, %155 : vector<8x128xf32>
    %158 = math.tanh %157 : vector<8x128xf32>
    %cst_66 = arith.constant 5.000000e-01 : f32
    %159 = vector.broadcast %cst_66 : f32 to vector<8x128xf32>
    %160 = arith.mulf %159, %158 : vector<8x128xf32>
    %cst_67 = arith.constant 5.000000e-01 : f32
    %161 = vector.broadcast %cst_67 : f32 to vector<8x128xf32>
    %162 = arith.addf %160, %161 : vector<8x128xf32>
    %163 = vector.extract_strided_slice %146 {offsets = [0, 256], sizes = [8, 128], strides = [1, 1]} : vector<8x512xf32> to vector<8x128xf32>
    %164 = math.tanh %163 : vector<8x128xf32>
    %165 = vector.extract_strided_slice %146 {offsets = [0, 384], sizes = [8, 128], strides = [1, 1]} : vector<8x512xf32> to vector<8x128xf32>
    %cst_68 = arith.constant 5.000000e-01 : f32
    %166 = vector.broadcast %cst_68 : f32 to vector<8x128xf32>
    %167 = arith.mulf %166, %165 : vector<8x128xf32>
    %168 = math.tanh %167 : vector<8x128xf32>
    %cst_69 = arith.constant 5.000000e-01 : f32
    %169 = vector.broadcast %cst_69 : f32 to vector<8x128xf32>
    %170 = arith.mulf %169, %168 : vector<8x128xf32>
    %cst_70 = arith.constant 5.000000e-01 : f32
    %171 = vector.broadcast %cst_70 : f32 to vector<8x128xf32>
    %172 = arith.addf %170, %171 : vector<8x128xf32>
    %173 = arith.mulf %162, %133 : vector<8x128xf32>
    %174 = arith.mulf %154, %164 : vector<8x128xf32>
    %175 = arith.addf %173, %174 : vector<8x128xf32>
    %176 = math.tanh %175 : vector<8x128xf32>
    %177 = arith.mulf %172, %176 : vector<8x128xf32>
    %178 = arith.truncf %177 : vector<8x128xf32> to vector<8x128xbf16>
    %179 = arith.index_cast %c3_i32 : i32 to index
    %c0_71 = arith.constant 0 : index
    %c0_72 = arith.constant 0 : index
    %180 = vector.load %arg6[%179, %c0_71, %c0_72] : memref<8x8x128xbf16, #tpu.memory_space<vmem>>, vector<1x8x128xbf16>
    %181 = vector.shape_cast %180 : vector<1x8x128xbf16> to vector<8x128xbf16>
    %182 = vector.shape_cast %178 : vector<8x128xbf16> to vector<1x8x128xbf16>
    tpu.vector_store %arg6[%179, %c0_71, %c0_72], %182 {strides = array<i32>} : memref<8x8x128xbf16, #tpu.memory_space<vmem>>, vector<1x8x128xbf16>,
    %c4_i32 = arith.constant 4 : i32
    %183 = arith.index_cast %c4_i32 : i32 to index
    %c0_73 = arith.constant 0 : index
    %c0_74 = arith.constant 0 : index
    %184 = vector.load %arg11[%183, %c0_73, %c0_74] : memref<8x8x512xf32, #tpu.memory_space<vmem>>, vector<1x8x512xf32>
    %185 = vector.shape_cast %184 : vector<1x8x512xf32> to vector<8x512xf32>
    %186 = arith.truncf %177 : vector<8x128xf32> to vector<8x128xbf16>
    %cst_75 = arith.constant dense<0.000000e+00> : vector<8x512xf32>
    %187 = tpu.matmul %186, %12, %cst_75 {dimension_numbers = #tpu.dot_dimension_numbers<[1], [0], [0], [1], [0, 0, 1, 1], [], []>} : vector<8x128xbf16>, vector<128x512xbf16>, vector<8x512xf32> -> vector<8x512xf32>
    %188 = arith.addf %185, %187 : vector<8x512xf32>
    %189 = vector.extract_strided_slice %188 {offsets = [0, 0], sizes = [8, 128], strides = [1, 1]} : vector<8x512xf32> to vector<8x128xf32>
    %cst_76 = arith.constant 5.000000e-01 : f32
    %190 = vector.broadcast %cst_76 : f32 to vector<8x128xf32>
    %191 = arith.mulf %190, %189 : vector<8x128xf32>
    %192 = math.tanh %191 : vector<8x128xf32>
    %cst_77 = arith.constant 5.000000e-01 : f32
    %193 = vector.broadcast %cst_77 : f32 to vector<8x128xf32>
    %194 = arith.mulf %193, %192 : vector<8x128xf32>
    %cst_78 = arith.constant 5.000000e-01 : f32
    %195 = vector.broadcast %cst_78 : f32 to vector<8x128xf32>
    %196 = arith.addf %194, %195 : vector<8x128xf32>
    %197 = vector.extract_strided_slice %188 {offsets = [0, 128], sizes = [8, 128], strides = [1, 1]} : vector<8x512xf32> to vector<8x128xf32>
    %cst_79 = arith.constant 5.000000e-01 : f32
    %198 = vector.broadcast %cst_79 : f32 to vector<8x128xf32>
    %199 = arith.mulf %198, %197 : vector<8x128xf32>
    %200 = math.tanh %199 : vector<8x128xf32>
    %cst_80 = arith.constant 5.000000e-01 : f32
    %201 = vector.broadcast %cst_80 : f32 to vector<8x128xf32>
    %202 = arith.mulf %201, %200 : vector<8x128xf32>
    %cst_81 = arith.constant 5.000000e-01 : f32
    %203 = vector.broadcast %cst_81 : f32 to vector<8x128xf32>
    %204 = arith.addf %202, %203 : vector<8x128xf32>
    %205 = vector.extract_strided_slice %188 {offsets = [0, 256], sizes = [8, 128], strides = [1, 1]} : vector<8x512xf32> to vector<8x128xf32>
    %206 = math.tanh %205 : vector<8x128xf32>
    %207 = vector.extract_strided_slice %188 {offsets = [0, 384], sizes = [8, 128], strides = [1, 1]} : vector<8x512xf32> to vector<8x128xf32>
    %cst_82 = arith.constant 5.000000e-01 : f32
    %208 = vector.broadcast %cst_82 : f32 to vector<8x128xf32>
    %209 = arith.mulf %208, %207 : vector<8x128xf32>
    %210 = math.tanh %209 : vector<8x128xf32>
    %cst_83 = arith.constant 5.000000e-01 : f32
    %211 = vector.broadcast %cst_83 : f32 to vector<8x128xf32>
    %212 = arith.mulf %211, %210 : vector<8x128xf32>
    %cst_84 = arith.constant 5.000000e-01 : f32
    %213 = vector.broadcast %cst_84 : f32 to vector<8x128xf32>
    %214 = arith.addf %212, %213 : vector<8x128xf32>
    %215 = arith.mulf %204, %175 : vector<8x128xf32>
    %216 = arith.mulf %196, %206 : vector<8x128xf32>
    %217 = arith.addf %215, %216 : vector<8x128xf32>
    %218 = math.tanh %217 : vector<8x128xf32>
    %219 = arith.mulf %214, %218 : vector<8x128xf32>
    %220 = arith.truncf %219 : vector<8x128xf32> to vector<8x128xbf16>
    %221 = arith.index_cast %c4_i32 : i32 to index
    %c0_85 = arith.constant 0 : index
    %c0_86 = arith.constant 0 : index
    %222 = vector.load %arg6[%221, %c0_85, %c0_86] : memref<8x8x128xbf16, #tpu.memory_space<vmem>>, vector<1x8x128xbf16>
    %223 = vector.shape_cast %222 : vector<1x8x128xbf16> to vector<8x128xbf16>
    %224 = vector.shape_cast %220 : vector<8x128xbf16> to vector<1x8x128xbf16>
    tpu.vector_store %arg6[%221, %c0_85, %c0_86], %224 {strides = array<i32>} : memref<8x8x128xbf16, #tpu.memory_space<vmem>>, vector<1x8x128xbf16>,
    %c5_i32 = arith.constant 5 : i32
    %225 = arith.index_cast %c5_i32 : i32 to index
    %c0_87 = arith.constant 0 : index
    %c0_88 = arith.constant 0 : index
    %226 = vector.load %arg11[%225, %c0_87, %c0_88] : memref<8x8x512xf32, #tpu.memory_space<vmem>>, vector<1x8x512xf32>
    %227 = vector.shape_cast %226 : vector<1x8x512xf32> to vector<8x512xf32>
    %228 = arith.truncf %219 : vector<8x128xf32> to vector<8x128xbf16>
    %cst_89 = arith.constant dense<0.000000e+00> : vector<8x512xf32>
    %229 = tpu.matmul %228, %12, %cst_89 {dimension_numbers = #tpu.dot_dimension_numbers<[1], [0], [0], [1], [0, 0, 1, 1], [], []>} : vector<8x128xbf16>, vector<128x512xbf16>, vector<8x512xf32> -> vector<8x512xf32>
    %230 = arith.addf %227, %229 : vector<8x512xf32>
    %231 = vector.extract_strided_slice %230 {offsets = [0, 0], sizes = [8, 128], strides = [1, 1]} : vector<8x512xf32> to vector<8x128xf32>
    %cst_90 = arith.constant 5.000000e-01 : f32
    %232 = vector.broadcast %cst_90 : f32 to vector<8x128xf32>
    %233 = arith.mulf %232, %231 : vector<8x128xf32>
    %234 = math.tanh %233 : vector<8x128xf32>
    %cst_91 = arith.constant 5.000000e-01 : f32
    %235 = vector.broadcast %cst_91 : f32 to vector<8x128xf32>
    %236 = arith.mulf %235, %234 : vector<8x128xf32>
    %cst_92 = arith.constant 5.000000e-01 : f32
    %237 = vector.broadcast %cst_92 : f32 to vector<8x128xf32>
    %238 = arith.addf %236, %237 : vector<8x128xf32>
    %239 = vector.extract_strided_slice %230 {offsets = [0, 128], sizes = [8, 128], strides = [1, 1]} : vector<8x512xf32> to vector<8x128xf32>
    %cst_93 = arith.constant 5.000000e-01 : f32
    %240 = vector.broadcast %cst_93 : f32 to vector<8x128xf32>
    %241 = arith.mulf %240, %239 : vector<8x128xf32>
    %242 = math.tanh %241 : vector<8x128xf32>
    %cst_94 = arith.constant 5.000000e-01 : f32
    %243 = vector.broadcast %cst_94 : f32 to vector<8x128xf32>
    %244 = arith.mulf %243, %242 : vector<8x128xf32>
    %cst_95 = arith.constant 5.000000e-01 : f32
    %245 = vector.broadcast %cst_95 : f32 to vector<8x128xf32>
    %246 = arith.addf %244, %245 : vector<8x128xf32>
    %247 = vector.extract_strided_slice %230 {offsets = [0, 256], sizes = [8, 128], strides = [1, 1]} : vector<8x512xf32> to vector<8x128xf32>
    %248 = math.tanh %247 : vector<8x128xf32>
    %249 = vector.extract_strided_slice %230 {offsets = [0, 384], sizes = [8, 128], strides = [1, 1]} : vector<8x512xf32> to vector<8x128xf32>
    %cst_96 = arith.constant 5.000000e-01 : f32
    %250 = vector.broadcast %cst_96 : f32 to vector<8x128xf32>
    %251 = arith.mulf %250, %249 : vector<8x128xf32>
    %252 = math.tanh %251 : vector<8x128xf32>
    %cst_97 = arith.constant 5.000000e-01 : f32
    %253 = vector.broadcast %cst_97 : f32 to vector<8x128xf32>
    %254 = arith.mulf %253, %252 : vector<8x128xf32>
    %cst_98 = arith.constant 5.000000e-01 : f32
    %255 = vector.broadcast %cst_98 : f32 to vector<8x128xf32>
    %256 = arith.addf %254, %255 : vector<8x128xf32>
    %257 = arith.mulf %246, %217 : vector<8x128xf32>
    %258 = arith.mulf %238, %248 : vector<8x128xf32>
    %259 = arith.addf %257, %258 : vector<8x128xf32>
    %260 = math.tanh %259 : vector<8x128xf32>
    %261 = arith.mulf %256, %260 : vector<8x128xf32>
    %262 = arith.truncf %261 : vector<8x128xf32> to vector<8x128xbf16>
    %263 = arith.index_cast %c5_i32 : i32 to index
    %c0_99 = arith.constant 0 : index
    %c0_100 = arith.constant 0 : index
    %264 = vector.load %arg6[%263, %c0_99, %c0_100] : memref<8x8x128xbf16, #tpu.memory_space<vmem>>, vector<1x8x128xbf16>
    %265 = vector.shape_cast %264 : vector<1x8x128xbf16> to vector<8x128xbf16>
    %266 = vector.shape_cast %262 : vector<8x128xbf16> to vector<1x8x128xbf16>
    tpu.vector_store %arg6[%263, %c0_99, %c0_100], %266 {strides = array<i32>} : memref<8x8x128xbf16, #tpu.memory_space<vmem>>, vector<1x8x128xbf16>,
    %c6_i32 = arith.constant 6 : i32
    %267 = arith.index_cast %c6_i32 : i32 to index
    %c0_101 = arith.constant 0 : index
    %c0_102 = arith.constant 0 : index
    %268 = vector.load %arg11[%267, %c0_101, %c0_102] : memref<8x8x512xf32, #tpu.memory_space<vmem>>, vector<1x8x512xf32>
    %269 = vector.shape_cast %268 : vector<1x8x512xf32> to vector<8x512xf32>
    %270 = arith.truncf %261 : vector<8x128xf32> to vector<8x128xbf16>
    %cst_103 = arith.constant dense<0.000000e+00> : vector<8x512xf32>
    %271 = tpu.matmul %270, %12, %cst_103 {dimension_numbers = #tpu.dot_dimension_numbers<[1], [0], [0], [1], [0, 0, 1, 1], [], []>} : vector<8x128xbf16>, vector<128x512xbf16>, vector<8x512xf32> -> vector<8x512xf32>
    %272 = arith.addf %269, %271 : vector<8x512xf32>
    %273 = vector.extract_strided_slice %272 {offsets = [0, 0], sizes = [8, 128], strides = [1, 1]} : vector<8x512xf32> to vector<8x128xf32>
    %cst_104 = arith.constant 5.000000e-01 : f32
    %274 = vector.broadcast %cst_104 : f32 to vector<8x128xf32>
    %275 = arith.mulf %274, %273 : vector<8x128xf32>
    %276 = math.tanh %275 : vector<8x128xf32>
    %cst_105 = arith.constant 5.000000e-01 : f32
    %277 = vector.broadcast %cst_105 : f32 to vector<8x128xf32>
    %278 = arith.mulf %277, %276 : vector<8x128xf32>
    %cst_106 = arith.constant 5.000000e-01 : f32
    %279 = vector.broadcast %cst_106 : f32 to vector<8x128xf32>
    %280 = arith.addf %278, %279 : vector<8x128xf32>
    %281 = vector.extract_strided_slice %272 {offsets = [0, 128], sizes = [8, 128], strides = [1, 1]} : vector<8x512xf32> to vector<8x128xf32>
    %cst_107 = arith.constant 5.000000e-01 : f32
    %282 = vector.broadcast %cst_107 : f32 to vector<8x128xf32>
    %283 = arith.mulf %282, %281 : vector<8x128xf32>
    %284 = math.tanh %283 : vector<8x128xf32>
    %cst_108 = arith.constant 5.000000e-01 : f32
    %285 = vector.broadcast %cst_108 : f32 to vector<8x128xf32>
    %286 = arith.mulf %285, %284 : vector<8x128xf32>
    %cst_109 = arith.constant 5.000000e-01 : f32
    %287 = vector.broadcast %cst_109 : f32 to vector<8x128xf32>
    %288 = arith.addf %286, %287 : vector<8x128xf32>
    %289 = vector.extract_strided_slice %272 {offsets = [0, 256], sizes = [8, 128], strides = [1, 1]} : vector<8x512xf32> to vector<8x128xf32>
    %290 = math.tanh %289 : vector<8x128xf32>
    %291 = vector.extract_strided_slice %272 {offsets = [0, 384], sizes = [8, 128], strides = [1, 1]} : vector<8x512xf32> to vector<8x128xf32>
    %cst_110 = arith.constant 5.000000e-01 : f32
    %292 = vector.broadcast %cst_110 : f32 to vector<8x128xf32>
    %293 = arith.mulf %292, %291 : vector<8x128xf32>
    %294 = math.tanh %293 : vector<8x128xf32>
    %cst_111 = arith.constant 5.000000e-01 : f32
    %295 = vector.broadcast %cst_111 : f32 to vector<8x128xf32>
    %296 = arith.mulf %295, %294 : vector<8x128xf32>
    %cst_112 = arith.constant 5.000000e-01 : f32
    %297 = vector.broadcast %cst_112 : f32 to vector<8x128xf32>
    %298 = arith.addf %296, %297 : vector<8x128xf32>
    %299 = arith.mulf %288, %259 : vector<8x128xf32>
    %300 = arith.mulf %280, %290 : vector<8x128xf32>
    %301 = arith.addf %299, %300 : vector<8x128xf32>
    %302 = math.tanh %301 : vector<8x128xf32>
    %303 = arith.mulf %298, %302 : vector<8x128xf32>
    %304 = arith.truncf %303 : vector<8x128xf32> to vector<8x128xbf16>
    %305 = arith.index_cast %c6_i32 : i32 to index
    %c0_113 = arith.constant 0 : index
    %c0_114 = arith.constant 0 : index
    %306 = vector.load %arg6[%305, %c0_113, %c0_114] : memref<8x8x128xbf16, #tpu.memory_space<vmem>>, vector<1x8x128xbf16>
    %307 = vector.shape_cast %306 : vector<1x8x128xbf16> to vector<8x128xbf16>
    %308 = vector.shape_cast %304 : vector<8x128xbf16> to vector<1x8x128xbf16>
    tpu.vector_store %arg6[%305, %c0_113, %c0_114], %308 {strides = array<i32>} : memref<8x8x128xbf16, #tpu.memory_space<vmem>>, vector<1x8x128xbf16>,
    %c7_i32 = arith.constant 7 : i32
    %309 = arith.index_cast %c7_i32 : i32 to index
    %c0_115 = arith.constant 0 : index
    %c0_116 = arith.constant 0 : index
    %310 = vector.load %arg11[%309, %c0_115, %c0_116] : memref<8x8x512xf32, #tpu.memory_space<vmem>>, vector<1x8x512xf32>
    %311 = vector.shape_cast %310 : vector<1x8x512xf32> to vector<8x512xf32>
    %312 = arith.truncf %303 : vector<8x128xf32> to vector<8x128xbf16>
    %cst_117 = arith.constant dense<0.000000e+00> : vector<8x512xf32>
    %313 = tpu.matmul %312, %12, %cst_117 {dimension_numbers = #tpu.dot_dimension_numbers<[1], [0], [0], [1], [0, 0, 1, 1], [], []>} : vector<8x128xbf16>, vector<128x512xbf16>, vector<8x512xf32> -> vector<8x512xf32>
    %314 = arith.addf %311, %313 : vector<8x512xf32>
    %315 = vector.extract_strided_slice %314 {offsets = [0, 0], sizes = [8, 128], strides = [1, 1]} : vector<8x512xf32> to vector<8x128xf32>
    %cst_118 = arith.constant 5.000000e-01 : f32
    %316 = vector.broadcast %cst_118 : f32 to vector<8x128xf32>
    %317 = arith.mulf %316, %315 : vector<8x128xf32>
    %318 = math.tanh %317 : vector<8x128xf32>
    %cst_119 = arith.constant 5.000000e-01 : f32
    %319 = vector.broadcast %cst_119 : f32 to vector<8x128xf32>
    %320 = arith.mulf %319, %318 : vector<8x128xf32>
    %cst_120 = arith.constant 5.000000e-01 : f32
    %321 = vector.broadcast %cst_120 : f32 to vector<8x128xf32>
    %322 = arith.addf %320, %321 : vector<8x128xf32>
    %323 = vector.extract_strided_slice %314 {offsets = [0, 128], sizes = [8, 128], strides = [1, 1]} : vector<8x512xf32> to vector<8x128xf32>
    %cst_121 = arith.constant 5.000000e-01 : f32
    %324 = vector.broadcast %cst_121 : f32 to vector<8x128xf32>
    %325 = arith.mulf %324, %323 : vector<8x128xf32>
    %326 = math.tanh %325 : vector<8x128xf32>
    %cst_122 = arith.constant 5.000000e-01 : f32
    %327 = vector.broadcast %cst_122 : f32 to vector<8x128xf32>
    %328 = arith.mulf %327, %326 : vector<8x128xf32>
    %cst_123 = arith.constant 5.000000e-01 : f32
    %329 = vector.broadcast %cst_123 : f32 to vector<8x128xf32>
    %330 = arith.addf %328, %329 : vector<8x128xf32>
    %331 = vector.extract_strided_slice %314 {offsets = [0, 256], sizes = [8, 128], strides = [1, 1]} : vector<8x512xf32> to vector<8x128xf32>
    %332 = math.tanh %331 : vector<8x128xf32>
    %333 = vector.extract_strided_slice %314 {offsets = [0, 384], sizes = [8, 128], strides = [1, 1]} : vector<8x512xf32> to vector<8x128xf32>
    %cst_124 = arith.constant 5.000000e-01 : f32
    %334 = vector.broadcast %cst_124 : f32 to vector<8x128xf32>
    %335 = arith.mulf %334, %333 : vector<8x128xf32>
    %336 = math.tanh %335 : vector<8x128xf32>
    %cst_125 = arith.constant 5.000000e-01 : f32
    %337 = vector.broadcast %cst_125 : f32 to vector<8x128xf32>
    %338 = arith.mulf %337, %336 : vector<8x128xf32>
    %cst_126 = arith.constant 5.000000e-01 : f32
    %339 = vector.broadcast %cst_126 : f32 to vector<8x128xf32>
    %340 = arith.addf %338, %339 : vector<8x128xf32>
    %341 = arith.mulf %330, %301 : vector<8x128xf32>
    %342 = arith.mulf %322, %332 : vector<8x128xf32>
    %343 = arith.addf %341, %342 : vector<8x128xf32>
    %344 = math.tanh %343 : vector<8x128xf32>
    %345 = arith.mulf %340, %344 : vector<8x128xf32>
    %346 = arith.truncf %345 : vector<8x128xf32> to vector<8x128xbf16>
    %347 = arith.index_cast %c7_i32 : i32 to index
    %c0_127 = arith.constant 0 : index
    %c0_128 = arith.constant 0 : index
    %348 = vector.load %arg6[%347, %c0_127, %c0_128] : memref<8x8x128xbf16, #tpu.memory_space<vmem>>, vector<1x8x128xbf16>
    %349 = vector.shape_cast %348 : vector<1x8x128xbf16> to vector<8x128xbf16>
    %350 = vector.shape_cast %346 : vector<8x128xbf16> to vector<1x8x128xbf16>
    tpu.vector_store %arg6[%347, %c0_127, %c0_128], %350 {strides = array<i32>} : memref<8x8x128xbf16, #tpu.memory_space<vmem>>, vector<1x8x128xbf16>,
    %c8_i32 = arith.constant 8 : i32
    %c0_129 = arith.constant 0 : index
    %c0_130 = arith.constant 0 : index
    %351 = vector.load %arg9[%c0_129, %c0_130] : memref<8x128xf32, #tpu.memory_space<vmem>>, vector<8x128xf32>
    tpu.vector_store %arg9[%c0_129, %c0_130], %345 {strides = array<i32>} : memref<8x128xf32, #tpu.memory_space<vmem>>, vector<8x128xf32>,
    %c0_131 = arith.constant 0 : index
    %c0_132 = arith.constant 0 : index
    %352 = vector.load %arg10[%c0_131, %c0_132] : memref<8x128xf32, #tpu.memory_space<vmem>>, vector<8x128xf32>
    tpu.vector_store %arg10[%c0_131, %c0_132], %343 {strides = array<i32>} : memref<8x128xf32, #tpu.memory_space<vmem>>, vector<8x128xf32>,
    %c0_i32_133 = arith.constant 0 : i32
    %353 = arith.cmpi eq, %arg1, %c0_i32_133 : i32
    %354 = arith.extui %353 : i1 to i32
    %c0_i32_134 = arith.constant 0 : i32
    %355 = arith.cmpi ne, %354, %c0_i32_134 : i32
    scf.if %355 {
      %c0_135 = arith.constant 0 : index
      %c0_136 = arith.constant 0 : index
      %356 = vector.load %arg7[%c0_135, %c0_136] : memref<8x128xf32, #tpu.memory_space<vmem>>, vector<8x128xf32>
      tpu.vector_store %arg7[%c0_135, %c0_136], %345 {strides = array<i32>} : memref<8x128xf32, #tpu.memory_space<vmem>>, vector<8x128xf32>,
      %c0_137 = arith.constant 0 : index
      %c0_138 = arith.constant 0 : index
      %357 = vector.load %arg8[%c0_137, %c0_138] : memref<8x128xf32, #tpu.memory_space<vmem>>, vector<8x128xf32>
      tpu.vector_store %arg8[%c0_137, %c0_138], %343 {strides = array<i32>} : memref<8x128xf32, #tpu.memory_space<vmem>>, vector<8x128xf32>,
    } else {
    }
    return
  }
  func.func @transform_0(%arg0: i32, %arg1: i32) -> (i32, i32, i32) {
    %c0_i32 = arith.constant 0 : i32
    %c0_i32_0 = arith.constant 0 : i32
    return %arg1, %arg0, %c0_i32 : i32, i32, i32
  }
  func.func @transform_1(%arg0: i32, %arg1: i32) -> (i32, i32) {
    %c0_i32 = arith.constant 0 : i32
    %c0_i32_0 = arith.constant 0 : i32
    %c0_i32_1 = arith.constant 0 : i32
    return %c0_i32, %c0_i32_0 : i32, i32
  }
  func.func @transform_2(%arg0: i32, %arg1: i32) -> (i32, i32) {
    %c0_i32 = arith.constant 0 : i32
    %c0_i32_0 = arith.constant 0 : i32
    %c0_i32_1 = arith.constant 0 : i32
    return %c0_i32, %c0_i32_0 : i32, i32
  }
  func.func @transform_3(%arg0: i32, %arg1: i32) -> (i32, i32) {
    %c0_i32 = arith.constant 0 : i32
    %c0_i32_0 = arith.constant 0 : i32
    %c0_i32_1 = arith.constant 0 : i32
    return %c0_i32, %c0_i32_0 : i32, i32
  }
  func.func @transform_4(%arg0: i32, %arg1: i32) -> (i32, i32, i32) {
    %c0_i32 = arith.constant 0 : i32
    %c0_i32_0 = arith.constant 0 : i32
    return %arg1, %arg0, %c0_i32 : i32, i32, i32
  }
  func.func @transform_5(%arg0: i32, %arg1: i32) -> (i32, i32) {
    %c0_i32 = arith.constant 0 : i32
    %c0_i32_0 = arith.constant 0 : i32
    return %arg0, %c0_i32 : i32, i32
  }
  func.func @transform_6(%arg0: i32, %arg1: i32) -> (i32, i32) {
    %c0_i32 = arith.constant 0 : i32
    %c0_i32_0 = arith.constant 0 : i32
    return %arg0, %c0_i32 : i32, i32
  }
}

module attributes {stable_mosaic.version = 11 : i64} {
  func.func @_lstm_layer_kernel(%arg0: i32, %arg1: i32, %arg2: memref<8x8x128xbf16, #tpu.memory_space<vmem>>, %arg3: memref<128x512xbf16, #tpu.memory_space<vmem>>, %arg4: memref<128x512xbf16, #tpu.memory_space<vmem>>, %arg5: memref<1x512xf32, #tpu.memory_space<vmem>>, %arg6: memref<8x8x128xf32, #tpu.memory_space<vmem>>, %arg7: memref<8x128xf32, #tpu.memory_space<vmem>>, %arg8: memref<8x128xf32, #tpu.memory_space<vmem>>, %arg9: memref<8x128xf32, #tpu.memory_space<vmem>>, %arg10: memref<8x128xf32, #tpu.memory_space<vmem>>, %arg11: memref<8x8x512xf32, #tpu.memory_space<vmem>>) attributes {dimension_semantics = [#tpu.dimension_semantics<parallel>, #tpu.dimension_semantics<arbitrary>], iteration_bounds = array<i64: 1, 1>, scalar_prefetch = 0 : i64, scratch_operands = 3 : i64, tpu.core_type = #tpu.core_type<tc>, window_params = [{transform_indices = @transform_0, window_bounds = array<i64: 8, 8, 128>}, {pipeline_mode = #tpu.pipeline_mode<synchronous>, transform_indices = @transform_1, window_bounds = array<i64: 128, 512>}, {pipeline_mode = #tpu.pipeline_mode<synchronous>, transform_indices = @transform_2, window_bounds = array<i64: 128, 512>}, {pipeline_mode = #tpu.pipeline_mode<synchronous>, transform_indices = @transform_3, window_bounds = array<i64: 1, 512>}, {transform_indices = @transform_4, window_bounds = array<i64: 8, 8, 128>}, {transform_indices = @transform_5, window_bounds = array<i64: 8, 128>}, {transform_indices = @transform_6, window_bounds = array<i64: 8, 128>}]} {
    %c0_i32 = arith.constant 0 : i32
    %0 = arith.cmpi eq, %arg1, %c0_i32 : i32
    %1 = arith.extui %0 : i1 to i32
    %c0_i32_0 = arith.constant 0 : i32
    %2 = arith.cmpi ne, %1, %c0_i32_0 : i32
    scf.if %2 {
      %cst_135 = arith.constant 0.000000e+00 : f32
      %348 = vector.broadcast %cst_135 : f32 to vector<8x128xf32>
      %c0_136 = arith.constant 0 : index
      %c0_137 = arith.constant 0 : index
      %349 = vector.load %arg9[%c0_136, %c0_137] : memref<8x128xf32, #tpu.memory_space<vmem>>, vector<8x128xf32>
      tpu.vector_store %arg9[%c0_136, %c0_137], %348 {strides = array<i32>} : memref<8x128xf32, #tpu.memory_space<vmem>>, vector<8x128xf32>,
      %cst_138 = arith.constant 0.000000e+00 : f32
      %350 = vector.broadcast %cst_138 : f32 to vector<8x128xf32>
      %c0_139 = arith.constant 0 : index
      %c0_140 = arith.constant 0 : index
      %351 = vector.load %arg10[%c0_139, %c0_140] : memref<8x128xf32, #tpu.memory_space<vmem>>, vector<8x128xf32>
      tpu.vector_store %arg10[%c0_139, %c0_140], %350 {strides = array<i32>} : memref<8x128xf32, #tpu.memory_space<vmem>>, vector<8x128xf32>,
    } else {
    }
    %c0 = arith.constant 0 : index
    %c0_1 = arith.constant 0 : index
    %c0_2 = arith.constant 0 : index
    %3 = vector.load %arg2[%c0, %c0_1, %c0_2] : memref<8x8x128xbf16, #tpu.memory_space<vmem>>, vector<8x8x128xbf16>
    %4 = vector.shape_cast %3 : vector<8x8x128xbf16> to vector<64x128xbf16>
    %c0_3 = arith.constant 0 : index
    %c0_4 = arith.constant 0 : index
    %5 = vector.load %arg3[%c0_3, %c0_4] : memref<128x512xbf16, #tpu.memory_space<vmem>>, vector<128x512xbf16>
    %cst = arith.constant dense<0.000000e+00> : vector<64x512xf32>
    %6 = tpu.matmul %4, %5, %cst {dimension_numbers = #tpu.dot_dimension_numbers<[1], [0], [0], [1], [0, 0, 1, 1], [], []>} : vector<64x128xbf16>, vector<128x512xbf16>, vector<64x512xf32> -> vector<64x512xf32>
    %c0_5 = arith.constant 0 : index
    %c0_6 = arith.constant 0 : index
    %7 = vector.load %arg5[%c0_5, %c0_6] : memref<1x512xf32, #tpu.memory_space<vmem>>, vector<1x512xf32>
    %8 = vector.broadcast %7 : vector<1x512xf32> to vector<64x512xf32>
    %9 = arith.addf %6, %8 : vector<64x512xf32>
    %10 = vector.shape_cast %9 : vector<64x512xf32> to vector<8x8x512xf32>
    %c0_7 = arith.constant 0 : index
    %c0_8 = arith.constant 0 : index
    %c0_9 = arith.constant 0 : index
    %11 = vector.load %arg11[%c0_7, %c0_8, %c0_9] : memref<8x8x512xf32, #tpu.memory_space<vmem>>, vector<8x8x512xf32>
    tpu.vector_store %arg11[%c0_7, %c0_8, %c0_9], %10 {strides = array<i32>} : memref<8x8x512xf32, #tpu.memory_space<vmem>>, vector<8x8x512xf32>,
    %c0_10 = arith.constant 0 : index
    %c0_11 = arith.constant 0 : index
    %12 = vector.load %arg4[%c0_10, %c0_11] : memref<128x512xbf16, #tpu.memory_space<vmem>>, vector<128x512xbf16>
    %c0_12 = arith.constant 0 : index
    %c0_13 = arith.constant 0 : index
    %13 = vector.load %arg9[%c0_12, %c0_13] : memref<8x128xf32, #tpu.memory_space<vmem>>, vector<8x128xf32>
    %c0_14 = arith.constant 0 : index
    %c0_15 = arith.constant 0 : index
    %14 = vector.load %arg10[%c0_14, %c0_15] : memref<8x128xf32, #tpu.memory_space<vmem>>, vector<8x128xf32>
    %c0_i32_16 = arith.constant 0 : i32
    %15 = arith.index_cast %c0_i32_16 : i32 to index
    %c0_17 = arith.constant 0 : index
    %c0_18 = arith.constant 0 : index
    %16 = vector.load %arg11[%15, %c0_17, %c0_18] : memref<8x8x512xf32, #tpu.memory_space<vmem>>, vector<1x8x512xf32>
    %17 = vector.shape_cast %16 : vector<1x8x512xf32> to vector<8x512xf32>
    %18 = arith.truncf %13 : vector<8x128xf32> to vector<8x128xbf16>
    %cst_19 = arith.constant dense<0.000000e+00> : vector<8x512xf32>
    %19 = tpu.matmul %18, %12, %cst_19 {dimension_numbers = #tpu.dot_dimension_numbers<[1], [0], [0], [1], [0, 0, 1, 1], [], []>} : vector<8x128xbf16>, vector<128x512xbf16>, vector<8x512xf32> -> vector<8x512xf32>
    %20 = arith.addf %17, %19 : vector<8x512xf32>
    %21 = vector.extract_strided_slice %20 {offsets = [0, 0], sizes = [8, 128], strides = [1, 1]} : vector<8x512xf32> to vector<8x128xf32>
    %cst_20 = arith.constant 5.000000e-01 : f32
    %22 = vector.broadcast %cst_20 : f32 to vector<8x128xf32>
    %23 = arith.mulf %22, %21 : vector<8x128xf32>
    %24 = math.tanh %23 : vector<8x128xf32>
    %cst_21 = arith.constant 5.000000e-01 : f32
    %25 = vector.broadcast %cst_21 : f32 to vector<8x128xf32>
    %26 = arith.mulf %25, %24 : vector<8x128xf32>
    %cst_22 = arith.constant 5.000000e-01 : f32
    %27 = vector.broadcast %cst_22 : f32 to vector<8x128xf32>
    %28 = arith.addf %26, %27 : vector<8x128xf32>
    %29 = vector.extract_strided_slice %20 {offsets = [0, 128], sizes = [8, 128], strides = [1, 1]} : vector<8x512xf32> to vector<8x128xf32>
    %cst_23 = arith.constant 5.000000e-01 : f32
    %30 = vector.broadcast %cst_23 : f32 to vector<8x128xf32>
    %31 = arith.mulf %30, %29 : vector<8x128xf32>
    %32 = math.tanh %31 : vector<8x128xf32>
    %cst_24 = arith.constant 5.000000e-01 : f32
    %33 = vector.broadcast %cst_24 : f32 to vector<8x128xf32>
    %34 = arith.mulf %33, %32 : vector<8x128xf32>
    %cst_25 = arith.constant 5.000000e-01 : f32
    %35 = vector.broadcast %cst_25 : f32 to vector<8x128xf32>
    %36 = arith.addf %34, %35 : vector<8x128xf32>
    %37 = vector.extract_strided_slice %20 {offsets = [0, 256], sizes = [8, 128], strides = [1, 1]} : vector<8x512xf32> to vector<8x128xf32>
    %38 = math.tanh %37 : vector<8x128xf32>
    %39 = vector.extract_strided_slice %20 {offsets = [0, 384], sizes = [8, 128], strides = [1, 1]} : vector<8x512xf32> to vector<8x128xf32>
    %cst_26 = arith.constant 5.000000e-01 : f32
    %40 = vector.broadcast %cst_26 : f32 to vector<8x128xf32>
    %41 = arith.mulf %40, %39 : vector<8x128xf32>
    %42 = math.tanh %41 : vector<8x128xf32>
    %cst_27 = arith.constant 5.000000e-01 : f32
    %43 = vector.broadcast %cst_27 : f32 to vector<8x128xf32>
    %44 = arith.mulf %43, %42 : vector<8x128xf32>
    %cst_28 = arith.constant 5.000000e-01 : f32
    %45 = vector.broadcast %cst_28 : f32 to vector<8x128xf32>
    %46 = arith.addf %44, %45 : vector<8x128xf32>
    %47 = arith.mulf %36, %14 : vector<8x128xf32>
    %48 = arith.mulf %28, %38 : vector<8x128xf32>
    %49 = arith.addf %47, %48 : vector<8x128xf32>
    %50 = math.tanh %49 : vector<8x128xf32>
    %51 = arith.mulf %46, %50 : vector<8x128xf32>
    %52 = arith.index_cast %c0_i32_16 : i32 to index
    %c0_29 = arith.constant 0 : index
    %c0_30 = arith.constant 0 : index
    %53 = vector.load %arg6[%52, %c0_29, %c0_30] : memref<8x8x128xf32, #tpu.memory_space<vmem>>, vector<1x8x128xf32>
    %54 = vector.shape_cast %53 : vector<1x8x128xf32> to vector<8x128xf32>
    %55 = vector.shape_cast %51 : vector<8x128xf32> to vector<1x8x128xf32>
    tpu.vector_store %arg6[%52, %c0_29, %c0_30], %55 {strides = array<i32>} : memref<8x8x128xf32, #tpu.memory_space<vmem>>, vector<1x8x128xf32>,
    %c1_i32 = arith.constant 1 : i32
    %56 = arith.index_cast %c1_i32 : i32 to index
    %c0_31 = arith.constant 0 : index
    %c0_32 = arith.constant 0 : index
    %57 = vector.load %arg11[%56, %c0_31, %c0_32] : memref<8x8x512xf32, #tpu.memory_space<vmem>>, vector<1x8x512xf32>
    %58 = vector.shape_cast %57 : vector<1x8x512xf32> to vector<8x512xf32>
    %59 = arith.truncf %51 : vector<8x128xf32> to vector<8x128xbf16>
    %cst_33 = arith.constant dense<0.000000e+00> : vector<8x512xf32>
    %60 = tpu.matmul %59, %12, %cst_33 {dimension_numbers = #tpu.dot_dimension_numbers<[1], [0], [0], [1], [0, 0, 1, 1], [], []>} : vector<8x128xbf16>, vector<128x512xbf16>, vector<8x512xf32> -> vector<8x512xf32>
    %61 = arith.addf %58, %60 : vector<8x512xf32>
    %62 = vector.extract_strided_slice %61 {offsets = [0, 0], sizes = [8, 128], strides = [1, 1]} : vector<8x512xf32> to vector<8x128xf32>
    %cst_34 = arith.constant 5.000000e-01 : f32
    %63 = vector.broadcast %cst_34 : f32 to vector<8x128xf32>
    %64 = arith.mulf %63, %62 : vector<8x128xf32>
    %65 = math.tanh %64 : vector<8x128xf32>
    %cst_35 = arith.constant 5.000000e-01 : f32
    %66 = vector.broadcast %cst_35 : f32 to vector<8x128xf32>
    %67 = arith.mulf %66, %65 : vector<8x128xf32>
    %cst_36 = arith.constant 5.000000e-01 : f32
    %68 = vector.broadcast %cst_36 : f32 to vector<8x128xf32>
    %69 = arith.addf %67, %68 : vector<8x128xf32>
    %70 = vector.extract_strided_slice %61 {offsets = [0, 128], sizes = [8, 128], strides = [1, 1]} : vector<8x512xf32> to vector<8x128xf32>
    %cst_37 = arith.constant 5.000000e-01 : f32
    %71 = vector.broadcast %cst_37 : f32 to vector<8x128xf32>
    %72 = arith.mulf %71, %70 : vector<8x128xf32>
    %73 = math.tanh %72 : vector<8x128xf32>
    %cst_38 = arith.constant 5.000000e-01 : f32
    %74 = vector.broadcast %cst_38 : f32 to vector<8x128xf32>
    %75 = arith.mulf %74, %73 : vector<8x128xf32>
    %cst_39 = arith.constant 5.000000e-01 : f32
    %76 = vector.broadcast %cst_39 : f32 to vector<8x128xf32>
    %77 = arith.addf %75, %76 : vector<8x128xf32>
    %78 = vector.extract_strided_slice %61 {offsets = [0, 256], sizes = [8, 128], strides = [1, 1]} : vector<8x512xf32> to vector<8x128xf32>
    %79 = math.tanh %78 : vector<8x128xf32>
    %80 = vector.extract_strided_slice %61 {offsets = [0, 384], sizes = [8, 128], strides = [1, 1]} : vector<8x512xf32> to vector<8x128xf32>
    %cst_40 = arith.constant 5.000000e-01 : f32
    %81 = vector.broadcast %cst_40 : f32 to vector<8x128xf32>
    %82 = arith.mulf %81, %80 : vector<8x128xf32>
    %83 = math.tanh %82 : vector<8x128xf32>
    %cst_41 = arith.constant 5.000000e-01 : f32
    %84 = vector.broadcast %cst_41 : f32 to vector<8x128xf32>
    %85 = arith.mulf %84, %83 : vector<8x128xf32>
    %cst_42 = arith.constant 5.000000e-01 : f32
    %86 = vector.broadcast %cst_42 : f32 to vector<8x128xf32>
    %87 = arith.addf %85, %86 : vector<8x128xf32>
    %88 = arith.mulf %77, %49 : vector<8x128xf32>
    %89 = arith.mulf %69, %79 : vector<8x128xf32>
    %90 = arith.addf %88, %89 : vector<8x128xf32>
    %91 = math.tanh %90 : vector<8x128xf32>
    %92 = arith.mulf %87, %91 : vector<8x128xf32>
    %93 = arith.index_cast %c1_i32 : i32 to index
    %c0_43 = arith.constant 0 : index
    %c0_44 = arith.constant 0 : index
    %94 = vector.load %arg6[%93, %c0_43, %c0_44] : memref<8x8x128xf32, #tpu.memory_space<vmem>>, vector<1x8x128xf32>
    %95 = vector.shape_cast %94 : vector<1x8x128xf32> to vector<8x128xf32>
    %96 = vector.shape_cast %92 : vector<8x128xf32> to vector<1x8x128xf32>
    tpu.vector_store %arg6[%93, %c0_43, %c0_44], %96 {strides = array<i32>} : memref<8x8x128xf32, #tpu.memory_space<vmem>>, vector<1x8x128xf32>,
    %c2_i32 = arith.constant 2 : i32
    %97 = arith.index_cast %c2_i32 : i32 to index
    %c0_45 = arith.constant 0 : index
    %c0_46 = arith.constant 0 : index
    %98 = vector.load %arg11[%97, %c0_45, %c0_46] : memref<8x8x512xf32, #tpu.memory_space<vmem>>, vector<1x8x512xf32>
    %99 = vector.shape_cast %98 : vector<1x8x512xf32> to vector<8x512xf32>
    %100 = arith.truncf %92 : vector<8x128xf32> to vector<8x128xbf16>
    %cst_47 = arith.constant dense<0.000000e+00> : vector<8x512xf32>
    %101 = tpu.matmul %100, %12, %cst_47 {dimension_numbers = #tpu.dot_dimension_numbers<[1], [0], [0], [1], [0, 0, 1, 1], [], []>} : vector<8x128xbf16>, vector<128x512xbf16>, vector<8x512xf32> -> vector<8x512xf32>
    %102 = arith.addf %99, %101 : vector<8x512xf32>
    %103 = vector.extract_strided_slice %102 {offsets = [0, 0], sizes = [8, 128], strides = [1, 1]} : vector<8x512xf32> to vector<8x128xf32>
    %cst_48 = arith.constant 5.000000e-01 : f32
    %104 = vector.broadcast %cst_48 : f32 to vector<8x128xf32>
    %105 = arith.mulf %104, %103 : vector<8x128xf32>
    %106 = math.tanh %105 : vector<8x128xf32>
    %cst_49 = arith.constant 5.000000e-01 : f32
    %107 = vector.broadcast %cst_49 : f32 to vector<8x128xf32>
    %108 = arith.mulf %107, %106 : vector<8x128xf32>
    %cst_50 = arith.constant 5.000000e-01 : f32
    %109 = vector.broadcast %cst_50 : f32 to vector<8x128xf32>
    %110 = arith.addf %108, %109 : vector<8x128xf32>
    %111 = vector.extract_strided_slice %102 {offsets = [0, 128], sizes = [8, 128], strides = [1, 1]} : vector<8x512xf32> to vector<8x128xf32>
    %cst_51 = arith.constant 5.000000e-01 : f32
    %112 = vector.broadcast %cst_51 : f32 to vector<8x128xf32>
    %113 = arith.mulf %112, %111 : vector<8x128xf32>
    %114 = math.tanh %113 : vector<8x128xf32>
    %cst_52 = arith.constant 5.000000e-01 : f32
    %115 = vector.broadcast %cst_52 : f32 to vector<8x128xf32>
    %116 = arith.mulf %115, %114 : vector<8x128xf32>
    %cst_53 = arith.constant 5.000000e-01 : f32
    %117 = vector.broadcast %cst_53 : f32 to vector<8x128xf32>
    %118 = arith.addf %116, %117 : vector<8x128xf32>
    %119 = vector.extract_strided_slice %102 {offsets = [0, 256], sizes = [8, 128], strides = [1, 1]} : vector<8x512xf32> to vector<8x128xf32>
    %120 = math.tanh %119 : vector<8x128xf32>
    %121 = vector.extract_strided_slice %102 {offsets = [0, 384], sizes = [8, 128], strides = [1, 1]} : vector<8x512xf32> to vector<8x128xf32>
    %cst_54 = arith.constant 5.000000e-01 : f32
    %122 = vector.broadcast %cst_54 : f32 to vector<8x128xf32>
    %123 = arith.mulf %122, %121 : vector<8x128xf32>
    %124 = math.tanh %123 : vector<8x128xf32>
    %cst_55 = arith.constant 5.000000e-01 : f32
    %125 = vector.broadcast %cst_55 : f32 to vector<8x128xf32>
    %126 = arith.mulf %125, %124 : vector<8x128xf32>
    %cst_56 = arith.constant 5.000000e-01 : f32
    %127 = vector.broadcast %cst_56 : f32 to vector<8x128xf32>
    %128 = arith.addf %126, %127 : vector<8x128xf32>
    %129 = arith.mulf %118, %90 : vector<8x128xf32>
    %130 = arith.mulf %110, %120 : vector<8x128xf32>
    %131 = arith.addf %129, %130 : vector<8x128xf32>
    %132 = math.tanh %131 : vector<8x128xf32>
    %133 = arith.mulf %128, %132 : vector<8x128xf32>
    %134 = arith.index_cast %c2_i32 : i32 to index
    %c0_57 = arith.constant 0 : index
    %c0_58 = arith.constant 0 : index
    %135 = vector.load %arg6[%134, %c0_57, %c0_58] : memref<8x8x128xf32, #tpu.memory_space<vmem>>, vector<1x8x128xf32>
    %136 = vector.shape_cast %135 : vector<1x8x128xf32> to vector<8x128xf32>
    %137 = vector.shape_cast %133 : vector<8x128xf32> to vector<1x8x128xf32>
    tpu.vector_store %arg6[%134, %c0_57, %c0_58], %137 {strides = array<i32>} : memref<8x8x128xf32, #tpu.memory_space<vmem>>, vector<1x8x128xf32>,
    %c3_i32 = arith.constant 3 : i32
    %138 = arith.index_cast %c3_i32 : i32 to index
    %c0_59 = arith.constant 0 : index
    %c0_60 = arith.constant 0 : index
    %139 = vector.load %arg11[%138, %c0_59, %c0_60] : memref<8x8x512xf32, #tpu.memory_space<vmem>>, vector<1x8x512xf32>
    %140 = vector.shape_cast %139 : vector<1x8x512xf32> to vector<8x512xf32>
    %141 = arith.truncf %133 : vector<8x128xf32> to vector<8x128xbf16>
    %cst_61 = arith.constant dense<0.000000e+00> : vector<8x512xf32>
    %142 = tpu.matmul %141, %12, %cst_61 {dimension_numbers = #tpu.dot_dimension_numbers<[1], [0], [0], [1], [0, 0, 1, 1], [], []>} : vector<8x128xbf16>, vector<128x512xbf16>, vector<8x512xf32> -> vector<8x512xf32>
    %143 = arith.addf %140, %142 : vector<8x512xf32>
    %144 = vector.extract_strided_slice %143 {offsets = [0, 0], sizes = [8, 128], strides = [1, 1]} : vector<8x512xf32> to vector<8x128xf32>
    %cst_62 = arith.constant 5.000000e-01 : f32
    %145 = vector.broadcast %cst_62 : f32 to vector<8x128xf32>
    %146 = arith.mulf %145, %144 : vector<8x128xf32>
    %147 = math.tanh %146 : vector<8x128xf32>
    %cst_63 = arith.constant 5.000000e-01 : f32
    %148 = vector.broadcast %cst_63 : f32 to vector<8x128xf32>
    %149 = arith.mulf %148, %147 : vector<8x128xf32>
    %cst_64 = arith.constant 5.000000e-01 : f32
    %150 = vector.broadcast %cst_64 : f32 to vector<8x128xf32>
    %151 = arith.addf %149, %150 : vector<8x128xf32>
    %152 = vector.extract_strided_slice %143 {offsets = [0, 128], sizes = [8, 128], strides = [1, 1]} : vector<8x512xf32> to vector<8x128xf32>
    %cst_65 = arith.constant 5.000000e-01 : f32
    %153 = vector.broadcast %cst_65 : f32 to vector<8x128xf32>
    %154 = arith.mulf %153, %152 : vector<8x128xf32>
    %155 = math.tanh %154 : vector<8x128xf32>
    %cst_66 = arith.constant 5.000000e-01 : f32
    %156 = vector.broadcast %cst_66 : f32 to vector<8x128xf32>
    %157 = arith.mulf %156, %155 : vector<8x128xf32>
    %cst_67 = arith.constant 5.000000e-01 : f32
    %158 = vector.broadcast %cst_67 : f32 to vector<8x128xf32>
    %159 = arith.addf %157, %158 : vector<8x128xf32>
    %160 = vector.extract_strided_slice %143 {offsets = [0, 256], sizes = [8, 128], strides = [1, 1]} : vector<8x512xf32> to vector<8x128xf32>
    %161 = math.tanh %160 : vector<8x128xf32>
    %162 = vector.extract_strided_slice %143 {offsets = [0, 384], sizes = [8, 128], strides = [1, 1]} : vector<8x512xf32> to vector<8x128xf32>
    %cst_68 = arith.constant 5.000000e-01 : f32
    %163 = vector.broadcast %cst_68 : f32 to vector<8x128xf32>
    %164 = arith.mulf %163, %162 : vector<8x128xf32>
    %165 = math.tanh %164 : vector<8x128xf32>
    %cst_69 = arith.constant 5.000000e-01 : f32
    %166 = vector.broadcast %cst_69 : f32 to vector<8x128xf32>
    %167 = arith.mulf %166, %165 : vector<8x128xf32>
    %cst_70 = arith.constant 5.000000e-01 : f32
    %168 = vector.broadcast %cst_70 : f32 to vector<8x128xf32>
    %169 = arith.addf %167, %168 : vector<8x128xf32>
    %170 = arith.mulf %159, %131 : vector<8x128xf32>
    %171 = arith.mulf %151, %161 : vector<8x128xf32>
    %172 = arith.addf %170, %171 : vector<8x128xf32>
    %173 = math.tanh %172 : vector<8x128xf32>
    %174 = arith.mulf %169, %173 : vector<8x128xf32>
    %175 = arith.index_cast %c3_i32 : i32 to index
    %c0_71 = arith.constant 0 : index
    %c0_72 = arith.constant 0 : index
    %176 = vector.load %arg6[%175, %c0_71, %c0_72] : memref<8x8x128xf32, #tpu.memory_space<vmem>>, vector<1x8x128xf32>
    %177 = vector.shape_cast %176 : vector<1x8x128xf32> to vector<8x128xf32>
    %178 = vector.shape_cast %174 : vector<8x128xf32> to vector<1x8x128xf32>
    tpu.vector_store %arg6[%175, %c0_71, %c0_72], %178 {strides = array<i32>} : memref<8x8x128xf32, #tpu.memory_space<vmem>>, vector<1x8x128xf32>,
    %c4_i32 = arith.constant 4 : i32
    %179 = arith.index_cast %c4_i32 : i32 to index
    %c0_73 = arith.constant 0 : index
    %c0_74 = arith.constant 0 : index
    %180 = vector.load %arg11[%179, %c0_73, %c0_74] : memref<8x8x512xf32, #tpu.memory_space<vmem>>, vector<1x8x512xf32>
    %181 = vector.shape_cast %180 : vector<1x8x512xf32> to vector<8x512xf32>
    %182 = arith.truncf %174 : vector<8x128xf32> to vector<8x128xbf16>
    %cst_75 = arith.constant dense<0.000000e+00> : vector<8x512xf32>
    %183 = tpu.matmul %182, %12, %cst_75 {dimension_numbers = #tpu.dot_dimension_numbers<[1], [0], [0], [1], [0, 0, 1, 1], [], []>} : vector<8x128xbf16>, vector<128x512xbf16>, vector<8x512xf32> -> vector<8x512xf32>
    %184 = arith.addf %181, %183 : vector<8x512xf32>
    %185 = vector.extract_strided_slice %184 {offsets = [0, 0], sizes = [8, 128], strides = [1, 1]} : vector<8x512xf32> to vector<8x128xf32>
    %cst_76 = arith.constant 5.000000e-01 : f32
    %186 = vector.broadcast %cst_76 : f32 to vector<8x128xf32>
    %187 = arith.mulf %186, %185 : vector<8x128xf32>
    %188 = math.tanh %187 : vector<8x128xf32>
    %cst_77 = arith.constant 5.000000e-01 : f32
    %189 = vector.broadcast %cst_77 : f32 to vector<8x128xf32>
    %190 = arith.mulf %189, %188 : vector<8x128xf32>
    %cst_78 = arith.constant 5.000000e-01 : f32
    %191 = vector.broadcast %cst_78 : f32 to vector<8x128xf32>
    %192 = arith.addf %190, %191 : vector<8x128xf32>
    %193 = vector.extract_strided_slice %184 {offsets = [0, 128], sizes = [8, 128], strides = [1, 1]} : vector<8x512xf32> to vector<8x128xf32>
    %cst_79 = arith.constant 5.000000e-01 : f32
    %194 = vector.broadcast %cst_79 : f32 to vector<8x128xf32>
    %195 = arith.mulf %194, %193 : vector<8x128xf32>
    %196 = math.tanh %195 : vector<8x128xf32>
    %cst_80 = arith.constant 5.000000e-01 : f32
    %197 = vector.broadcast %cst_80 : f32 to vector<8x128xf32>
    %198 = arith.mulf %197, %196 : vector<8x128xf32>
    %cst_81 = arith.constant 5.000000e-01 : f32
    %199 = vector.broadcast %cst_81 : f32 to vector<8x128xf32>
    %200 = arith.addf %198, %199 : vector<8x128xf32>
    %201 = vector.extract_strided_slice %184 {offsets = [0, 256], sizes = [8, 128], strides = [1, 1]} : vector<8x512xf32> to vector<8x128xf32>
    %202 = math.tanh %201 : vector<8x128xf32>
    %203 = vector.extract_strided_slice %184 {offsets = [0, 384], sizes = [8, 128], strides = [1, 1]} : vector<8x512xf32> to vector<8x128xf32>
    %cst_82 = arith.constant 5.000000e-01 : f32
    %204 = vector.broadcast %cst_82 : f32 to vector<8x128xf32>
    %205 = arith.mulf %204, %203 : vector<8x128xf32>
    %206 = math.tanh %205 : vector<8x128xf32>
    %cst_83 = arith.constant 5.000000e-01 : f32
    %207 = vector.broadcast %cst_83 : f32 to vector<8x128xf32>
    %208 = arith.mulf %207, %206 : vector<8x128xf32>
    %cst_84 = arith.constant 5.000000e-01 : f32
    %209 = vector.broadcast %cst_84 : f32 to vector<8x128xf32>
    %210 = arith.addf %208, %209 : vector<8x128xf32>
    %211 = arith.mulf %200, %172 : vector<8x128xf32>
    %212 = arith.mulf %192, %202 : vector<8x128xf32>
    %213 = arith.addf %211, %212 : vector<8x128xf32>
    %214 = math.tanh %213 : vector<8x128xf32>
    %215 = arith.mulf %210, %214 : vector<8x128xf32>
    %216 = arith.index_cast %c4_i32 : i32 to index
    %c0_85 = arith.constant 0 : index
    %c0_86 = arith.constant 0 : index
    %217 = vector.load %arg6[%216, %c0_85, %c0_86] : memref<8x8x128xf32, #tpu.memory_space<vmem>>, vector<1x8x128xf32>
    %218 = vector.shape_cast %217 : vector<1x8x128xf32> to vector<8x128xf32>
    %219 = vector.shape_cast %215 : vector<8x128xf32> to vector<1x8x128xf32>
    tpu.vector_store %arg6[%216, %c0_85, %c0_86], %219 {strides = array<i32>} : memref<8x8x128xf32, #tpu.memory_space<vmem>>, vector<1x8x128xf32>,
    %c5_i32 = arith.constant 5 : i32
    %220 = arith.index_cast %c5_i32 : i32 to index
    %c0_87 = arith.constant 0 : index
    %c0_88 = arith.constant 0 : index
    %221 = vector.load %arg11[%220, %c0_87, %c0_88] : memref<8x8x512xf32, #tpu.memory_space<vmem>>, vector<1x8x512xf32>
    %222 = vector.shape_cast %221 : vector<1x8x512xf32> to vector<8x512xf32>
    %223 = arith.truncf %215 : vector<8x128xf32> to vector<8x128xbf16>
    %cst_89 = arith.constant dense<0.000000e+00> : vector<8x512xf32>
    %224 = tpu.matmul %223, %12, %cst_89 {dimension_numbers = #tpu.dot_dimension_numbers<[1], [0], [0], [1], [0, 0, 1, 1], [], []>} : vector<8x128xbf16>, vector<128x512xbf16>, vector<8x512xf32> -> vector<8x512xf32>
    %225 = arith.addf %222, %224 : vector<8x512xf32>
    %226 = vector.extract_strided_slice %225 {offsets = [0, 0], sizes = [8, 128], strides = [1, 1]} : vector<8x512xf32> to vector<8x128xf32>
    %cst_90 = arith.constant 5.000000e-01 : f32
    %227 = vector.broadcast %cst_90 : f32 to vector<8x128xf32>
    %228 = arith.mulf %227, %226 : vector<8x128xf32>
    %229 = math.tanh %228 : vector<8x128xf32>
    %cst_91 = arith.constant 5.000000e-01 : f32
    %230 = vector.broadcast %cst_91 : f32 to vector<8x128xf32>
    %231 = arith.mulf %230, %229 : vector<8x128xf32>
    %cst_92 = arith.constant 5.000000e-01 : f32
    %232 = vector.broadcast %cst_92 : f32 to vector<8x128xf32>
    %233 = arith.addf %231, %232 : vector<8x128xf32>
    %234 = vector.extract_strided_slice %225 {offsets = [0, 128], sizes = [8, 128], strides = [1, 1]} : vector<8x512xf32> to vector<8x128xf32>
    %cst_93 = arith.constant 5.000000e-01 : f32
    %235 = vector.broadcast %cst_93 : f32 to vector<8x128xf32>
    %236 = arith.mulf %235, %234 : vector<8x128xf32>
    %237 = math.tanh %236 : vector<8x128xf32>
    %cst_94 = arith.constant 5.000000e-01 : f32
    %238 = vector.broadcast %cst_94 : f32 to vector<8x128xf32>
    %239 = arith.mulf %238, %237 : vector<8x128xf32>
    %cst_95 = arith.constant 5.000000e-01 : f32
    %240 = vector.broadcast %cst_95 : f32 to vector<8x128xf32>
    %241 = arith.addf %239, %240 : vector<8x128xf32>
    %242 = vector.extract_strided_slice %225 {offsets = [0, 256], sizes = [8, 128], strides = [1, 1]} : vector<8x512xf32> to vector<8x128xf32>
    %243 = math.tanh %242 : vector<8x128xf32>
    %244 = vector.extract_strided_slice %225 {offsets = [0, 384], sizes = [8, 128], strides = [1, 1]} : vector<8x512xf32> to vector<8x128xf32>
    %cst_96 = arith.constant 5.000000e-01 : f32
    %245 = vector.broadcast %cst_96 : f32 to vector<8x128xf32>
    %246 = arith.mulf %245, %244 : vector<8x128xf32>
    %247 = math.tanh %246 : vector<8x128xf32>
    %cst_97 = arith.constant 5.000000e-01 : f32
    %248 = vector.broadcast %cst_97 : f32 to vector<8x128xf32>
    %249 = arith.mulf %248, %247 : vector<8x128xf32>
    %cst_98 = arith.constant 5.000000e-01 : f32
    %250 = vector.broadcast %cst_98 : f32 to vector<8x128xf32>
    %251 = arith.addf %249, %250 : vector<8x128xf32>
    %252 = arith.mulf %241, %213 : vector<8x128xf32>
    %253 = arith.mulf %233, %243 : vector<8x128xf32>
    %254 = arith.addf %252, %253 : vector<8x128xf32>
    %255 = math.tanh %254 : vector<8x128xf32>
    %256 = arith.mulf %251, %255 : vector<8x128xf32>
    %257 = arith.index_cast %c5_i32 : i32 to index
    %c0_99 = arith.constant 0 : index
    %c0_100 = arith.constant 0 : index
    %258 = vector.load %arg6[%257, %c0_99, %c0_100] : memref<8x8x128xf32, #tpu.memory_space<vmem>>, vector<1x8x128xf32>
    %259 = vector.shape_cast %258 : vector<1x8x128xf32> to vector<8x128xf32>
    %260 = vector.shape_cast %256 : vector<8x128xf32> to vector<1x8x128xf32>
    tpu.vector_store %arg6[%257, %c0_99, %c0_100], %260 {strides = array<i32>} : memref<8x8x128xf32, #tpu.memory_space<vmem>>, vector<1x8x128xf32>,
    %c6_i32 = arith.constant 6 : i32
    %261 = arith.index_cast %c6_i32 : i32 to index
    %c0_101 = arith.constant 0 : index
    %c0_102 = arith.constant 0 : index
    %262 = vector.load %arg11[%261, %c0_101, %c0_102] : memref<8x8x512xf32, #tpu.memory_space<vmem>>, vector<1x8x512xf32>
    %263 = vector.shape_cast %262 : vector<1x8x512xf32> to vector<8x512xf32>
    %264 = arith.truncf %256 : vector<8x128xf32> to vector<8x128xbf16>
    %cst_103 = arith.constant dense<0.000000e+00> : vector<8x512xf32>
    %265 = tpu.matmul %264, %12, %cst_103 {dimension_numbers = #tpu.dot_dimension_numbers<[1], [0], [0], [1], [0, 0, 1, 1], [], []>} : vector<8x128xbf16>, vector<128x512xbf16>, vector<8x512xf32> -> vector<8x512xf32>
    %266 = arith.addf %263, %265 : vector<8x512xf32>
    %267 = vector.extract_strided_slice %266 {offsets = [0, 0], sizes = [8, 128], strides = [1, 1]} : vector<8x512xf32> to vector<8x128xf32>
    %cst_104 = arith.constant 5.000000e-01 : f32
    %268 = vector.broadcast %cst_104 : f32 to vector<8x128xf32>
    %269 = arith.mulf %268, %267 : vector<8x128xf32>
    %270 = math.tanh %269 : vector<8x128xf32>
    %cst_105 = arith.constant 5.000000e-01 : f32
    %271 = vector.broadcast %cst_105 : f32 to vector<8x128xf32>
    %272 = arith.mulf %271, %270 : vector<8x128xf32>
    %cst_106 = arith.constant 5.000000e-01 : f32
    %273 = vector.broadcast %cst_106 : f32 to vector<8x128xf32>
    %274 = arith.addf %272, %273 : vector<8x128xf32>
    %275 = vector.extract_strided_slice %266 {offsets = [0, 128], sizes = [8, 128], strides = [1, 1]} : vector<8x512xf32> to vector<8x128xf32>
    %cst_107 = arith.constant 5.000000e-01 : f32
    %276 = vector.broadcast %cst_107 : f32 to vector<8x128xf32>
    %277 = arith.mulf %276, %275 : vector<8x128xf32>
    %278 = math.tanh %277 : vector<8x128xf32>
    %cst_108 = arith.constant 5.000000e-01 : f32
    %279 = vector.broadcast %cst_108 : f32 to vector<8x128xf32>
    %280 = arith.mulf %279, %278 : vector<8x128xf32>
    %cst_109 = arith.constant 5.000000e-01 : f32
    %281 = vector.broadcast %cst_109 : f32 to vector<8x128xf32>
    %282 = arith.addf %280, %281 : vector<8x128xf32>
    %283 = vector.extract_strided_slice %266 {offsets = [0, 256], sizes = [8, 128], strides = [1, 1]} : vector<8x512xf32> to vector<8x128xf32>
    %284 = math.tanh %283 : vector<8x128xf32>
    %285 = vector.extract_strided_slice %266 {offsets = [0, 384], sizes = [8, 128], strides = [1, 1]} : vector<8x512xf32> to vector<8x128xf32>
    %cst_110 = arith.constant 5.000000e-01 : f32
    %286 = vector.broadcast %cst_110 : f32 to vector<8x128xf32>
    %287 = arith.mulf %286, %285 : vector<8x128xf32>
    %288 = math.tanh %287 : vector<8x128xf32>
    %cst_111 = arith.constant 5.000000e-01 : f32
    %289 = vector.broadcast %cst_111 : f32 to vector<8x128xf32>
    %290 = arith.mulf %289, %288 : vector<8x128xf32>
    %cst_112 = arith.constant 5.000000e-01 : f32
    %291 = vector.broadcast %cst_112 : f32 to vector<8x128xf32>
    %292 = arith.addf %290, %291 : vector<8x128xf32>
    %293 = arith.mulf %282, %254 : vector<8x128xf32>
    %294 = arith.mulf %274, %284 : vector<8x128xf32>
    %295 = arith.addf %293, %294 : vector<8x128xf32>
    %296 = math.tanh %295 : vector<8x128xf32>
    %297 = arith.mulf %292, %296 : vector<8x128xf32>
    %298 = arith.index_cast %c6_i32 : i32 to index
    %c0_113 = arith.constant 0 : index
    %c0_114 = arith.constant 0 : index
    %299 = vector.load %arg6[%298, %c0_113, %c0_114] : memref<8x8x128xf32, #tpu.memory_space<vmem>>, vector<1x8x128xf32>
    %300 = vector.shape_cast %299 : vector<1x8x128xf32> to vector<8x128xf32>
    %301 = vector.shape_cast %297 : vector<8x128xf32> to vector<1x8x128xf32>
    tpu.vector_store %arg6[%298, %c0_113, %c0_114], %301 {strides = array<i32>} : memref<8x8x128xf32, #tpu.memory_space<vmem>>, vector<1x8x128xf32>,
    %c7_i32 = arith.constant 7 : i32
    %302 = arith.index_cast %c7_i32 : i32 to index
    %c0_115 = arith.constant 0 : index
    %c0_116 = arith.constant 0 : index
    %303 = vector.load %arg11[%302, %c0_115, %c0_116] : memref<8x8x512xf32, #tpu.memory_space<vmem>>, vector<1x8x512xf32>
    %304 = vector.shape_cast %303 : vector<1x8x512xf32> to vector<8x512xf32>
    %305 = arith.truncf %297 : vector<8x128xf32> to vector<8x128xbf16>
    %cst_117 = arith.constant dense<0.000000e+00> : vector<8x512xf32>
    %306 = tpu.matmul %305, %12, %cst_117 {dimension_numbers = #tpu.dot_dimension_numbers<[1], [0], [0], [1], [0, 0, 1, 1], [], []>} : vector<8x128xbf16>, vector<128x512xbf16>, vector<8x512xf32> -> vector<8x512xf32>
    %307 = arith.addf %304, %306 : vector<8x512xf32>
    %308 = vector.extract_strided_slice %307 {offsets = [0, 0], sizes = [8, 128], strides = [1, 1]} : vector<8x512xf32> to vector<8x128xf32>
    %cst_118 = arith.constant 5.000000e-01 : f32
    %309 = vector.broadcast %cst_118 : f32 to vector<8x128xf32>
    %310 = arith.mulf %309, %308 : vector<8x128xf32>
    %311 = math.tanh %310 : vector<8x128xf32>
    %cst_119 = arith.constant 5.000000e-01 : f32
    %312 = vector.broadcast %cst_119 : f32 to vector<8x128xf32>
    %313 = arith.mulf %312, %311 : vector<8x128xf32>
    %cst_120 = arith.constant 5.000000e-01 : f32
    %314 = vector.broadcast %cst_120 : f32 to vector<8x128xf32>
    %315 = arith.addf %313, %314 : vector<8x128xf32>
    %316 = vector.extract_strided_slice %307 {offsets = [0, 128], sizes = [8, 128], strides = [1, 1]} : vector<8x512xf32> to vector<8x128xf32>
    %cst_121 = arith.constant 5.000000e-01 : f32
    %317 = vector.broadcast %cst_121 : f32 to vector<8x128xf32>
    %318 = arith.mulf %317, %316 : vector<8x128xf32>
    %319 = math.tanh %318 : vector<8x128xf32>
    %cst_122 = arith.constant 5.000000e-01 : f32
    %320 = vector.broadcast %cst_122 : f32 to vector<8x128xf32>
    %321 = arith.mulf %320, %319 : vector<8x128xf32>
    %cst_123 = arith.constant 5.000000e-01 : f32
    %322 = vector.broadcast %cst_123 : f32 to vector<8x128xf32>
    %323 = arith.addf %321, %322 : vector<8x128xf32>
    %324 = vector.extract_strided_slice %307 {offsets = [0, 256], sizes = [8, 128], strides = [1, 1]} : vector<8x512xf32> to vector<8x128xf32>
    %325 = math.tanh %324 : vector<8x128xf32>
    %326 = vector.extract_strided_slice %307 {offsets = [0, 384], sizes = [8, 128], strides = [1, 1]} : vector<8x512xf32> to vector<8x128xf32>
    %cst_124 = arith.constant 5.000000e-01 : f32
    %327 = vector.broadcast %cst_124 : f32 to vector<8x128xf32>
    %328 = arith.mulf %327, %326 : vector<8x128xf32>
    %329 = math.tanh %328 : vector<8x128xf32>
    %cst_125 = arith.constant 5.000000e-01 : f32
    %330 = vector.broadcast %cst_125 : f32 to vector<8x128xf32>
    %331 = arith.mulf %330, %329 : vector<8x128xf32>
    %cst_126 = arith.constant 5.000000e-01 : f32
    %332 = vector.broadcast %cst_126 : f32 to vector<8x128xf32>
    %333 = arith.addf %331, %332 : vector<8x128xf32>
    %334 = arith.mulf %323, %295 : vector<8x128xf32>
    %335 = arith.mulf %315, %325 : vector<8x128xf32>
    %336 = arith.addf %334, %335 : vector<8x128xf32>
    %337 = math.tanh %336 : vector<8x128xf32>
    %338 = arith.mulf %333, %337 : vector<8x128xf32>
    %339 = arith.index_cast %c7_i32 : i32 to index
    %c0_127 = arith.constant 0 : index
    %c0_128 = arith.constant 0 : index
    %340 = vector.load %arg6[%339, %c0_127, %c0_128] : memref<8x8x128xf32, #tpu.memory_space<vmem>>, vector<1x8x128xf32>
    %341 = vector.shape_cast %340 : vector<1x8x128xf32> to vector<8x128xf32>
    %342 = vector.shape_cast %338 : vector<8x128xf32> to vector<1x8x128xf32>
    tpu.vector_store %arg6[%339, %c0_127, %c0_128], %342 {strides = array<i32>} : memref<8x8x128xf32, #tpu.memory_space<vmem>>, vector<1x8x128xf32>,
    %c8_i32 = arith.constant 8 : i32
    %c0_129 = arith.constant 0 : index
    %c0_130 = arith.constant 0 : index
    %343 = vector.load %arg9[%c0_129, %c0_130] : memref<8x128xf32, #tpu.memory_space<vmem>>, vector<8x128xf32>
    tpu.vector_store %arg9[%c0_129, %c0_130], %338 {strides = array<i32>} : memref<8x128xf32, #tpu.memory_space<vmem>>, vector<8x128xf32>,
    %c0_131 = arith.constant 0 : index
    %c0_132 = arith.constant 0 : index
    %344 = vector.load %arg10[%c0_131, %c0_132] : memref<8x128xf32, #tpu.memory_space<vmem>>, vector<8x128xf32>
    tpu.vector_store %arg10[%c0_131, %c0_132], %336 {strides = array<i32>} : memref<8x128xf32, #tpu.memory_space<vmem>>, vector<8x128xf32>,
    %c0_i32_133 = arith.constant 0 : i32
    %345 = arith.cmpi eq, %arg1, %c0_i32_133 : i32
    %346 = arith.extui %345 : i1 to i32
    %c0_i32_134 = arith.constant 0 : i32
    %347 = arith.cmpi ne, %346, %c0_i32_134 : i32
    scf.if %347 {
      %c0_135 = arith.constant 0 : index
      %c0_136 = arith.constant 0 : index
      %348 = vector.load %arg7[%c0_135, %c0_136] : memref<8x128xf32, #tpu.memory_space<vmem>>, vector<8x128xf32>
      tpu.vector_store %arg7[%c0_135, %c0_136], %338 {strides = array<i32>} : memref<8x128xf32, #tpu.memory_space<vmem>>, vector<8x128xf32>,
      %c0_137 = arith.constant 0 : index
      %c0_138 = arith.constant 0 : index
      %349 = vector.load %arg8[%c0_137, %c0_138] : memref<8x128xf32, #tpu.memory_space<vmem>>, vector<8x128xf32>
      tpu.vector_store %arg8[%c0_137, %c0_138], %336 {strides = array<i32>} : memref<8x128xf32, #tpu.memory_space<vmem>>, vector<8x128xf32>,
    } else {
    }
    return
  }
  func.func @transform_0(%arg0: i32, %arg1: i32) -> (i32, i32, i32) {
    %c0_i32 = arith.constant 0 : i32
    %c0_i32_0 = arith.constant 0 : i32
    return %arg1, %arg0, %c0_i32 : i32, i32, i32
  }
  func.func @transform_1(%arg0: i32, %arg1: i32) -> (i32, i32) {
    %c0_i32 = arith.constant 0 : i32
    %c0_i32_0 = arith.constant 0 : i32
    %c0_i32_1 = arith.constant 0 : i32
    return %c0_i32, %c0_i32_0 : i32, i32
  }
  func.func @transform_2(%arg0: i32, %arg1: i32) -> (i32, i32) {
    %c0_i32 = arith.constant 0 : i32
    %c0_i32_0 = arith.constant 0 : i32
    %c0_i32_1 = arith.constant 0 : i32
    return %c0_i32, %c0_i32_0 : i32, i32
  }
  func.func @transform_3(%arg0: i32, %arg1: i32) -> (i32, i32) {
    %c0_i32 = arith.constant 0 : i32
    %c0_i32_0 = arith.constant 0 : i32
    %c0_i32_1 = arith.constant 0 : i32
    return %c0_i32, %c0_i32_0 : i32, i32
  }
  func.func @transform_4(%arg0: i32, %arg1: i32) -> (i32, i32, i32) {
    %c0_i32 = arith.constant 0 : i32
    %c0_i32_0 = arith.constant 0 : i32
    return %arg1, %arg0, %c0_i32 : i32, i32, i32
  }
  func.func @transform_5(%arg0: i32, %arg1: i32) -> (i32, i32) {
    %c0_i32 = arith.constant 0 : i32
    %c0_i32_0 = arith.constant 0 : i32
    return %arg0, %c0_i32 : i32, i32
  }
  func.func @transform_6(%arg0: i32, %arg1: i32) -> (i32, i32) {
    %c0_i32 = arith.constant 0 : i32
    %c0_i32_0 = arith.constant 0 : i32
    return %arg0, %c0_i32 : i32, i32
  }
}

</mosaic_0001>

<llo_original>
// kernel: encoder_forward.2
$region0: #{encoder_forward.2}
  #allocation0 [shape = 'u32[]', space=smem, size = 0x4, offset = 0x4, fixed_abs, tag = 'smem constant byte address 0x4 - core index']
  #allocation1 [shape = 'u32[144,128]{1,0:T(1,128)}', space=vmem, size = 0x12000, scoped, tag = 'internal scratch']
  #allocation2 [shape = 'f32[8,128]{1,0:T(8,128)}', space=vmem, size = 0x1000, scoped, tag = 'scratch operand']
  #allocation3 [shape = 'f32[8,128]{1,0:T(8,128)}', space=vmem, size = 0x1000, scoped, tag = 'scratch operand']
  #allocation4 [shape = 'f32[8,8,512]{2,1,0:T(8,128)}', space=vmem, size = 0x20000, scoped, tag = 'scratch operand']
  %s0 = inlined_call_operand.vmem [shape: bf16[8,8,16], index: 0, kind: input, shape index: {}]
  %s1 = inlined_call_operand.vmem [shape: bf16[16,512], index: 1, kind: input, shape index: {}]
  %s2 = inlined_call_operand.vmem [shape: bf16[128,512], index: 2, kind: input, shape index: {}]
  %s3 = inlined_call_operand.vmem [shape: f32[1,512], index: 3, kind: input, shape index: {}]
  %s4 = inlined_call_operand.vmem [shape: bf16[8,8,128], index: 4, kind: output, shape index: {0}]
  %s5 = inlined_call_operand.vmem [shape: f32[8,128], index: 5, kind: output, shape index: {1}]
  %s6 = inlined_call_operand.vmem [shape: f32[8,128], index: 6, kind: output, shape index: {2}]
  %7 = xla_tuple %s4, %s5, %s6
  %s8 = sld [smem:[#allocation0]]
  $region50: #{encoder_forward.2} parent=0
    _
  %s10 = ssub.s32 1, %s8
  %s11 = scalar_select 0, %s10, %s8
  // Predicated region
  $region2: #{encoder_forward.2} parent=0 // pred_check
    _
  $region3: #{encoder_forward.2} parent=0 // pred_check_branch
    %13 = sbr.rel (0) target = $region5
  $region4: #{encoder_forward.2} parent=0 // pred_region
    _
  $region5: #{encoder_forward.2} parent=0 // pred_fallthru
    _
  // Predicated region
  $region6: #{encoder_forward.2} parent=0 // pred_check
    _
  $region7: #{encoder_forward.2} parent=0 // pred_check_branch
    %15 = sbr.rel (0) target = $region9
  $region8: #{encoder_forward.2} parent=0 // pred_region
    _
  $region9: #{encoder_forward.2} parent=0 // pred_fallthru
    _
  // Predicated region
  $region10: #{encoder_forward.2} parent=0 // pred_check
    _
  $region11: #{encoder_forward.2} parent=0 // pred_check_branch
    %17 = sbr.rel (0) target = $region13
  $region12: #{encoder_forward.2} parent=0 // pred_region
    _
  $region13: #{encoder_forward.2} parent=0 // pred_fallthru
    _
  // Predicated region
  $region14: #{encoder_forward.2} parent=0 // pred_check
    _
  $region15: #{encoder_forward.2} parent=0 // pred_check_branch
    %19 = sbr.rel (0) target = $region17
  $region16: #{encoder_forward.2} parent=0 // pred_region
    _
  $region17: #{encoder_forward.2} parent=0 // pred_fallthru
    _
  %p21 = scmp.eq.s32.totalorder 0, 0
  // Predicated region
  $region18: #{encoder_forward.2} parent=0 // pred_check
    %p22 = pneg %p21
  $region19: #{encoder_forward.2} parent=0 // pred_check_branch
    %24 = sbr.rel (%p22) target = $region21
  $region20: #{encoder_forward.2} parent=0 // pred_region
    %25 = vst [vmem:[#allocation2] sm:$0xff] 0.0
    %26 = vst [vmem:[#allocation3] sm:$0xff] 0.0
  $region21: #{encoder_forward.2} parent=0 // pred_fallthru
    _
  %v27 = vld [vmem:[%s0] sm:$0xf]
  %v28 = vld [vmem:[%s0 + $0x4] sm:$0xf]
  %v29 = vld [vmem:[%s0 + $0x8] sm:$0xf]
  %v30 = vld [vmem:[%s0 + $0xc] sm:$0xf]
  %v31 = vld [vmem:[%s0 + $0x10] sm:$0xf]
  %v32 = vld [vmem:[%s0 + $0x14] sm:$0xf]
  %v33 = vld [vmem:[%s0 + $0x18] sm:$0xf]
  %v34 = vld [vmem:[%s0 + $0x1c] sm:$0xf]
  %v35 = vld [vmem:[%s1] sm:$0xff]
  %v36 = vld [vmem:[%s1 + $0x8] sm:$0xff]
  %v37 = vld [vmem:[%s1 + $0x10] sm:$0xff]
  %v38 = vld [vmem:[%s1 + $0x18] sm:$0xff]
  %v39 = vld [vmem:[%s3] sm:$0xf]
  %v41 = vlaneseq
  %v42 = vshrl.u32 %v41, 7
  %v43 = vsub.s32 0, %v42
  %v44 = vrot.slane %v39, %v43
  %v45 = vlaneseq
  %v46 = vshrl.u32 %v45, 7
  %v47 = vsub.s32 1, %v46
  %v48 = vrot.slane %v39, %v47
  %v49 = vlaneseq
  %v50 = vshrl.u32 %v49, 7
  %v51 = vsub.s32 2, %v50
  %v52 = vrot.slane %v39, %v51
  %v53 = vlaneseq
  %v54 = vshrl.u32 %v53, 7
  %v55 = vsub.s32 3, %v54
  %v56 = vrot.slane %v39, %v55
  %v69 = vunpack.c.l.b16 %v27
  %v70 = vunpack.c.l.b16 %v28
  %v71 = vunpack.c.l.b16 %v29
  %v72 = vunpack.c.l.b16 %v30
  %v73 = vunpack.c.l.b16 %v31
  %v74 = vunpack.c.l.b16 %v32
  %v75 = vunpack.c.l.b16 %v33
  %v76 = vunpack.c.l.b16 %v34
  %v77 = vpack.c.b16 %v70, %v69
  %v78 = vpack.c.b16 %v72, %v71
  %v79 = vpack.c.b16 %v74, %v73
  %v80 = vpack.c.b16 %v76, %v75
  %v85 = vunpack.c.l.b16 %v35
  %v86 = vunpack.c.h.b16 %v35
  %v87 = vunpack.c.l.b16 %v36
  %v88 = vunpack.c.h.b16 %v36
  %v89 = vunpack.c.l.b16 %v37
  %v90 = vunpack.c.h.b16 %v37
  %v91 = vunpack.c.l.b16 %v38
  %v92 = vunpack.c.h.b16 %v38
  %v93 = vpack.c.b16 %v89, %v85
  %v94 = vpack.c.b16 %v90, %v86
  %v95 = vpack.c.b16 %v91, %v87
  %v96 = vpack.c.b16 %v92, %v88
  %vm101 = vcmask 130048
  %v103 = vsel %vm101, %v77, 0
  %v106 = vsel %vm101, %v78, 0
  %v109 = vsel %vm101, %v79, 0
  %v112 = vsel %vm101, %v80, 0
  %114 = vmatprep.subr.bf16.mxu0 %v94
  %115 = vmatpush1.bf16.msra.mxu0 %v93
  %116 = vmatprep.subr.bf16.mxu0 0
  %117 = vmatpush1.bf16.msra.mxu0 0
  %118 = vmatprep.subr.bf16.mxu0 0
  %119 = vmatpush1.bf16.msra.mxu0 0
  %120 = vmatprep.subr.bf16.mxu0 0
  %121 = vmatpush1.bf16.msra.mxu0 0
  %122 = vmatprep.subr.bf16.mxu0 0
  %123 = vmatpush1.bf16.msra.mxu0 0
  %124 = vmatprep.subr.bf16.mxu0 0
  %125 = vmatpush1.bf16.msra.mxu0 0
  %126 = vmatprep.subr.bf16.mxu0 0
  %127 = vmatpush1.bf16.msra.mxu0 0
  %128 = vmatprep.subr.bf16.mxu0 0
  %129 = vmatpush1.bf16.msra.mxu0 0
  %130 = vmatprep.subr.bf16.mxu0 0
  %131 = vmatpush1.bf16.msra.mxu0 0
  %132 = vmatprep.subr.bf16.mxu0 0
  %133 = vmatpush1.bf16.msra.mxu0 0
  %134 = vmatprep.subr.bf16.mxu0 0
  %135 = vmatpush1.bf16.msra.mxu0 0
  %136 = vmatprep.subr.bf16.mxu0 0
  %137 = vmatpush1.bf16.msra.mxu0 0
  %138 = vmatprep.subr.bf16.mxu0 0
  %139 = vmatpush1.bf16.msra.mxu0 0
  %140 = vmatprep.subr.bf16.mxu0 0
  %141 = vmatpush1.bf16.msra.mxu0 0
  %142 = vmatprep.subr.bf16.mxu0 0
  %143 = vmatpush1.bf16.msra.mxu0 0
  %144 = vmatprep.subr.bf16.mxu0 0
  %145 = vmatpush1.bf16.msra.mxu0 0
  %146 = vmatprep.mubr.bf16.mxu0 0
  %147 = vmatmul.mubr.bf16.gmra.mrb[0].mxu0 %v103
  %v148 = vpop.f32.mrb[0].mxu0
  %v149 = vadd.f32 %v44, %v148
  %v150 = vpop.f32.mrb[0].mxu0
  %v151 = vadd.f32 %v48, %v150
  %v152 = vpop.f32.mrb[0].mxu0
  %v153 = vadd.f32 %v44, %v152
  %v154 = vpop.f32.mrb[0].mxu0
  %v155 = vadd.f32 %v48, %v154
  %156 = vmatprep.mubr.bf16.mxu0 0
  %157 = vmatmul.mubr.bf16.gmra.mrb[0].mxu0 %v106
  %v158 = vpop.f32.mrb[0].mxu0
  %v159 = vadd.f32 %v44, %v158
  %v160 = vpop.f32.mrb[0].mxu0
  %v161 = vadd.f32 %v48, %v160
  %v162 = vpop.f32.mrb[0].mxu0
  %v163 = vadd.f32 %v44, %v162
  %v164 = vpop.f32.mrb[0].mxu0
  %v165 = vadd.f32 %v48, %v164
  %166 = vmatprep.mubr.bf16.mxu0 0
  %167 = vmatmul.mubr.bf16.gmra.mrb[0].mxu0 %v109
  %v168 = vpop.f32.mrb[0].mxu0
  %v169 = vadd.f32 %v44, %v168
  %v170 = vpop.f32.mrb[0].mxu0
  %v171 = vadd.f32 %v48, %v170
  %v172 = vpop.f32.mrb[0].mxu0
  %v173 = vadd.f32 %v44, %v172
  %v174 = vpop.f32.mrb[0].mxu0
  %v175 = vadd.f32 %v48, %v174
  %176 = vmatprep.mubr.bf16.mxu0 0
  %177 = vmatmul.mubr.bf16.gmra.mrb[0].mxu0 %v112
  %v178 = vpop.f32.mrb[0].mxu0
  %v179 = vadd.f32 %v44, %v178
  %v180 = vpop.f32.mrb[0].mxu0
  %v181 = vadd.f32 %v48, %v180
  %v182 = vpop.f32.mrb[0].mxu0
  %v183 = vadd.f32 %v44, %v182
  %v184 = vpop.f32.mrb[0].mxu0
  %v185 = vadd.f32 %v48, %v184
  %186 = vdwg.mxu0
  %187 = vmatprep.subr.bf16.mxu0 %v96
  %188 = vmatpush1.bf16.msra.mxu0 %v95
  %189 = vmatprep.subr.bf16.mxu0 0
  %190 = vmatpush1.bf16.msra.mxu0 0
  %191 = vmatprep.subr.bf16.mxu0 0
  %192 = vmatpush1.bf16.msra.mxu0 0
  %193 = vmatprep.subr.bf16.mxu0 0
  %194 = vmatpush1.bf16.msra.mxu0 0
  %195 = vmatprep.subr.bf16.mxu0 0
  %196 = vmatpush1.bf16.msra.mxu0 0
  %197 = vmatprep.subr.bf16.mxu0 0
  %198 = vmatpush1.bf16.msra.mxu0 0
  %199 = vmatprep.subr.bf16.mxu0 0
  %200 = vmatpush1.bf16.msra.mxu0 0
  %201 = vmatprep.subr.bf16.mxu0 0
  %202 = vmatpush1.bf16.msra.mxu0 0
  %203 = vmatprep.subr.bf16.mxu0 0
  %204 = vmatpush1.bf16.msra.mxu0 0
  %205 = vmatprep.subr.bf16.mxu0 0
  %206 = vmatpush1.bf16.msra.mxu0 0
  %207 = vmatprep.subr.bf16.mxu0 0
  %208 = vmatpush1.bf16.msra.mxu0 0
  %209 = vmatprep.subr.bf16.mxu0 0
  %210 = vmatpush1.bf16.msra.mxu0 0
  %211 = vmatprep.subr.bf16.mxu0 0
  %212 = vmatpush1.bf16.msra.mxu0 0
  %213 = vmatprep.subr.bf16.mxu0 0
  %214 = vmatpush1.bf16.msra.mxu0 0
  %215 = vmatprep.subr.bf16.mxu0 0
  %216 = vmatpush1.bf16.msra.mxu0 0
  %217 = vmatprep.subr.bf16.mxu0 0
  %218 = vmatpush1.bf16.msra.mxu0 0
  %219 = vmatprep.mubr.bf16.mxu0 0
  %220 = vmatmul.mubr.bf16.gmra.mrb[0].mxu0 %v103
  %v221 = vpop.f32.mrb[0].mxu0
  %v222 = vadd.f32 %v52, %v221
  %v223 = vpop.f32.mrb[0].mxu0
  %v224 = vadd.f32 %v56, %v223
  %v225 = vpop.f32.mrb[0].mxu0
  %v226 = vadd.f32 %v52, %v225
  %v227 = vpop.f32.mrb[0].mxu0
  %v228 = vadd.f32 %v56, %v227
  %229 = vmatprep.mubr.bf16.mxu0 0
  %230 = vmatmul.mubr.bf16.gmra.mrb[0].mxu0 %v106
  %v231 = vpop.f32.mrb[0].mxu0
  %v232 = vadd.f32 %v52, %v231
  %v233 = vpop.f32.mrb[0].mxu0
  %v234 = vadd.f32 %v56, %v233
  %v235 = vpop.f32.mrb[0].mxu0
  %v236 = vadd.f32 %v52, %v235
  %v237 = vpop.f32.mrb[0].mxu0
  %v238 = vadd.f32 %v56, %v237
  %239 = vmatprep.mubr.bf16.mxu0 0
  %240 = vmatmul.mubr.bf16.gmra.mrb[0].mxu0 %v109
  %v241 = vpop.f32.mrb[0].mxu0
  %v242 = vadd.f32 %v52, %v241
  %v243 = vpop.f32.mrb[0].mxu0
  %v244 = vadd.f32 %v56, %v243
  %v245 = vpop.f32.mrb[0].mxu0
  %v246 = vadd.f32 %v52, %v245
  %v247 = vpop.f32.mrb[0].mxu0
  %v248 = vadd.f32 %v56, %v247
  %249 = vmatprep.mubr.bf16.mxu0 0
  %250 = vmatmul.mubr.bf16.gmra.mrb[0].mxu0 %v112
  %v251 = vpop.f32.mrb[0].mxu0
  %v252 = vadd.f32 %v52, %v251
  %v253 = vpop.f32.mrb[0].mxu0
  %v254 = vadd.f32 %v56, %v253
  %v255 = vpop.f32.mrb[0].mxu0
  %v256 = vadd.f32 %v52, %v255
  %v257 = vpop.f32.mrb[0].mxu0
  %v258 = vadd.f32 %v56, %v257
  %259 = vdwg.mxu0
  %260 = vst [vmem:[#allocation4] sm:$0xff] %v149
  %261 = vst [vmem:[#allocation4 + $0x8] sm:$0xff] %v151
  %262 = vst [vmem:[#allocation4 + $0x10] sm:$0xff] %v222
  %263 = vst [vmem:[#allocation4 + $0x18] sm:$0xff] %v224
  %264 = vst [vmem:[#allocation4 + $0x20] sm:$0xff] %v153
  %265 = vst [vmem:[#allocation4 + $0x28] sm:$0xff] %v155
  %266 = vst [vmem:[#allocation4 + $0x30] sm:$0xff] %v226
  %267 = vst [vmem:[#allocation4 + $0x38] sm:$0xff] %v228
  %268 = vst [vmem:[#allocation4 + $0x40] sm:$0xff] %v159
  %269 = vst [vmem:[#allocation4 + $0x48] sm:$0xff] %v161
  %270 = vst [vmem:[#allocation4 + $0x50] sm:$0xff] %v232
  %271 = vst [vmem:[#allocation4 + $0x58] sm:$0xff] %v234
  %272 = vst [vmem:[#allocation4 + $0x60] sm:$0xff] %v163
  %273 = vst [vmem:[#allocation4 + $0x68] sm:$0xff] %v165
  %274 = vst [vmem:[#allocation4 + $0x70] sm:$0xff] %v236
  %275 = vst [vmem:[#allocation4 + $0x78] sm:$0xff] %v238
  %276 = vst [vmem:[#allocation4 + $0x80] sm:$0xff] %v169
  %277 = vst [vmem:[#allocation4 + $0x88] sm:$0xff] %v171
  %278 = vst [vmem:[#allocation4 + $0x90] sm:$0xff] %v242
  %279 = vst [vmem:[#allocation4 + $0x98] sm:$0xff] %v244
  %280 = vst [vmem:[#allocation4 + $0xa0] sm:$0xff] %v173
  %281 = vst [vmem:[#allocation4 + $0xa8] sm:$0xff] %v175
  %282 = vst [vmem:[#allocation4 + $0xb0] sm:$0xff] %v246
  %283 = vst [vmem:[#allocation4 + $0xb8] sm:$0xff] %v248
  %284 = vst [vmem:[#allocation4 + $0xc0] sm:$0xff] %v179
  %285 = vst [vmem:[#allocation4 + $0xc8] sm:$0xff] %v181
  %286 = vst [vmem:[#allocation4 + $0xd0] sm:$0xff] %v252
  %287 = vst [vmem:[#allocation4 + $0xd8] sm:$0xff] %v254
  %288 = vst [vmem:[#allocation4 + $0xe0] sm:$0xff] %v183
  %289 = vst [vmem:[#allocation4 + $0xe8] sm:$0xff] %v185
  %290 = vst [vmem:[#allocation4 + $0xf0] sm:$0xff] %v256
  %291 = vst [vmem:[#allocation4 + $0xf8] sm:$0xff] %v258
  %v292 = vld [vmem:[%s2] sm:$0xff]
  %v293 = vld [vmem:[%s2 + $0x8] sm:$0xff]
  %v294 = vld [vmem:[%s2 + $0x10] sm:$0xff]
  %v295 = vld [vmem:[%s2 + $0x18] sm:$0xff]
  %v296 = vld [vmem:[%s2 + $0x20] sm:$0xff]
  %v297 = vld [vmem:[%s2 + $0x28] sm:$0xff]
  %v298 = vld [vmem:[%s2 + $0x30] sm:$0xff]
  %v299 = vld [vmem:[%s2 + $0x38] sm:$0xff]
  %v300 = vld [vmem:[%s2 + $0x40] sm:$0xff]
  %v301 = vld [vmem:[%s2 + $0x48] sm:$0xff]
  %v302 = vld [vmem:[%s2 + $0x50] sm:$0xff]
  %v303 = vld [vmem:[%s2 + $0x58] sm:$0xff]
  %v304 = vld [vmem:[%s2 + $0x60] sm:$0xff]
  %v305 = vld [vmem:[%s2 + $0x68] sm:$0xff]
  %v306 = vld [vmem:[%s2 + $0x70] sm:$0xff]
  %v307 = vld [vmem:[%s2 + $0x78] sm:$0xff]
  %v308 = vld [vmem:[%s2 + $0x80] sm:$0xff]
  %v309 = vld [vmem:[%s2 + $0x88] sm:$0xff]
  %v310 = vld [vmem:[%s2 + $0x90] sm:$0xff]
  %v311 = vld [vmem:[%s2 + $0x98] sm:$0xff]
  %v312 = vld [vmem:[%s2 + $0xa0] sm:$0xff]
  %v313 = vld [vmem:[%s2 + $0xa8] sm:$0xff]
  %v314 = vld [vmem:[%s2 + $0xb0] sm:$0xff]
  %v315 = vld [vmem:[%s2 + $0xb8] sm:$0xff]
  %v316 = vld [vmem:[%s2 + $0xc0] sm:$0xff]
  %v317 = vld [vmem:[%s2 + $0xc8] sm:$0xff]
  %v318 = vld [vmem:[%s2 + $0xd0] sm:$0xff]
  %v319 = vld [vmem:[%s2 + $0xd8] sm:$0xff]
  %v320 = vld [vmem:[%s2 + $0xe0] sm:$0xff]
  %v321 = vld [vmem:[%s2 + $0xe8] sm:$0xff]
  %v322 = vld [vmem:[%s2 + $0xf0] sm:$0xff]
  %v323 = vld [vmem:[%s2 + $0xf8] sm:$0xff]
  %v324 = vld [vmem:[#allocation2] sm:$0xff]
  %v325 = vld [vmem:[#allocation3] sm:$0xff]
  %v326 = vld [vmem:[#allocation4] sm:$0xff]
  %v327 = vld [vmem:[#allocation4 + $0x8] sm:$0xff]
  %v328 = vld [vmem:[#allocation4 + $0x10] sm:$0xff]
  %v329 = vld [vmem:[#allocation4 + $0x18] sm:$0xff]
  %v330 = vpack.c.bf16 %v324, %v324
  %v363 = vunpack.c.l.b16 %v292
  %v364 = vunpack.c.h.b16 %v292
  %v365 = vunpack.c.l.b16 %v293
  %v366 = vunpack.c.h.b16 %v293
  %v367 = vunpack.c.l.b16 %v294
  %v368 = vunpack.c.h.b16 %v294
  %v369 = vunpack.c.l.b16 %v295
  %v370 = vunpack.c.h.b16 %v295
  %v371 = vunpack.c.l.b16 %v296
  %v372 = vunpack.c.h.b16 %v296
  %v373 = vunpack.c.l.b16 %v297
  %v374 = vunpack.c.h.b16 %v297
  %v375 = vunpack.c.l.b16 %v298
  %v376 = vunpack.c.h.b16 %v298
  %v377 = vunpack.c.l.b16 %v299
  %v378 = vunpack.c.h.b16 %v299
  %v379 = vunpack.c.l.b16 %v300
  %v380 = vunpack.c.h.b16 %v300
  %v381 = vunpack.c.l.b16 %v301
  %v382 = vunpack.c.h.b16 %v301
  %v383 = vunpack.c.l.b16 %v302
  %v384 = vunpack.c.h.b16 %v302
  %v385 = vunpack.c.l.b16 %v303
  %v386 = vunpack.c.h.b16 %v303
  %v387 = vunpack.c.l.b16 %v304
  %v388 = vunpack.c.h.b16 %v304
  %v389 = vunpack.c.l.b16 %v305
  %v390 = vunpack.c.h.b16 %v305
  %v391 = vunpack.c.l.b16 %v306
  %v392 = vunpack.c.h.b16 %v306
  %v393 = vunpack.c.l.b16 %v307
  %v394 = vunpack.c.h.b16 %v307
  %v395 = vunpack.c.l.b16 %v308
  %v396 = vunpack.c.h.b16 %v308
  %v397 = vunpack.c.l.b16 %v309
  %v398 = vunpack.c.h.b16 %v309
  %v399 = vunpack.c.l.b16 %v310
  %v400 = vunpack.c.h.b16 %v310
  %v401 = vunpack.c.l.b16 %v311
  %v402 = vunpack.c.h.b16 %v311
  %v403 = vunpack.c.l.b16 %v312
  %v404 = vunpack.c.h.b16 %v312
  %v405 = vunpack.c.l.b16 %v313
  %v406 = vunpack.c.h.b16 %v313
  %v407 = vunpack.c.l.b16 %v314
  %v408 = vunpack.c.h.b16 %v314
  %v409 = vunpack.c.l.b16 %v315
  %v410 = vunpack.c.h.b16 %v315
  %v411 = vunpack.c.l.b16 %v316
  %v412 = vunpack.c.h.b16 %v316
  %v413 = vunpack.c.l.b16 %v317
  %v414 = vunpack.c.h.b16 %v317
  %v415 = vunpack.c.l.b16 %v318
  %v416 = vunpack.c.h.b16 %v318
  %v417 = vunpack.c.l.b16 %v319
  %v418 = vunpack.c.h.b16 %v319
  %v419 = vunpack.c.l.b16 %v320
  %v420 = vunpack.c.h.b16 %v320
  %v421 = vunpack.c.l.b16 %v321
  %v422 = vunpack.c.h.b16 %v321
  %v423 = vunpack.c.l.b16 %v322
  %v424 = vunpack.c.h.b16 %v322
  %v425 = vunpack.c.l.b16 %v323
  %v426 = vunpack.c.h.b16 %v323
  %v427 = vpack.c.b16 %v367, %v363
  %v428 = vpack.c.b16 %v368, %v364
  %v429 = vpack.c.b16 %v369, %v365
  %v430 = vpack.c.b16 %v370, %v366
  %v431 = vpack.c.b16 %v375, %v371
  %v432 = vpack.c.b16 %v376, %v372
  %v433 = vpack.c.b16 %v377, %v373
  %v434 = vpack.c.b16 %v378, %v374
  %v435 = vpack.c.b16 %v383, %v379
  %v436 = vpack.c.b16 %v384, %v380
  %v437 = vpack.c.b16 %v385, %v381
  %v438 = vpack.c.b16 %v386, %v382
  %v439 = vpack.c.b16 %v391, %v387
  %v440 = vpack.c.b16 %v392, %v388
  %v441 = vpack.c.b16 %v393, %v389
  %v442 = vpack.c.b16 %v394, %v390
  %v443 = vpack.c.b16 %v399, %v395
  %v444 = vpack.c.b16 %v400, %v396
  %v445 = vpack.c.b16 %v401, %v397
  %v446 = vpack.c.b16 %v402, %v398
  %v447 = vpack.c.b16 %v407, %v403
  %v448 = vpack.c.b16 %v408, %v404
  %v449 = vpack.c.b16 %v409, %v405
  %v450 = vpack.c.b16 %v410, %v406
  %v451 = vpack.c.b16 %v415, %v411
  %v452 = vpack.c.b16 %v416, %v412
  %v453 = vpack.c.b16 %v417, %v413
  %v454 = vpack.c.b16 %v418, %v414
  %v455 = vpack.c.b16 %v423, %v419
  %v456 = vpack.c.b16 %v424, %v420
  %v457 = vpack.c.b16 %v425, %v421
  %v458 = vpack.c.b16 %v426, %v422
  %491 = vmatprep.subr.bf16.mxu0 %v428
  %492 = vmatpush1.bf16.msra.mxu0 %v427
  %493 = vmatprep.subr.bf16.mxu0 %v432
  %494 = vmatpush1.bf16.msra.mxu0 %v431
  %495 = vmatprep.subr.bf16.mxu0 %v436
  %496 = vmatpush1.bf16.msra.mxu0 %v435
  %497 = vmatprep.subr.bf16.mxu0 %v440
  %498 = vmatpush1.bf16.msra.mxu0 %v439
  %499 = vmatprep.subr.bf16.mxu0 %v444
  %500 = vmatpush1.bf16.msra.mxu0 %v443
  %501 = vmatprep.subr.bf16.mxu0 %v448
  %502 = vmatpush1.bf16.msra.mxu0 %v447
  %503 = vmatprep.subr.bf16.mxu0 %v452
  %504 = vmatpush1.bf16.msra.mxu0 %v451
  %505 = vmatprep.subr.bf16.mxu0 %v456
  %506 = vmatpush1.bf16.msra.mxu0 %v455
  %507 = vmatprep.subr.bf16.mxu0 0
  %508 = vmatpush1.bf16.msra.mxu0 0
  %509 = vmatprep.subr.bf16.mxu0 0
  %510 = vmatpush1.bf16.msra.mxu0 0
  %511 = vmatprep.subr.bf16.mxu0 0
  %512 = vmatpush1.bf16.msra.mxu0 0
  %513 = vmatprep.subr.bf16.mxu0 0
  %514 = vmatpush1.bf16.msra.mxu0 0
  %515 = vmatprep.subr.bf16.mxu0 0
  %516 = vmatpush1.bf16.msra.mxu0 0
  %517 = vmatprep.subr.bf16.mxu0 0
  %518 = vmatpush1.bf16.msra.mxu0 0
  %519 = vmatprep.subr.bf16.mxu0 0
  %520 = vmatpush1.bf16.msra.mxu0 0
  %521 = vmatprep.subr.bf16.mxu0 0
  %522 = vmatpush1.bf16.msra.mxu0 0
  %523 = vmatprep.mubr.bf16.mxu0 0
  %524 = vmatmul.mubr.bf16.gmra.mrb[0].mxu0 %v330
  %v525 = vpop.f32.mrb[0].mxu0
  %v526 = vadd.f32 0.0, %v525
  %v527 = vpop.f32.mrb[0].mxu0
  %v528 = vadd.f32 0.0, %v527
  %v529 = vpop.f32.mrb[0].mxu0
  %v530 = vpop.f32.mrb[0].mxu0
  %531 = vdwg.mxu0
  %532 = vmatprep.subr.bf16.mxu0 %v430
  %533 = vmatpush1.bf16.msra.mxu0 %v429
  %534 = vmatprep.subr.bf16.mxu0 %v434
  %535 = vmatpush1.bf16.msra.mxu0 %v433
  %536 = vmatprep.subr.bf16.mxu0 %v438
  %537 = vmatpush1.bf16.msra.mxu0 %v437
  %538 = vmatprep.subr.bf16.mxu0 %v442
  %539 = vmatpush1.bf16.msra.mxu0 %v441
  %540 = vmatprep.subr.bf16.mxu0 %v446
  %541 = vmatpush1.bf16.msra.mxu0 %v445
  %542 = vmatprep.subr.bf16.mxu0 %v450
  %543 = vmatpush1.bf16.msra.mxu0 %v449
  %544 = vmatprep.subr.bf16.mxu0 %v454
  %545 = vmatpush1.bf16.msra.mxu0 %v453
  %546 = vmatprep.subr.bf16.mxu0 %v458
  %547 = vmatpush1.bf16.msra.mxu0 %v457
  %548 = vmatprep.subr.bf16.mxu0 0
  %549 = vmatpush1.bf16.msra.mxu0 0
  %550 = vmatprep.subr.bf16.mxu0 0
  %551 = vmatpush1.bf16.msra.mxu0 0
  %552 = vmatprep.subr.bf16.mxu0 0
  %553 = vmatpush1.bf16.msra.mxu0 0
  %554 = vmatprep.subr.bf16.mxu0 0
  %555 = vmatpush1.bf16.msra.mxu0 0
  %556 = vmatprep.subr.bf16.mxu0 0
  %557 = vmatpush1.bf16.msra.mxu0 0
  %558 = vmatprep.subr.bf16.mxu0 0
  %559 = vmatpush1.bf16.msra.mxu0 0
  %560 = vmatprep.subr.bf16.mxu0 0
  %561 = vmatpush1.bf16.msra.mxu0 0
  %562 = vmatprep.subr.bf16.mxu0 0
  %563 = vmatpush1.bf16.msra.mxu0 0
  %564 = vmatprep.mubr.bf16.mxu0 0
  %565 = vmatmul.mubr.bf16.gmra.mrb[0].mxu0 %v330
  %v566 = vpop.f32.mrb[0].mxu0
  %v567 = vadd.f32 0.0, %v566
  %v568 = vpop.f32.mrb[0].mxu0
  %v569 = vadd.f32 0.0, %v568
  %v570 = vpop.f32.mrb[0].mxu0
  %v571 = vpop.f32.mrb[0].mxu0
  %572 = vdwg.mxu0
  %v573 = vadd.f32 %v326, %v526
  %v574 = vadd.f32 %v327, %v528
  %v575 = vadd.f32 %v328, %v567
  %v576 = vadd.f32 %v329, %v569
  %v577 = vmul.f32 %v573, 0.5
  %v578 = vtanh.pop %v577
  %v579 = vmul.f32 %v578, 0.5
  %v580 = vadd.f32 %v579, 0.5
  %v581 = vmul.f32 %v574, 0.5
  %v582 = vtanh.pop %v581
  %v583 = vmul.f32 %v582, 0.5
  %v584 = vadd.f32 %v583, 0.5
  %v585 = vtanh.pop %v575
  %v586 = vmul.f32 %v576, 0.5
  %v587 = vtanh.pop %v586
  %v588 = vmul.f32 %v587, 0.5
  %v589 = vadd.f32 %v588, 0.5
  %v590 = vmul.f32 %v584, %v325
  %v591 = vmul.f32 %v580, %v585
  %v592 = vadd.f32 %v590, %v591
  %v593 = vtanh.pop %v592
  %v594 = vmul.f32 %v589, %v593
  %v595 = vpack.c.bf16 %v594, %v594
  %596 = vst [vmem:[%s4] sm:$0xf] %v595
  %s597 = scalar_lea.vmem [#allocation4], 32
  %v598 = vld [vmem:[%s597] sm:$0xff]
  %v599 = vld [vmem:[%s597 + $0x8] sm:$0xff]
  %v600 = vld [vmem:[%s597 + $0x10] sm:$0xff]
  %v601 = vld [vmem:[%s597 + $0x18] sm:$0xff]
  %602 = vmatprep.subr.bf16.mxu0 %v428
  %603 = vmatpush1.bf16.msra.mxu0 %v427
  %604 = vmatprep.subr.bf16.mxu0 %v432
  %605 = vmatpush1.bf16.msra.mxu0 %v431
  %606 = vmatprep.subr.bf16.mxu0 %v436
  %607 = vmatpush1.bf16.msra.mxu0 %v435
  %608 = vmatprep.subr.bf16.mxu0 %v440
  %609 = vmatpush1.bf16.msra.mxu0 %v439
  %610 = vmatprep.subr.bf16.mxu0 %v444
  %611 = vmatpush1.bf16.msra.mxu0 %v443
  %612 = vmatprep.subr.bf16.mxu0 %v448
  %613 = vmatpush1.bf16.msra.mxu0 %v447
  %614 = vmatprep.subr.bf16.mxu0 %v452
  %615 = vmatpush1.bf16.msra.mxu0 %v451
  %616 = vmatprep.subr.bf16.mxu0 %v456
  %617 = vmatpush1.bf16.msra.mxu0 %v455
  %618 = vmatprep.subr.bf16.mxu0 0
  %619 = vmatpush1.bf16.msra.mxu0 0
  %620 = vmatprep.subr.bf16.mxu0 0
  %621 = vmatpush1.bf16.msra.mxu0 0
  %622 = vmatprep.subr.bf16.mxu0 0
  %623 = vmatpush1.bf16.msra.mxu0 0
  %624 = vmatprep.subr.bf16.mxu0 0
  %625 = vmatpush1.bf16.msra.mxu0 0
  %626 = vmatprep.subr.bf16.mxu0 0
  %627 = vmatpush1.bf16.msra.mxu0 0
  %628 = vmatprep.subr.bf16.mxu0 0
  %629 = vmatpush1.bf16.msra.mxu0 0
  %630 = vmatprep.subr.bf16.mxu0 0
  %631 = vmatpush1.bf16.msra.mxu0 0
  %632 = vmatprep.subr.bf16.mxu0 0
  %633 = vmatpush1.bf16.msra.mxu0 0
  %634 = vmatprep.mubr.bf16.mxu0 0
  %635 = vmatmul.mubr.bf16.gmra.mrb[0].mxu0 %v595
  %v636 = vpop.f32.mrb[0].mxu0
  %v637 = vadd.f32 0.0, %v636
  %v638 = vpop.f32.mrb[0].mxu0
  %v639 = vadd.f32 0.0, %v638
  %v640 = vpop.f32.mrb[0].mxu0
  %v641 = vpop.f32.mrb[0].mxu0
  %642 = vdwg.mxu0
  %643 = vmatprep.subr.bf16.mxu0 %v430
  %644 = vmatpush1.bf16.msra.mxu0 %v429
  %645 = vmatprep.subr.bf16.mxu0 %v434
  %646 = vmatpush1.bf16.msra.mxu0 %v433
  %647 = vmatprep.subr.bf16.mxu0 %v438
  %648 = vmatpush1.bf16.msra.mxu0 %v437
  %649 = vmatprep.subr.bf16.mxu0 %v442
  %650 = vmatpush1.bf16.msra.mxu0 %v441
  %651 = vmatprep.subr.bf16.mxu0 %v446
  %652 = vmatpush1.bf16.msra.mxu0 %v445
  %653 = vmatprep.subr.bf16.mxu0 %v450
  %654 = vmatpush1.bf16.msra.mxu0 %v449
  %655 = vmatprep.subr.bf16.mxu0 %v454
  %656 = vmatpush1.bf16.msra.mxu0 %v453
  %657 = vmatprep.subr.bf16.mxu0 %v458
  %658 = vmatpush1.bf16.msra.mxu0 %v457
  %659 = vmatprep.subr.bf16.mxu0 0
  %660 = vmatpush1.bf16.msra.mxu0 0
  %661 = vmatprep.subr.bf16.mxu0 0
  %662 = vmatpush1.bf16.msra.mxu0 0
  %663 = vmatprep.subr.bf16.mxu0 0
  %664 = vmatpush1.bf16.msra.mxu0 0
  %665 = vmatprep.subr.bf16.mxu0 0
  %666 = vmatpush1.bf16.msra.mxu0 0
  %667 = vmatprep.subr.bf16.mxu0 0
  %668 = vmatpush1.bf16.msra.mxu0 0
  %669 = vmatprep.subr.bf16.mxu0 0
  %670 = vmatpush1.bf16.msra.mxu0 0
  %671 = vmatprep.subr.bf16.mxu0 0
  %672 = vmatpush1.bf16.msra.mxu0 0
  %673 = vmatprep.subr.bf16.mxu0 0
  %674 = vmatpush1.bf16.msra.mxu0 0
  %675 = vmatprep.mubr.bf16.mxu0 0
  %676 = vmatmul.mubr.bf16.gmra.mrb[0].mxu0 %v595
  %v677 = vpop.f32.mrb[0].mxu0
  %v678 = vadd.f32 0.0, %v677
  %v679 = vpop.f32.mrb[0].mxu0
  %v680 = vadd.f32 0.0, %v679
  %v681 = vpop.f32.mrb[0].mxu0
  %v682 = vpop.f32.mrb[0].mxu0
  %683 = vdwg.mxu0
  %v684 = vadd.f32 %v598, %v637
  %v685 = vadd.f32 %v599, %v639
  %v686 = vadd.f32 %v600, %v678
  %v687 = vadd.f32 %v601, %v680
  %v688 = vmul.f32 %v684, 0.5
  %v689 = vtanh.pop %v688
  %v690 = vmul.f32 %v689, 0.5
  %v691 = vadd.f32 %v690, 0.5
  %v692 = vmul.f32 %v685, 0.5
  %v693 = vtanh.pop %v692
  %v694 = vmul.f32 %v693, 0.5
  %v695 = vadd.f32 %v694, 0.5
  %v696 = vtanh.pop %v686
  %v697 = vmul.f32 %v687, 0.5
  %v698 = vtanh.pop %v697
  %v699 = vmul.f32 %v698, 0.5
  %v700 = vadd.f32 %v699, 0.5
  %v701 = vmul.f32 %v695, %v592
  %v702 = vmul.f32 %v691, %v696
  %v703 = vadd.f32 %v701, %v702
  %v704 = vtanh.pop %v703
  %v705 = vmul.f32 %v700, %v704
  %v706 = vpack.c.bf16 %v705, %v705
  %s707 = scalar_lea.vmem %s4, 4
  %708 = vst [vmem:[%s707] sm:$0xf] %v706
  %s709 = scalar_lea.vmem [#allocation4], 64
  %v710 = vld [vmem:[%s709] sm:$0xff]
  %v711 = vld [vmem:[%s709 + $0x8] sm:$0xff]
  %v712 = vld [vmem:[%s709 + $0x10] sm:$0xff]
  %v713 = vld [vmem:[%s709 + $0x18] sm:$0xff]
  %714 = vmatprep.subr.bf16.mxu0 %v428
  %715 = vmatpush1.bf16.msra.mxu0 %v427
  %716 = vmatprep.subr.bf16.mxu0 %v432
  %717 = vmatpush1.bf16.msra.mxu0 %v431
  %718 = vmatprep.subr.bf16.mxu0 %v436
  %719 = vmatpush1.bf16.msra.mxu0 %v435
  %720 = vmatprep.subr.bf16.mxu0 %v440
  %721 = vmatpush1.bf16.msra.mxu0 %v439
  %722 = vmatprep.subr.bf16.mxu0 %v444
  %723 = vmatpush1.bf16.msra.mxu0 %v443
  %724 = vmatprep.subr.bf16.mxu0 %v448
  %725 = vmatpush1.bf16.msra.mxu0 %v447
  %726 = vmatprep.subr.bf16.mxu0 %v452
  %727 = vmatpush1.bf16.msra.mxu0 %v451
  %728 = vmatprep.subr.bf16.mxu0 %v456
  %729 = vmatpush1.bf16.msra.mxu0 %v455
  %730 = vmatprep.subr.bf16.mxu0 0
  %731 = vmatpush1.bf16.msra.mxu0 0
  %732 = vmatprep.subr.bf16.mxu0 0
  %733 = vmatpush1.bf16.msra.mxu0 0
  %734 = vmatprep.subr.bf16.mxu0 0
  %735 = vmatpush1.bf16.msra.mxu0 0
  %736 = vmatprep.subr.bf16.mxu0 0
  %737 = vmatpush1.bf16.msra.mxu0 0
  %738 = vmatprep.subr.bf16.mxu0 0
  %739 = vmatpush1.bf16.msra.mxu0 0
  %740 = vmatprep.subr.bf16.mxu0 0
  %741 = vmatpush1.bf16.msra.mxu0 0
  %742 = vmatprep.subr.bf16.mxu0 0
  %743 = vmatpush1.bf16.msra.mxu0 0
  %744 = vmatprep.subr.bf16.mxu0 0
  %745 = vmatpush1.bf16.msra.mxu0 0
  %746 = vmatprep.mubr.bf16.mxu0 0
  %747 = vmatmul.mubr.bf16.gmra.mrb[0].mxu0 %v706
  %v748 = vpop.f32.mrb[0].mxu0
  %v749 = vadd.f32 0.0, %v748
  %v750 = vpop.f32.mrb[0].mxu0
  %v751 = vadd.f32 0.0, %v750
  %v752 = vpop.f32.mrb[0].mxu0
  %v753 = vpop.f32.mrb[0].mxu0
  %754 = vdwg.mxu0
  %755 = vmatprep.subr.bf16.mxu0 %v430
  %756 = vmatpush1.bf16.msra.mxu0 %v429
  %757 = vmatprep.subr.bf16.mxu0 %v434
  %758 = vmatpush1.bf16.msra.mxu0 %v433
  %759 = vmatprep.subr.bf16.mxu0 %v438
  %760 = vmatpush1.bf16.msra.mxu0 %v437
  %761 = vmatprep.subr.bf16.mxu0 %v442
  %762 = vmatpush1.bf16.msra.mxu0 %v441
  %763 = vmatprep.subr.bf16.mxu0 %v446
  %764 = vmatpush1.bf16.msra.mxu0 %v445
  %765 = vmatprep.subr.bf16.mxu0 %v450
  %766 = vmatpush1.bf16.msra.mxu0 %v449
  %767 = vmatprep.subr.bf16.mxu0 %v454
  %768 = vmatpush1.bf16.msra.mxu0 %v453
  %769 = vmatprep.subr.bf16.mxu0 %v458
  %770 = vmatpush1.bf16.msra.mxu0 %v457
  %771 = vmatprep.subr.bf16.mxu0 0
  %772 = vmatpush1.bf16.msra.mxu0 0
  %773 = vmatprep.subr.bf16.mxu0 0
  %774 = vmatpush1.bf16.msra.mxu0 0
  %775 = vmatprep.subr.bf16.mxu0 0
  %776 = vmatpush1.bf16.msra.mxu0 0
  %777 = vmatprep.subr.bf16.mxu0 0
  %778 = vmatpush1.bf16.msra.mxu0 0
  %779 = vmatprep.subr.bf16.mxu0 0
  %780 = vmatpush1.bf16.msra.mxu0 0
  %781 = vmatprep.subr.bf16.mxu0 0
  %782 = vmatpush1.bf16.msra.mxu0 0
  %783 = vmatprep.subr.bf16.mxu0 0
  %784 = vmatpush1.bf16.msra.mxu0 0
  %785 = vmatprep.subr.bf16.mxu0 0
  %786 = vmatpush1.bf16.msra.mxu0 0
  %787 = vmatprep.mubr.bf16.mxu0 0
  %788 = vmatmul.mubr.bf16.gmra.mrb[0].mxu0 %v706
  %v789 = vpop.f32.mrb[0].mxu0
  %v790 = vadd.f32 0.0, %v789
  %v791 = vpop.f32.mrb[0].mxu0
  %v792 = vadd.f32 0.0, %v791
  %v793 = vpop.f32.mrb[0].mxu0
  %v794 = vpop.f32.mrb[0].mxu0
  %795 = vdwg.mxu0
  %v796 = vadd.f32 %v710, %v749
  %v797 = vadd.f32 %v711, %v751
  %v798 = vadd.f32 %v712, %v790
  %v799 = vadd.f32 %v713, %v792
  %v800 = vmul.f32 %v796, 0.5
  %v801 = vtanh.pop %v800
  %v802 = vmul.f32 %v801, 0.5
  %v803 = vadd.f32 %v802, 0.5
  %v804 = vmul.f32 %v797, 0.5
  %v805 = vtanh.pop %v804
  %v806 = vmul.f32 %v805, 0.5
  %v807 = vadd.f32 %v806, 0.5
  %v808 = vtanh.pop %v798
  %v809 = vmul.f32 %v799, 0.5
  %v810 = vtanh.pop %v809
  %v811 = vmul.f32 %v810, 0.5
  %v812 = vadd.f32 %v811, 0.5
  %v813 = vmul.f32 %v807, %v703
  %v814 = vmul.f32 %v803, %v808
  %v815 = vadd.f32 %v813, %v814
  %v816 = vtanh.pop %v815
  %v817 = vmul.f32 %v812, %v816
  %v818 = vpack.c.bf16 %v817, %v817
  %s819 = scalar_lea.vmem %s4, 8
  %820 = vst [vmem:[%s819] sm:$0xf] %v818
  %s821 = scalar_lea.vmem [#allocation4], 96
  %v822 = vld [vmem:[%s821] sm:$0xff]
  %v823 = vld [vmem:[%s821 + $0x8] sm:$0xff]
  %v824 = vld [vmem:[%s821 + $0x10] sm:$0xff]
  %v825 = vld [vmem:[%s821 + $0x18] sm:$0xff]
  %826 = vmatprep.subr.bf16.mxu0 %v428
  %827 = vmatpush1.bf16.msra.mxu0 %v427
  %828 = vmatprep.subr.bf16.mxu0 %v432
  %829 = vmatpush1.bf16.msra.mxu0 %v431
  %830 = vmatprep.subr.bf16.mxu0 %v436
  %831 = vmatpush1.bf16.msra.mxu0 %v435
  %832 = vmatprep.subr.bf16.mxu0 %v440
  %833 = vmatpush1.bf16.msra.mxu0 %v439
  %834 = vmatprep.subr.bf16.mxu0 %v444
  %835 = vmatpush1.bf16.msra.mxu0 %v443
  %836 = vmatprep.subr.bf16.mxu0 %v448
  %837 = vmatpush1.bf16.msra.mxu0 %v447
  %838 = vmatprep.subr.bf16.mxu0 %v452
  %839 = vmatpush1.bf16.msra.mxu0 %v451
  %840 = vmatprep.subr.bf16.mxu0 %v456
  %841 = vmatpush1.bf16.msra.mxu0 %v455
  %842 = vmatprep.subr.bf16.mxu0 0
  %843 = vmatpush1.bf16.msra.mxu0 0
  %844 = vmatprep.subr.bf16.mxu0 0
  %845 = vmatpush1.bf16.msra.mxu0 0
  %846 = vmatprep.subr.bf16.mxu0 0
  %847 = vmatpush1.bf16.msra.mxu0 0
  %848 = vmatprep.subr.bf16.mxu0 0
  %849 = vmatpush1.bf16.msra.mxu0 0
  %850 = vmatprep.subr.bf16.mxu0 0
  %851 = vmatpush1.bf16.msra.mxu0 0
  %852 = vmatprep.subr.bf16.mxu0 0
  %853 = vmatpush1.bf16.msra.mxu0 0
  %854 = vmatprep.subr.bf16.mxu0 0
  %855 = vmatpush1.bf16.msra.mxu0 0
  %856 = vmatprep.subr.bf16.mxu0 0
  %857 = vmatpush1.bf16.msra.mxu0 0
  %858 = vmatprep.mubr.bf16.mxu0 0
  %859 = vmatmul.mubr.bf16.gmra.mrb[0].mxu0 %v818
  %v860 = vpop.f32.mrb[0].mxu0
  %v861 = vadd.f32 0.0, %v860
  %v862 = vpop.f32.mrb[0].mxu0
  %v863 = vadd.f32 0.0, %v862
  %v864 = vpop.f32.mrb[0].mxu0
  %v865 = vpop.f32.mrb[0].mxu0
  %866 = vdwg.mxu0
  %867 = vmatprep.subr.bf16.mxu0 %v430
  %868 = vmatpush1.bf16.msra.mxu0 %v429
  %869 = vmatprep.subr.bf16.mxu0 %v434
  %870 = vmatpush1.bf16.msra.mxu0 %v433
  %871 = vmatprep.subr.bf16.mxu0 %v438
  %872 = vmatpush1.bf16.msra.mxu0 %v437
  %873 = vmatprep.subr.bf16.mxu0 %v442
  %874 = vmatpush1.bf16.msra.mxu0 %v441
  %875 = vmatprep.subr.bf16.mxu0 %v446
  %876 = vmatpush1.bf16.msra.mxu0 %v445
  %877 = vmatprep.subr.bf16.mxu0 %v450
  %878 = vmatpush1.bf16.msra.mxu0 %v449
  %879 = vmatprep.subr.bf16.mxu0 %v454
  %880 = vmatpush1.bf16.msra.mxu0 %v453
  %881 = vmatprep.subr.bf16.mxu0 %v458
  %882 = vmatpush1.bf16.msra.mxu0 %v457
  %883 = vmatprep.subr.bf16.mxu0 0
  %884 = vmatpush1.bf16.msra.mxu0 0
  %885 = vmatprep.subr.bf16.mxu0 0
  %886 = vmatpush1.bf16.msra.mxu0 0
  %887 = vmatprep.subr.bf16.mxu0 0
  %888 = vmatpush1.bf16.msra.mxu0 0
  %889 = vmatprep.subr.bf16.mxu0 0
  %890 = vmatpush1.bf16.msra.mxu0 0
  %891 = vmatprep.subr.bf16.mxu0 0
  %892 = vmatpush1.bf16.msra.mxu0 0
  %893 = vmatprep.subr.bf16.mxu0 0
  %894 = vmatpush1.bf16.msra.mxu0 0
  %895 = vmatprep.subr.bf16.mxu0 0
  %896 = vmatpush1.bf16.msra.mxu0 0
  %897 = vmatprep.subr.bf16.mxu0 0
  %898 = vmatpush1.bf16.msra.mxu0 0
  %899 = vmatprep.mubr.bf16.mxu0 0
  %900 = vmatmul.mubr.bf16.gmra.mrb[0].mxu0 %v818
  %v901 = vpop.f32.mrb[0].mxu0
  %v902 = vadd.f32 0.0, %v901
  %v903 = vpop.f32.mrb[0].mxu0
  %v904 = vadd.f32 0.0, %v903
  %v905 = vpop.f32.mrb[0].mxu0
  %v906 = vpop.f32.mrb[0].mxu0
  %907 = vdwg.mxu0
  %v908 = vadd.f32 %v822, %v861
  %v909 = vadd.f32 %v823, %v863
  %v910 = vadd.f32 %v824, %v902
  %v911 = vadd.f32 %v825, %v904
  %v912 = vmul.f32 %v908, 0.5
  %v913 = vtanh.pop %v912
  %v914 = vmul.f32 %v913, 0.5
  %v915 = vadd.f32 %v914, 0.5
  %v916 = vmul.f32 %v909, 0.5
  %v917 = vtanh.pop %v916
  %v918 = vmul.f32 %v917, 0.5
  %v919 = vadd.f32 %v918, 0.5
  %v920 = vtanh.pop %v910
  %v921 = vmul.f32 %v911, 0.5
  %v922 = vtanh.pop %v921
  %v923 = vmul.f32 %v922, 0.5
  %v924 = vadd.f32 %v923, 0.5
  %v925 = vmul.f32 %v919, %v815
  %v926 = vmul.f32 %v915, %v920
  %v927 = vadd.f32 %v925, %v926
  %v928 = vtanh.pop %v927
  %v929 = vmul.f32 %v924, %v928
  %v930 = vpack.c.bf16 %v929, %v929
  %s931 = scalar_lea.vmem %s4, 12
  %932 = vst [vmem:[%s931] sm:$0xf] %v930
  %s933 = scalar_lea.vmem [#allocation4], 128
  %v934 = vld [vmem:[%s933] sm:$0xff]
  %v935 = vld [vmem:[%s933 + $0x8] sm:$0xff]
  %v936 = vld [vmem:[%s933 + $0x10] sm:$0xff]
  %v937 = vld [vmem:[%s933 + $0x18] sm:$0xff]
  %938 = vmatprep.subr.bf16.mxu0 %v428
  %939 = vmatpush1.bf16.msra.mxu0 %v427
  %940 = vmatprep.subr.bf16.mxu0 %v432
  %941 = vmatpush1.bf16.msra.mxu0 %v431
  %942 = vmatprep.subr.bf16.mxu0 %v436
  %943 = vmatpush1.bf16.msra.mxu0 %v435
  %944 = vmatprep.subr.bf16.mxu0 %v440
  %945 = vmatpush1.bf16.msra.mxu0 %v439
  %946 = vmatprep.subr.bf16.mxu0 %v444
  %947 = vmatpush1.bf16.msra.mxu0 %v443
  %948 = vmatprep.subr.bf16.mxu0 %v448
  %949 = vmatpush1.bf16.msra.mxu0 %v447
  %950 = vmatprep.subr.bf16.mxu0 %v452
  %951 = vmatpush1.bf16.msra.mxu0 %v451
  %952 = vmatprep.subr.bf16.mxu0 %v456
  %953 = vmatpush1.bf16.msra.mxu0 %v455
  %954 = vmatprep.subr.bf16.mxu0 0
  %955 = vmatpush1.bf16.msra.mxu0 0
  %956 = vmatprep.subr.bf16.mxu0 0
  %957 = vmatpush1.bf16.msra.mxu0 0
  %958 = vmatprep.subr.bf16.mxu0 0
  %959 = vmatpush1.bf16.msra.mxu0 0
  %960 = vmatprep.subr.bf16.mxu0 0
  %961 = vmatpush1.bf16.msra.mxu0 0
  %962 = vmatprep.subr.bf16.mxu0 0
  %963 = vmatpush1.bf16.msra.mxu0 0
  %964 = vmatprep.subr.bf16.mxu0 0
  %965 = vmatpush1.bf16.msra.mxu0 0
  %966 = vmatprep.subr.bf16.mxu0 0
  %967 = vmatpush1.bf16.msra.mxu0 0
  %968 = vmatprep.subr.bf16.mxu0 0
  %969 = vmatpush1.bf16.msra.mxu0 0
  %970 = vmatprep.mubr.bf16.mxu0 0
  %971 = vmatmul.mubr.bf16.gmra.mrb[0].mxu0 %v930
  %v972 = vpop.f32.mrb[0].mxu0
  %v973 = vadd.f32 0.0, %v972
  %v974 = vpop.f32.mrb[0].mxu0
  %v975 = vadd.f32 0.0, %v974
  %v976 = vpop.f32.mrb[0].mxu0
  %v977 = vpop.f32.mrb[0].mxu0
  %978 = vdwg.mxu0
  %979 = vmatprep.subr.bf16.mxu0 %v430
  %980 = vmatpush1.bf16.msra.mxu0 %v429
  %981 = vmatprep.subr.bf16.mxu0 %v434
  %982 = vmatpush1.bf16.msra.mxu0 %v433
  %983 = vmatprep.subr.bf16.mxu0 %v438
  %984 = vmatpush1.bf16.msra.mxu0 %v437
  %985 = vmatprep.subr.bf16.mxu0 %v442
  %986 = vmatpush1.bf16.msra.mxu0 %v441
  %987 = vmatprep.subr.bf16.mxu0 %v446
  %988 = vmatpush1.bf16.msra.mxu0 %v445
  %989 = vmatprep.subr.bf16.mxu0 %v450
  %990 = vmatpush1.bf16.msra.mxu0 %v449
  %991 = vmatprep.subr.bf16.mxu0 %v454
  %992 = vmatpush1.bf16.msra.mxu0 %v453
  %993 = vmatprep.subr.bf16.mxu0 %v458
  %994 = vmatpush1.bf16.msra.mxu0 %v457
  %995 = vmatprep.subr.bf16.mxu0 0
  %996 = vmatpush1.bf16.msra.mxu0 0
  %997 = vmatprep.subr.bf16.mxu0 0
  %998 = vmatpush1.bf16.msra.mxu0 0
  %999 = vmatprep.subr.bf16.mxu0 0
  %1000 = vmatpush1.bf16.msra.mxu0 0
  %1001 = vmatprep.subr.bf16.mxu0 0
  %1002 = vmatpush1.bf16.msra.mxu0 0
  %1003 = vmatprep.subr.bf16.mxu0 0
  %1004 = vmatpush1.bf16.msra.mxu0 0
  %1005 = vmatprep.subr.bf16.mxu0 0
  %1006 = vmatpush1.bf16.msra.mxu0 0
  %1007 = vmatprep.subr.bf16.mxu0 0
  %1008 = vmatpush1.bf16.msra.mxu0 0
  %1009 = vmatprep.subr.bf16.mxu0 0
  %1010 = vmatpush1.bf16.msra.mxu0 0
  %1011 = vmatprep.mubr.bf16.mxu0 0
  %1012 = vmatmul.mubr.bf16.gmra.mrb[0].mxu0 %v930
  %v1013 = vpop.f32.mrb[0].mxu0
  %v1014 = vadd.f32 0.0, %v1013
  %v1015 = vpop.f32.mrb[0].mxu0
  %v1016 = vadd.f32 0.0, %v1015
  %v1017 = vpop.f32.mrb[0].mxu0
  %v1018 = vpop.f32.mrb[0].mxu0
  %1019 = vdwg.mxu0
  %v1020 = vadd.f32 %v934, %v973
  %v1021 = vadd.f32 %v935, %v975
  %v1022 = vadd.f32 %v936, %v1014
  %v1023 = vadd.f32 %v937, %v1016
  %v1024 = vmul.f32 %v1020, 0.5
  %v1025 = vtanh.pop %v1024
  %v1026 = vmul.f32 %v1025, 0.5
  %v1027 = vadd.f32 %v1026, 0.5
  %v1028 = vmul.f32 %v1021, 0.5
  %v1029 = vtanh.pop %v1028
  %v1030 = vmul.f32 %v1029, 0.5
  %v1031 = vadd.f32 %v1030, 0.5
  %v1032 = vtanh.pop %v1022
  %v1033 = vmul.f32 %v1023, 0.5
  %v1034 = vtanh.pop %v1033
  %v1035 = vmul.f32 %v1034, 0.5
  %v1036 = vadd.f32 %v1035, 0.5
  %v1037 = vmul.f32 %v1031, %v927
  %v1038 = vmul.f32 %v1027, %v1032
  %v1039 = vadd.f32 %v1037, %v1038
  %v1040 = vtanh.pop %v1039
  %v1041 = vmul.f32 %v1036, %v1040
  %v1042 = vpack.c.bf16 %v1041, %v1041
  %s1043 = scalar_lea.vmem %s4, 16
  %1044 = vst [vmem:[%s1043] sm:$0xf] %v1042
  %s1045 = scalar_lea.vmem [#allocation4], 160
  %v1046 = vld [vmem:[%s1045] sm:$0xff]
  %v1047 = vld [vmem:[%s1045 + $0x8] sm:$0xff]
  %v1048 = vld [vmem:[%s1045 + $0x10] sm:$0xff]
  %v1049 = vld [vmem:[%s1045 + $0x18] sm:$0xff]
  %1050 = vmatprep.subr.bf16.mxu0 %v428
  %1051 = vmatpush1.bf16.msra.mxu0 %v427
  %1052 = vmatprep.subr.bf16.mxu0 %v432
  %1053 = vmatpush1.bf16.msra.mxu0 %v431
  %1054 = vmatprep.subr.bf16.mxu0 %v436
  %1055 = vmatpush1.bf16.msra.mxu0 %v435
  %1056 = vmatprep.subr.bf16.mxu0 %v440
  %1057 = vmatpush1.bf16.msra.mxu0 %v439
  %1058 = vmatprep.subr.bf16.mxu0 %v444
  %1059 = vmatpush1.bf16.msra.mxu0 %v443
  %1060 = vmatprep.subr.bf16.mxu0 %v448
  %1061 = vmatpush1.bf16.msra.mxu0 %v447
  %1062 = vmatprep.subr.bf16.mxu0 %v452
  %1063 = vmatpush1.bf16.msra.mxu0 %v451
  %1064 = vmatprep.subr.bf16.mxu0 %v456
  %1065 = vmatpush1.bf16.msra.mxu0 %v455
  %1066 = vmatprep.subr.bf16.mxu0 0
  %1067 = vmatpush1.bf16.msra.mxu0 0
  %1068 = vmatprep.subr.bf16.mxu0 0
  %1069 = vmatpush1.bf16.msra.mxu0 0
  %1070 = vmatprep.subr.bf16.mxu0 0
  %1071 = vmatpush1.bf16.msra.mxu0 0
  %1072 = vmatprep.subr.bf16.mxu0 0
  %1073 = vmatpush1.bf16.msra.mxu0 0
  %1074 = vmatprep.subr.bf16.mxu0 0
  %1075 = vmatpush1.bf16.msra.mxu0 0
  %1076 = vmatprep.subr.bf16.mxu0 0
  %1077 = vmatpush1.bf16.msra.mxu0 0
  %1078 = vmatprep.subr.bf16.mxu0 0
  %1079 = vmatpush1.bf16.msra.mxu0 0
  %1080 = vmatprep.subr.bf16.mxu0 0
  %1081 = vmatpush1.bf16.msra.mxu0 0
  %1082 = vmatprep.mubr.bf16.mxu0 0
  %1083 = vmatmul.mubr.bf16.gmra.mrb[0].mxu0 %v1042
  %v1084 = vpop.f32.mrb[0].mxu0
  %v1085 = vadd.f32 0.0, %v1084
  %v1086 = vpop.f32.mrb[0].mxu0
  %v1087 = vadd.f32 0.0, %v1086
  %v1088 = vpop.f32.mrb[0].mxu0
  %v1089 = vpop.f32.mrb[0].mxu0
  %1090 = vdwg.mxu0
  %1091 = vmatprep.subr.bf16.mxu0 %v430
  %1092 = vmatpush1.bf16.msra.mxu0 %v429
  %1093 = vmatprep.subr.bf16.mxu0 %v434
  %1094 = vmatpush1.bf16.msra.mxu0 %v433
  %1095 = vmatprep.subr.bf16.mxu0 %v438
  %1096 = vmatpush1.bf16.msra.mxu0 %v437
  %1097 = vmatprep.subr.bf16.mxu0 %v442
  %1098 = vmatpush1.bf16.msra.mxu0 %v441
  %1099 = vmatprep.subr.bf16.mxu0 %v446
  %1100 = vmatpush1.bf16.msra.mxu0 %v445
  %1101 = vmatprep.subr.bf16.mxu0 %v450
  %1102 = vmatpush1.bf16.msra.mxu0 %v449
  %1103 = vmatprep.subr.bf16.mxu0 %v454
  %1104 = vmatpush1.bf16.msra.mxu0 %v453
  %1105 = vmatprep.subr.bf16.mxu0 %v458
  %1106 = vmatpush1.bf16.msra.mxu0 %v457
  %1107 = vmatprep.subr.bf16.mxu0 0
  %1108 = vmatpush1.bf16.msra.mxu0 0
  %1109 = vmatprep.subr.bf16.mxu0 0
  %1110 = vmatpush1.bf16.msra.mxu0 0
  %1111 = vmatprep.subr.bf16.mxu0 0
  %1112 = vmatpush1.bf16.msra.mxu0 0
  %1113 = vmatprep.subr.bf16.mxu0 0
  %1114 = vmatpush1.bf16.msra.mxu0 0
  %1115 = vmatprep.subr.bf16.mxu0 0
  %1116 = vmatpush1.bf16.msra.mxu0 0
  %1117 = vmatprep.subr.bf16.mxu0 0
  %1118 = vmatpush1.bf16.msra.mxu0 0
  %1119 = vmatprep.subr.bf16.mxu0 0
  %1120 = vmatpush1.bf16.msra.mxu0 0
  %1121 = vmatprep.subr.bf16.mxu0 0
  %1122 = vmatpush1.bf16.msra.mxu0 0
  %1123 = vmatprep.mubr.bf16.mxu0 0
  %1124 = vmatmul.mubr.bf16.gmra.mrb[0].mxu0 %v1042
  %v1125 = vpop.f32.mrb[0].mxu0
  %v1126 = vadd.f32 0.0, %v1125
  %v1127 = vpop.f32.mrb[0].mxu0
  %v1128 = vadd.f32 0.0, %v1127
  %v1129 = vpop.f32.mrb[0].mxu0
  %v1130 = vpop.f32.mrb[0].mxu0
  %1131 = vdwg.mxu0
  %v1132 = vadd.f32 %v1046, %v1085
  %v1133 = vadd.f32 %v1047, %v1087
  %v1134 = vadd.f32 %v1048, %v1126
  %v1135 = vadd.f32 %v1049, %v1128
  %v1136 = vmul.f32 %v1132, 0.5
  %v1137 = vtanh.pop %v1136
  %v1138 = vmul.f32 %v1137, 0.5
  %v1139 = vadd.f32 %v1138, 0.5
  %v1140 = vmul.f32 %v1133, 0.5
  %v1141 = vtanh.pop %v1140
  %v1142 = vmul.f32 %v1141, 0.5
  %v1143 = vadd.f32 %v1142, 0.5
  %v1144 = vtanh.pop %v1134
  %v1145 = vmul.f32 %v1135, 0.5
  %v1146 = vtanh.pop %v1145
  %v1147 = vmul.f32 %v1146, 0.5
  %v1148 = vadd.f32 %v1147, 0.5
  %v1149 = vmul.f32 %v1143, %v1039
  %v1150 = vmul.f32 %v1139, %v1144
  %v1151 = vadd.f32 %v1149, %v1150
  %v1152 = vtanh.pop %v1151
  %v1153 = vmul.f32 %v1148, %v1152
  %v1154 = vpack.c.bf16 %v1153, %v1153
  %s1155 = scalar_lea.vmem %s4, 20
  %1156 = vst [vmem:[%s1155] sm:$0xf] %v1154
  %s1157 = scalar_lea.vmem [#allocation4], 192
  %v1158 = vld [vmem:[%s1157] sm:$0xff]
  %v1159 = vld [vmem:[%s1157 + $0x8] sm:$0xff]
  %v1160 = vld [vmem:[%s1157 + $0x10] sm:$0xff]
  %v1161 = vld [vmem:[%s1157 + $0x18] sm:$0xff]
  %1162 = vmatprep.subr.bf16.mxu0 %v428
  %1163 = vmatpush1.bf16.msra.mxu0 %v427
  %1164 = vmatprep.subr.bf16.mxu0 %v432
  %1165 = vmatpush1.bf16.msra.mxu0 %v431
  %1166 = vmatprep.subr.bf16.mxu0 %v436
  %1167 = vmatpush1.bf16.msra.mxu0 %v435
  %1168 = vmatprep.subr.bf16.mxu0 %v440
  %1169 = vmatpush1.bf16.msra.mxu0 %v439
  %1170 = vmatprep.subr.bf16.mxu0 %v444
  %1171 = vmatpush1.bf16.msra.mxu0 %v443
  %1172 = vmatprep.subr.bf16.mxu0 %v448
  %1173 = vmatpush1.bf16.msra.mxu0 %v447
  %1174 = vmatprep.subr.bf16.mxu0 %v452
  %1175 = vmatpush1.bf16.msra.mxu0 %v451
  %1176 = vmatprep.subr.bf16.mxu0 %v456
  %1177 = vmatpush1.bf16.msra.mxu0 %v455
  %1178 = vmatprep.subr.bf16.mxu0 0
  %1179 = vmatpush1.bf16.msra.mxu0 0
  %1180 = vmatprep.subr.bf16.mxu0 0
  %1181 = vmatpush1.bf16.msra.mxu0 0
  %1182 = vmatprep.subr.bf16.mxu0 0
  %1183 = vmatpush1.bf16.msra.mxu0 0
  %1184 = vmatprep.subr.bf16.mxu0 0
  %1185 = vmatpush1.bf16.msra.mxu0 0
  %1186 = vmatprep.subr.bf16.mxu0 0
  %1187 = vmatpush1.bf16.msra.mxu0 0
  %1188 = vmatprep.subr.bf16.mxu0 0
  %1189 = vmatpush1.bf16.msra.mxu0 0
  %1190 = vmatprep.subr.bf16.mxu0 0
  %1191 = vmatpush1.bf16.msra.mxu0 0
  %1192 = vmatprep.subr.bf16.mxu0 0
  %1193 = vmatpush1.bf16.msra.mxu0 0
  %1194 = vmatprep.mubr.bf16.mxu0 0
  %1195 = vmatmul.mubr.bf16.gmra.mrb[0].mxu0 %v1154
  %v1196 = vpop.f32.mrb[0].mxu0
  %v1197 = vadd.f32 0.0, %v1196
  %v1198 = vpop.f32.mrb[0].mxu0
  %v1199 = vadd.f32 0.0, %v1198
  %v1200 = vpop.f32.mrb[0].mxu0
  %v1201 = vpop.f32.mrb[0].mxu0
  %1202 = vdwg.mxu0
  %1203 = vmatprep.subr.bf16.mxu0 %v430
  %1204 = vmatpush1.bf16.msra.mxu0 %v429
  %1205 = vmatprep.subr.bf16.mxu0 %v434
  %1206 = vmatpush1.bf16.msra.mxu0 %v433
  %1207 = vmatprep.subr.bf16.mxu0 %v438
  %1208 = vmatpush1.bf16.msra.mxu0 %v437
  %1209 = vmatprep.subr.bf16.mxu0 %v442
  %1210 = vmatpush1.bf16.msra.mxu0 %v441
  %1211 = vmatprep.subr.bf16.mxu0 %v446
  %1212 = vmatpush1.bf16.msra.mxu0 %v445
  %1213 = vmatprep.subr.bf16.mxu0 %v450
  %1214 = vmatpush1.bf16.msra.mxu0 %v449
  %1215 = vmatprep.subr.bf16.mxu0 %v454
  %1216 = vmatpush1.bf16.msra.mxu0 %v453
  %1217 = vmatprep.subr.bf16.mxu0 %v458
  %1218 = vmatpush1.bf16.msra.mxu0 %v457
  %1219 = vmatprep.subr.bf16.mxu0 0
  %1220 = vmatpush1.bf16.msra.mxu0 0
  %1221 = vmatprep.subr.bf16.mxu0 0
  %1222 = vmatpush1.bf16.msra.mxu0 0
  %1223 = vmatprep.subr.bf16.mxu0 0
  %1224 = vmatpush1.bf16.msra.mxu0 0
  %1225 = vmatprep.subr.bf16.mxu0 0
  %1226 = vmatpush1.bf16.msra.mxu0 0
  %1227 = vmatprep.subr.bf16.mxu0 0
  %1228 = vmatpush1.bf16.msra.mxu0 0
  %1229 = vmatprep.subr.bf16.mxu0 0
  %1230 = vmatpush1.bf16.msra.mxu0 0
  %1231 = vmatprep.subr.bf16.mxu0 0
  %1232 = vmatpush1.bf16.msra.mxu0 0
  %1233 = vmatprep.subr.bf16.mxu0 0
  %1234 = vmatpush1.bf16.msra.mxu0 0
  %1235 = vmatprep.mubr.bf16.mxu0 0
  %1236 = vmatmul.mubr.bf16.gmra.mrb[0].mxu0 %v1154
  %v1237 = vpop.f32.mrb[0].mxu0
  %v1238 = vadd.f32 0.0, %v1237
  %v1239 = vpop.f32.mrb[0].mxu0
  %v1240 = vadd.f32 0.0, %v1239
  %v1241 = vpop.f32.mrb[0].mxu0
  %v1242 = vpop.f32.mrb[0].mxu0
  %1243 = vdwg.mxu0
  %v1244 = vadd.f32 %v1158, %v1197
  %v1245 = vadd.f32 %v1159, %v1199
  %v1246 = vadd.f32 %v1160, %v1238
  %v1247 = vadd.f32 %v1161, %v1240
  %v1248 = vmul.f32 %v1244, 0.5
  %v1249 = vtanh.pop %v1248
  %v1250 = vmul.f32 %v1249, 0.5
  %v1251 = vadd.f32 %v1250, 0.5
  %v1252 = vmul.f32 %v1245, 0.5
  %v1253 = vtanh.pop %v1252
  %v1254 = vmul.f32 %v1253, 0.5
  %v1255 = vadd.f32 %v1254, 0.5
  %v1256 = vtanh.pop %v1246
  %v1257 = vmul.f32 %v1247, 0.5
  %v1258 = vtanh.pop %v1257
  %v1259 = vmul.f32 %v1258, 0.5
  %v1260 = vadd.f32 %v1259, 0.5
  %v1261 = vmul.f32 %v1255, %v1151
  %v1262 = vmul.f32 %v1251, %v1256
  %v1263 = vadd.f32 %v1261, %v1262
  %v1264 = vtanh.pop %v1263
  %v1265 = vmul.f32 %v1260, %v1264
  %v1266 = vpack.c.bf16 %v1265, %v1265
  %s1267 = scalar_lea.vmem %s4, 24
  %1268 = vst [vmem:[%s1267] sm:$0xf] %v1266
  %s1269 = scalar_lea.vmem [#allocation4], 224
  %v1270 = vld [vmem:[%s1269] sm:$0xff]
  %v1271 = vld [vmem:[%s1269 + $0x8] sm:$0xff]
  %v1272 = vld [vmem:[%s1269 + $0x10] sm:$0xff]
  %v1273 = vld [vmem:[%s1269 + $0x18] sm:$0xff]
  %1274 = vmatprep.subr.bf16.mxu0 %v428
  %1275 = vmatpush1.bf16.msra.mxu0 %v427
  %1276 = vmatprep.subr.bf16.mxu0 %v432
  %1277 = vmatpush1.bf16.msra.mxu0 %v431
  %1278 = vmatprep.subr.bf16.mxu0 %v436
  %1279 = vmatpush1.bf16.msra.mxu0 %v435
  %1280 = vmatprep.subr.bf16.mxu0 %v440
  %1281 = vmatpush1.bf16.msra.mxu0 %v439
  %1282 = vmatprep.subr.bf16.mxu0 %v444
  %1283 = vmatpush1.bf16.msra.mxu0 %v443
  %1284 = vmatprep.subr.bf16.mxu0 %v448
  %1285 = vmatpush1.bf16.msra.mxu0 %v447
  %1286 = vmatprep.subr.bf16.mxu0 %v452
  %1287 = vmatpush1.bf16.msra.mxu0 %v451
  %1288 = vmatprep.subr.bf16.mxu0 %v456
  %1289 = vmatpush1.bf16.msra.mxu0 %v455
  %1290 = vmatprep.subr.bf16.mxu0 0
  %1291 = vmatpush1.bf16.msra.mxu0 0
  %1292 = vmatprep.subr.bf16.mxu0 0
  %1293 = vmatpush1.bf16.msra.mxu0 0
  %1294 = vmatprep.subr.bf16.mxu0 0
  %1295 = vmatpush1.bf16.msra.mxu0 0
  %1296 = vmatprep.subr.bf16.mxu0 0
  %1297 = vmatpush1.bf16.msra.mxu0 0
  %1298 = vmatprep.subr.bf16.mxu0 0
  %1299 = vmatpush1.bf16.msra.mxu0 0
  %1300 = vmatprep.subr.bf16.mxu0 0
  %1301 = vmatpush1.bf16.msra.mxu0 0
  %1302 = vmatprep.subr.bf16.mxu0 0
  %1303 = vmatpush1.bf16.msra.mxu0 0
  %1304 = vmatprep.subr.bf16.mxu0 0
  %1305 = vmatpush1.bf16.msra.mxu0 0
  %1306 = vmatprep.mubr.bf16.mxu0 0
  %1307 = vmatmul.mubr.bf16.gmra.mrb[0].mxu0 %v1266
  %v1308 = vpop.f32.mrb[0].mxu0
  %v1309 = vadd.f32 0.0, %v1308
  %v1310 = vpop.f32.mrb[0].mxu0
  %v1311 = vadd.f32 0.0, %v1310
  %v1312 = vpop.f32.mrb[0].mxu0
  %v1313 = vpop.f32.mrb[0].mxu0
  %1314 = vdwg.mxu0
  %1315 = vmatprep.subr.bf16.mxu0 %v430
  %1316 = vmatpush1.bf16.msra.mxu0 %v429
  %1317 = vmatprep.subr.bf16.mxu0 %v434
  %1318 = vmatpush1.bf16.msra.mxu0 %v433
  %1319 = vmatprep.subr.bf16.mxu0 %v438
  %1320 = vmatpush1.bf16.msra.mxu0 %v437
  %1321 = vmatprep.subr.bf16.mxu0 %v442
  %1322 = vmatpush1.bf16.msra.mxu0 %v441
  %1323 = vmatprep.subr.bf16.mxu0 %v446
  %1324 = vmatpush1.bf16.msra.mxu0 %v445
  %1325 = vmatprep.subr.bf16.mxu0 %v450
  %1326 = vmatpush1.bf16.msra.mxu0 %v449
  %1327 = vmatprep.subr.bf16.mxu0 %v454
  %1328 = vmatpush1.bf16.msra.mxu0 %v453
  %1329 = vmatprep.subr.bf16.mxu0 %v458
  %1330 = vmatpush1.bf16.msra.mxu0 %v457
  %1331 = vmatprep.subr.bf16.mxu0 0
  %1332 = vmatpush1.bf16.msra.mxu0 0
  %1333 = vmatprep.subr.bf16.mxu0 0
  %1334 = vmatpush1.bf16.msra.mxu0 0
  %1335 = vmatprep.subr.bf16.mxu0 0
  %1336 = vmatpush1.bf16.msra.mxu0 0
  %1337 = vmatprep.subr.bf16.mxu0 0
  %1338 = vmatpush1.bf16.msra.mxu0 0
  %1339 = vmatprep.subr.bf16.mxu0 0
  %1340 = vmatpush1.bf16.msra.mxu0 0
  %1341 = vmatprep.subr.bf16.mxu0 0
  %1342 = vmatpush1.bf16.msra.mxu0 0
  %1343 = vmatprep.subr.bf16.mxu0 0
  %1344 = vmatpush1.bf16.msra.mxu0 0
  %1345 = vmatprep.subr.bf16.mxu0 0
  %1346 = vmatpush1.bf16.msra.mxu0 0
  %1347 = vmatprep.mubr.bf16.mxu0 0
  %1348 = vmatmul.mubr.bf16.gmra.mrb[0].mxu0 %v1266
  %v1349 = vpop.f32.mrb[0].mxu0
  %v1350 = vadd.f32 0.0, %v1349
  %v1351 = vpop.f32.mrb[0].mxu0
  %v1352 = vadd.f32 0.0, %v1351
  %v1353 = vpop.f32.mrb[0].mxu0
  %v1354 = vpop.f32.mrb[0].mxu0
  %1355 = vdwg.mxu0
  %v1356 = vadd.f32 %v1270, %v1309
  %v1357 = vadd.f32 %v1271, %v1311
  %v1358 = vadd.f32 %v1272, %v1350
  %v1359 = vadd.f32 %v1273, %v1352
  %v1360 = vmul.f32 %v1356, 0.5
  %v1361 = vtanh.pop %v1360
  %v1362 = vmul.f32 %v1361, 0.5
  %v1363 = vadd.f32 %v1362, 0.5
  %v1364 = vmul.f32 %v1357, 0.5
  %v1365 = vtanh.pop %v1364
  %v1366 = vmul.f32 %v1365, 0.5
  %v1367 = vadd.f32 %v1366, 0.5
  %v1368 = vtanh.pop %v1358
  %v1369 = vmul.f32 %v1359, 0.5
  %v1370 = vtanh.pop %v1369
  %v1371 = vmul.f32 %v1370, 0.5
  %v1372 = vadd.f32 %v1371, 0.5
  %v1373 = vmul.f32 %v1367, %v1263
  %v1374 = vmul.f32 %v1363, %v1368
  %v1375 = vadd.f32 %v1373, %v1374
  %v1376 = vtanh.pop %v1375
  %v1377 = vmul.f32 %v1372, %v1376
  %v1378 = vpack.c.bf16 %v1377, %v1377
  %s1379 = scalar_lea.vmem %s4, 28
  %1380 = vst [vmem:[%s1379] sm:$0xf] %v1378
  %1381 = vst [vmem:[#allocation2] sm:$0xff] %v1377
  %1382 = vst [vmem:[#allocation3] sm:$0xff] %v1375
  // Predicated region
  $region22: #{encoder_forward.2} parent=0 // pred_check
    %p1383 = pneg %p21
  $region23: #{encoder_forward.2} parent=0 // pred_check_branch
    %1385 = sbr.rel (%p1383) target = $region25
  $region24: #{encoder_forward.2} parent=0 // pred_region
    %1386 = vst [vmem:[%s5] sm:$0xff] %v1377
    %1387 = vst [vmem:[%s6] sm:$0xff] %v1375
  $region25: #{encoder_forward.2} parent=0 // pred_fallthru
    _
  // Predicated region
  $region26: #{encoder_forward.2} parent=0 // pred_check
    _
  $region27: #{encoder_forward.2} parent=0 // pred_check_branch
    %1389 = sbr.rel (0) target = $region29
  $region28: #{encoder_forward.2} parent=0 // pred_region
    _
  $region29: #{encoder_forward.2} parent=0 // pred_fallthru
    _
  // Predicated region
  $region30: #{encoder_forward.2} parent=0 // pred_check
    _
  $region31: #{encoder_forward.2} parent=0 // pred_check_branch
    %1391 = sbr.rel (0) target = $region33
  $region32: #{encoder_forward.2} parent=0 // pred_region
    _
  $region33: #{encoder_forward.2} parent=0 // pred_fallthru
    _
  // Predicated region
  $region34: #{encoder_forward.2} parent=0 // pred_check
    _
  $region35: #{encoder_forward.2} parent=0 // pred_check_branch
    %1393 = sbr.rel (0) target = $region37
  $region36: #{encoder_forward.2} parent=0 // pred_region
    _
  $region37: #{encoder_forward.2} parent=0 // pred_fallthru
    _
  // Predicated region
  $region38: #{encoder_forward.2} parent=0 // pred_check
    _
  $region39: #{encoder_forward.2} parent=0 // pred_check_branch
    %1395 = sbr.rel (0) target = $region41
  $region40: #{encoder_forward.2} parent=0 // pred_region
    _
  $region41: #{encoder_forward.2} parent=0 // pred_fallthru
    _
  // Predicated region
  $region42: #{encoder_forward.2} parent=0 // pred_check
    _
  $region43: #{encoder_forward.2} parent=0 // pred_check_branch
    %1397 = sbr.rel (0) target = $region45
  $region44: #{encoder_forward.2} parent=0 // pred_region
    _
  $region45: #{encoder_forward.2} parent=0 // pred_fallthru
    _
  // Predicated region
  $region46: #{encoder_forward.2} parent=0 // pred_check
    _
  $region47: #{encoder_forward.2} parent=0 // pred_check_branch
    %1399 = sbr.rel (0) target = $region49
  $region48: #{encoder_forward.2} parent=0 // pred_region
    _
  $region49: #{encoder_forward.2} parent=0 // pred_fallthru
    _

// kernel: encoder_forward.3
$region0: #{encoder_forward.3}
  #allocation0 [shape = 'u32[]', space=smem, size = 0x4, offset = 0x4, fixed_abs, tag = 'smem constant byte address 0x4 - core index']
  #allocation1 [shape = 'u32[144,128]{1,0:T(1,128)}', space=vmem, size = 0x12000, scoped, tag = 'internal scratch']
  #allocation2 [shape = 'f32[8,128]{1,0:T(8,128)}', space=vmem, size = 0x1000, scoped, tag = 'scratch operand']
  #allocation3 [shape = 'f32[8,128]{1,0:T(8,128)}', space=vmem, size = 0x1000, scoped, tag = 'scratch operand']
  #allocation4 [shape = 'f32[8,8,512]{2,1,0:T(8,128)}', space=vmem, size = 0x20000, scoped, tag = 'scratch operand']
  %s0 = inlined_call_operand.vmem [shape: bf16[8,8,128], index: 0, kind: input, shape index: {}]
  %s1 = inlined_call_operand.vmem [shape: bf16[128,512], index: 1, kind: input, shape index: {}]
  %s2 = inlined_call_operand.vmem [shape: bf16[128,512], index: 2, kind: input, shape index: {}]
  %s3 = inlined_call_operand.vmem [shape: f32[1,512], index: 3, kind: input, shape index: {}]
  %s4 = inlined_call_operand.vmem [shape: f32[8,8,128], index: 4, kind: output, shape index: {0}]
  %s5 = inlined_call_operand.vmem [shape: f32[8,128], index: 5, kind: output, shape index: {1}]
  %s6 = inlined_call_operand.vmem [shape: f32[8,128], index: 6, kind: output, shape index: {2}]
  %7 = xla_tuple %s4, %s5, %s6
  %s8 = sld [smem:[#allocation0]]
  $region50: #{encoder_forward.3} parent=0
    _
  %s10 = ssub.s32 1, %s8
  %s11 = scalar_select 0, %s10, %s8
  // Predicated region
  $region2: #{encoder_forward.3} parent=0 // pred_check
    _
  $region3: #{encoder_forward.3} parent=0 // pred_check_branch
    %13 = sbr.rel (0) target = $region5
  $region4: #{encoder_forward.3} parent=0 // pred_region
    _
  $region5: #{encoder_forward.3} parent=0 // pred_fallthru
    _
  // Predicated region
  $region6: #{encoder_forward.3} parent=0 // pred_check
    _
  $region7: #{encoder_forward.3} parent=0 // pred_check_branch
    %15 = sbr.rel (0) target = $region9
  $region8: #{encoder_forward.3} parent=0 // pred_region
    _
  $region9: #{encoder_forward.3} parent=0 // pred_fallthru
    _
  // Predicated region
  $region10: #{encoder_forward.3} parent=0 // pred_check
    _
  $region11: #{encoder_forward.3} parent=0 // pred_check_branch
    %17 = sbr.rel (0) target = $region13
  $region12: #{encoder_forward.3} parent=0 // pred_region
    _
  $region13: #{encoder_forward.3} parent=0 // pred_fallthru
    _
  // Predicated region
  $region14: #{encoder_forward.3} parent=0 // pred_check
    _
  $region15: #{encoder_forward.3} parent=0 // pred_check_branch
    %19 = sbr.rel (0) target = $region17
  $region16: #{encoder_forward.3} parent=0 // pred_region
    _
  $region17: #{encoder_forward.3} parent=0 // pred_fallthru
    _
  %p21 = scmp.eq.s32.totalorder 0, 0
  // Predicated region
  $region18: #{encoder_forward.3} parent=0 // pred_check
    %p22 = pneg %p21
  $region19: #{encoder_forward.3} parent=0 // pred_check_branch
    %24 = sbr.rel (%p22) target = $region21
  $region20: #{encoder_forward.3} parent=0 // pred_region
    %25 = vst [vmem:[#allocation2] sm:$0xff] 0.0
    %26 = vst [vmem:[#allocation3] sm:$0xff] 0.0
  $region21: #{encoder_forward.3} parent=0 // pred_fallthru
    _
  %v27 = vld [vmem:[%s0] sm:$0xf]
  %v28 = vld [vmem:[%s0 + $0x4] sm:$0xf]
  %v29 = vld [vmem:[%s0 + $0x8] sm:$0xf]
  %v30 = vld [vmem:[%s0 + $0xc] sm:$0xf]
  %v31 = vld [vmem:[%s0 + $0x10] sm:$0xf]
  %v32 = vld [vmem:[%s0 + $0x14] sm:$0xf]
  %v33 = vld [vmem:[%s0 + $0x18] sm:$0xf]
  %v34 = vld [vmem:[%s0 + $0x1c] sm:$0xf]
  %v35 = vld [vmem:[%s1] sm:$0xff]
  %v36 = vld [vmem:[%s1 + $0x8] sm:$0xff]
  %v37 = vld [vmem:[%s1 + $0x10] sm:$0xff]
  %v38 = vld [vmem:[%s1 + $0x18] sm:$0xff]
  %v39 = vld [vmem:[%s1 + $0x20] sm:$0xff]
  %v40 = vld [vmem:[%s1 + $0x28] sm:$0xff]
  %v41 = vld [vmem:[%s1 + $0x30] sm:$0xff]
  %v42 = vld [vmem:[%s1 + $0x38] sm:$0xff]
  %v43 = vld [vmem:[%s1 + $0x40] sm:$0xff]
  %v44 = vld [vmem:[%s1 + $0x48] sm:$0xff]
  %v45 = vld [vmem:[%s1 + $0x50] sm:$0xff]
  %v46 = vld [vmem:[%s1 + $0x58] sm:$0xff]
  %v47 = vld [vmem:[%s1 + $0x60] sm:$0xff]
  %v48 = vld [vmem:[%s1 + $0x68] sm:$0xff]
  %v49 = vld [vmem:[%s1 + $0x70] sm:$0xff]
  %v50 = vld [vmem:[%s1 + $0x78] sm:$0xff]
  %v51 = vld [vmem:[%s1 + $0x80] sm:$0xff]
  %v52 = vld [vmem:[%s1 + $0x88] sm:$0xff]
  %v53 = vld [vmem:[%s1 + $0x90] sm:$0xff]
  %v54 = vld [vmem:[%s1 + $0x98] sm:$0xff]
  %v55 = vld [vmem:[%s1 + $0xa0] sm:$0xff]
  %v56 = vld [vmem:[%s1 + $0xa8] sm:$0xff]
  %v57 = vld [vmem:[%s1 + $0xb0] sm:$0xff]
  %v58 = vld [vmem:[%s1 + $0xb8] sm:$0xff]
  %v59 = vld [vmem:[%s1 + $0xc0] sm:$0xff]
  %v60 = vld [vmem:[%s1 + $0xc8] sm:$0xff]
  %v61 = vld [vmem:[%s1 + $0xd0] sm:$0xff]
  %v62 = vld [vmem:[%s1 + $0xd8] sm:$0xff]
  %v63 = vld [vmem:[%s1 + $0xe0] sm:$0xff]
  %v64 = vld [vmem:[%s1 + $0xe8] sm:$0xff]
  %v65 = vld [vmem:[%s1 + $0xf0] sm:$0xff]
  %v66 = vld [vmem:[%s1 + $0xf8] sm:$0xff]
  %v67 = vld [vmem:[%s3] sm:$0xf]
  %v69 = vlaneseq
  %v70 = vshrl.u32 %v69, 7
  %v71 = vsub.s32 0, %v70
  %v72 = vrot.slane %v67, %v71
  %v73 = vlaneseq
  %v74 = vshrl.u32 %v73, 7
  %v75 = vsub.s32 1, %v74
  %v76 = vrot.slane %v67, %v75
  %v77 = vlaneseq
  %v78 = vshrl.u32 %v77, 7
  %v79 = vsub.s32 2, %v78
  %v80 = vrot.slane %v67, %v79
  %v81 = vlaneseq
  %v82 = vshrl.u32 %v81, 7
  %v83 = vsub.s32 3, %v82
  %v84 = vrot.slane %v67, %v83
  %v97 = vunpack.c.l.b16 %v27
  %v98 = vunpack.c.l.b16 %v28
  %v99 = vunpack.c.l.b16 %v29
  %v100 = vunpack.c.l.b16 %v30
  %v101 = vunpack.c.l.b16 %v31
  %v102 = vunpack.c.l.b16 %v32
  %v103 = vunpack.c.l.b16 %v33
  %v104 = vunpack.c.l.b16 %v34
  %v105 = vpack.c.b16 %v98, %v97
  %v106 = vpack.c.b16 %v100, %v99
  %v107 = vpack.c.b16 %v102, %v101
  %v108 = vpack.c.b16 %v104, %v103
  %v145 = vunpack.c.l.b16 %v35
  %v146 = vunpack.c.h.b16 %v35
  %v147 = vunpack.c.l.b16 %v36
  %v148 = vunpack.c.h.b16 %v36
  %v149 = vunpack.c.l.b16 %v37
  %v150 = vunpack.c.h.b16 %v37
  %v151 = vunpack.c.l.b16 %v38
  %v152 = vunpack.c.h.b16 %v38
  %v153 = vunpack.c.l.b16 %v39
  %v154 = vunpack.c.h.b16 %v39
  %v155 = vunpack.c.l.b16 %v40
  %v156 = vunpack.c.h.b16 %v40
  %v157 = vunpack.c.l.b16 %v41
  %v158 = vunpack.c.h.b16 %v41
  %v159 = vunpack.c.l.b16 %v42
  %v160 = vunpack.c.h.b16 %v42
  %v161 = vunpack.c.l.b16 %v43
  %v162 = vunpack.c.h.b16 %v43
  %v163 = vunpack.c.l.b16 %v44
  %v164 = vunpack.c.h.b16 %v44
  %v165 = vunpack.c.l.b16 %v45
  %v166 = vunpack.c.h.b16 %v45
  %v167 = vunpack.c.l.b16 %v46
  %v168 = vunpack.c.h.b16 %v46
  %v169 = vunpack.c.l.b16 %v47
  %v170 = vunpack.c.h.b16 %v47
  %v171 = vunpack.c.l.b16 %v48
  %v172 = vunpack.c.h.b16 %v48
  %v173 = vunpack.c.l.b16 %v49
  %v174 = vunpack.c.h.b16 %v49
  %v175 = vunpack.c.l.b16 %v50
  %v176 = vunpack.c.h.b16 %v50
  %v177 = vunpack.c.l.b16 %v51
  %v178 = vunpack.c.h.b16 %v51
  %v179 = vunpack.c.l.b16 %v52
  %v180 = vunpack.c.h.b16 %v52
  %v181 = vunpack.c.l.b16 %v53
  %v182 = vunpack.c.h.b16 %v53
  %v183 = vunpack.c.l.b16 %v54
  %v184 = vunpack.c.h.b16 %v54
  %v185 = vunpack.c.l.b16 %v55
  %v186 = vunpack.c.h.b16 %v55
  %v187 = vunpack.c.l.b16 %v56
  %v188 = vunpack.c.h.b16 %v56
  %v189 = vunpack.c.l.b16 %v57
  %v190 = vunpack.c.h.b16 %v57
  %v191 = vunpack.c.l.b16 %v58
  %v192 = vunpack.c.h.b16 %v58
  %v193 = vunpack.c.l.b16 %v59
  %v194 = vunpack.c.h.b16 %v59
  %v195 = vunpack.c.l.b16 %v60
  %v196 = vunpack.c.h.b16 %v60
  %v197 = vunpack.c.l.b16 %v61
  %v198 = vunpack.c.h.b16 %v61
  %v199 = vunpack.c.l.b16 %v62
  %v200 = vunpack.c.h.b16 %v62
  %v201 = vunpack.c.l.b16 %v63
  %v202 = vunpack.c.h.b16 %v63
  %v203 = vunpack.c.l.b16 %v64
  %v204 = vunpack.c.h.b16 %v64
  %v205 = vunpack.c.l.b16 %v65
  %v206 = vunpack.c.h.b16 %v65
  %v207 = vunpack.c.l.b16 %v66
  %v208 = vunpack.c.h.b16 %v66
  %v209 = vpack.c.b16 %v149, %v145
  %v210 = vpack.c.b16 %v150, %v146
  %v211 = vpack.c.b16 %v151, %v147
  %v212 = vpack.c.b16 %v152, %v148
  %v213 = vpack.c.b16 %v157, %v153
  %v214 = vpack.c.b16 %v158, %v154
  %v215 = vpack.c.b16 %v159, %v155
  %v216 = vpack.c.b16 %v160, %v156
  %v217 = vpack.c.b16 %v165, %v161
  %v218 = vpack.c.b16 %v166, %v162
  %v219 = vpack.c.b16 %v167, %v163
  %v220 = vpack.c.b16 %v168, %v164
  %v221 = vpack.c.b16 %v173, %v169
  %v222 = vpack.c.b16 %v174, %v170
  %v223 = vpack.c.b16 %v175, %v171
  %v224 = vpack.c.b16 %v176, %v172
  %v225 = vpack.c.b16 %v181, %v177
  %v226 = vpack.c.b16 %v182, %v178
  %v227 = vpack.c.b16 %v183, %v179
  %v228 = vpack.c.b16 %v184, %v180
  %v229 = vpack.c.b16 %v189, %v185
  %v230 = vpack.c.b16 %v190, %v186
  %v231 = vpack.c.b16 %v191, %v187
  %v232 = vpack.c.b16 %v192, %v188
  %v233 = vpack.c.b16 %v197, %v193
  %v234 = vpack.c.b16 %v198, %v194
  %v235 = vpack.c.b16 %v199, %v195
  %v236 = vpack.c.b16 %v200, %v196
  %v237 = vpack.c.b16 %v205, %v201
  %v238 = vpack.c.b16 %v206, %v202
  %v239 = vpack.c.b16 %v207, %v203
  %v240 = vpack.c.b16 %v208, %v204
  %273 = vmatprep.subr.bf16.mxu0 %v210
  %274 = vmatpush1.bf16.msra.mxu0 %v209
  %275 = vmatprep.subr.bf16.mxu0 %v214
  %276 = vmatpush1.bf16.msra.mxu0 %v213
  %277 = vmatprep.subr.bf16.mxu0 %v218
  %278 = vmatpush1.bf16.msra.mxu0 %v217
  %279 = vmatprep.subr.bf16.mxu0 %v222
  %280 = vmatpush1.bf16.msra.mxu0 %v221
  %281 = vmatprep.subr.bf16.mxu0 %v226
  %282 = vmatpush1.bf16.msra.mxu0 %v225
  %283 = vmatprep.subr.bf16.mxu0 %v230
  %284 = vmatpush1.bf16.msra.mxu0 %v229
  %285 = vmatprep.subr.bf16.mxu0 %v234
  %286 = vmatpush1.bf16.msra.mxu0 %v233
  %287 = vmatprep.subr.bf16.mxu0 %v238
  %288 = vmatpush1.bf16.msra.mxu0 %v237
  %289 = vmatprep.subr.bf16.mxu0 0
  %290 = vmatpush1.bf16.msra.mxu0 0
  %291 = vmatprep.subr.bf16.mxu0 0
  %292 = vmatpush1.bf16.msra.mxu0 0
  %293 = vmatprep.subr.bf16.mxu0 0
  %294 = vmatpush1.bf16.msra.mxu0 0
  %295 = vmatprep.subr.bf16.mxu0 0
  %296 = vmatpush1.bf16.msra.mxu0 0
  %297 = vmatprep.subr.bf16.mxu0 0
  %298 = vmatpush1.bf16.msra.mxu0 0
  %299 = vmatprep.subr.bf16.mxu0 0
  %300 = vmatpush1.bf16.msra.mxu0 0
  %301 = vmatprep.subr.bf16.mxu0 0
  %302 = vmatpush1.bf16.msra.mxu0 0
  %303 = vmatprep.subr.bf16.mxu0 0
  %304 = vmatpush1.bf16.msra.mxu0 0
  %305 = vmatprep.mubr.bf16.mxu0 0
  %306 = vmatmul.mubr.bf16.gmra.mrb[0].mxu0 %v105
  %v307 = vpop.f32.mrb[0].mxu0
  %v308 = vadd.f32 %v72, %v307
  %v309 = vpop.f32.mrb[0].mxu0
  %v310 = vadd.f32 %v76, %v309
  %v311 = vpop.f32.mrb[0].mxu0
  %v312 = vadd.f32 %v72, %v311
  %v313 = vpop.f32.mrb[0].mxu0
  %v314 = vadd.f32 %v76, %v313
  %315 = vmatprep.mubr.bf16.mxu0 0
  %316 = vmatmul.mubr.bf16.gmra.mrb[0].mxu0 %v106
  %v317 = vpop.f32.mrb[0].mxu0
  %v318 = vadd.f32 %v72, %v317
  %v319 = vpop.f32.mrb[0].mxu0
  %v320 = vadd.f32 %v76, %v319
  %v321 = vpop.f32.mrb[0].mxu0
  %v322 = vadd.f32 %v72, %v321
  %v323 = vpop.f32.mrb[0].mxu0
  %v324 = vadd.f32 %v76, %v323
  %325 = vmatprep.mubr.bf16.mxu0 0
  %326 = vmatmul.mubr.bf16.gmra.mrb[0].mxu0 %v107
  %v327 = vpop.f32.mrb[0].mxu0
  %v328 = vadd.f32 %v72, %v327
  %v329 = vpop.f32.mrb[0].mxu0
  %v330 = vadd.f32 %v76, %v329
  %v331 = vpop.f32.mrb[0].mxu0
  %v332 = vadd.f32 %v72, %v331
  %v333 = vpop.f32.mrb[0].mxu0
  %v334 = vadd.f32 %v76, %v333
  %335 = vmatprep.mubr.bf16.mxu0 0
  %336 = vmatmul.mubr.bf16.gmra.mrb[0].mxu0 %v108
  %v337 = vpop.f32.mrb[0].mxu0
  %v338 = vadd.f32 %v72, %v337
  %v339 = vpop.f32.mrb[0].mxu0
  %v340 = vadd.f32 %v76, %v339
  %v341 = vpop.f32.mrb[0].mxu0
  %v342 = vadd.f32 %v72, %v341
  %v343 = vpop.f32.mrb[0].mxu0
  %v344 = vadd.f32 %v76, %v343
  %345 = vdwg.mxu0
  %346 = vmatprep.subr.bf16.mxu0 %v212
  %347 = vmatpush1.bf16.msra.mxu0 %v211
  %348 = vmatprep.subr.bf16.mxu0 %v216
  %349 = vmatpush1.bf16.msra.mxu0 %v215
  %350 = vmatprep.subr.bf16.mxu0 %v220
  %351 = vmatpush1.bf16.msra.mxu0 %v219
  %352 = vmatprep.subr.bf16.mxu0 %v224
  %353 = vmatpush1.bf16.msra.mxu0 %v223
  %354 = vmatprep.subr.bf16.mxu0 %v228
  %355 = vmatpush1.bf16.msra.mxu0 %v227
  %356 = vmatprep.subr.bf16.mxu0 %v232
  %357 = vmatpush1.bf16.msra.mxu0 %v231
  %358 = vmatprep.subr.bf16.mxu0 %v236
  %359 = vmatpush1.bf16.msra.mxu0 %v235
  %360 = vmatprep.subr.bf16.mxu0 %v240
  %361 = vmatpush1.bf16.msra.mxu0 %v239
  %362 = vmatprep.subr.bf16.mxu0 0
  %363 = vmatpush1.bf16.msra.mxu0 0
  %364 = vmatprep.subr.bf16.mxu0 0
  %365 = vmatpush1.bf16.msra.mxu0 0
  %366 = vmatprep.subr.bf16.mxu0 0
  %367 = vmatpush1.bf16.msra.mxu0 0
  %368 = vmatprep.subr.bf16.mxu0 0
  %369 = vmatpush1.bf16.msra.mxu0 0
  %370 = vmatprep.subr.bf16.mxu0 0
  %371 = vmatpush1.bf16.msra.mxu0 0
  %372 = vmatprep.subr.bf16.mxu0 0
  %373 = vmatpush1.bf16.msra.mxu0 0
  %374 = vmatprep.subr.bf16.mxu0 0
  %375 = vmatpush1.bf16.msra.mxu0 0
  %376 = vmatprep.subr.bf16.mxu0 0
  %377 = vmatpush1.bf16.msra.mxu0 0
  %378 = vmatprep.mubr.bf16.mxu0 0
  %379 = vmatmul.mubr.bf16.gmra.mrb[0].mxu0 %v105
  %v380 = vpop.f32.mrb[0].mxu0
  %v381 = vadd.f32 %v80, %v380
  %v382 = vpop.f32.mrb[0].mxu0
  %v383 = vadd.f32 %v84, %v382
  %v384 = vpop.f32.mrb[0].mxu0
  %v385 = vadd.f32 %v80, %v384
  %v386 = vpop.f32.mrb[0].mxu0
  %v387 = vadd.f32 %v84, %v386
  %388 = vmatprep.mubr.bf16.mxu0 0
  %389 = vmatmul.mubr.bf16.gmra.mrb[0].mxu0 %v106
  %v390 = vpop.f32.mrb[0].mxu0
  %v391 = vadd.f32 %v80, %v390
  %v392 = vpop.f32.mrb[0].mxu0
  %v393 = vadd.f32 %v84, %v392
  %v394 = vpop.f32.mrb[0].mxu0
  %v395 = vadd.f32 %v80, %v394
  %v396 = vpop.f32.mrb[0].mxu0
  %v397 = vadd.f32 %v84, %v396
  %398 = vmatprep.mubr.bf16.mxu0 0
  %399 = vmatmul.mubr.bf16.gmra.mrb[0].mxu0 %v107
  %v400 = vpop.f32.mrb[0].mxu0
  %v401 = vadd.f32 %v80, %v400
  %v402 = vpop.f32.mrb[0].mxu0
  %v403 = vadd.f32 %v84, %v402
  %v404 = vpop.f32.mrb[0].mxu0
  %v405 = vadd.f32 %v80, %v404
  %v406 = vpop.f32.mrb[0].mxu0
  %v407 = vadd.f32 %v84, %v406
  %408 = vmatprep.mubr.bf16.mxu0 0
  %409 = vmatmul.mubr.bf16.gmra.mrb[0].mxu0 %v108
  %v410 = vpop.f32.mrb[0].mxu0
  %v411 = vadd.f32 %v80, %v410
  %v412 = vpop.f32.mrb[0].mxu0
  %v413 = vadd.f32 %v84, %v412
  %v414 = vpop.f32.mrb[0].mxu0
  %v415 = vadd.f32 %v80, %v414
  %v416 = vpop.f32.mrb[0].mxu0
  %v417 = vadd.f32 %v84, %v416
  %418 = vdwg.mxu0
  %419 = vst [vmem:[#allocation4] sm:$0xff] %v308
  %420 = vst [vmem:[#allocation4 + $0x8] sm:$0xff] %v310
  %421 = vst [vmem:[#allocation4 + $0x10] sm:$0xff] %v381
  %422 = vst [vmem:[#allocation4 + $0x18] sm:$0xff] %v383
  %423 = vst [vmem:[#allocation4 + $0x20] sm:$0xff] %v312
  %424 = vst [vmem:[#allocation4 + $0x28] sm:$0xff] %v314
  %425 = vst [vmem:[#allocation4 + $0x30] sm:$0xff] %v385
  %426 = vst [vmem:[#allocation4 + $0x38] sm:$0xff] %v387
  %427 = vst [vmem:[#allocation4 + $0x40] sm:$0xff] %v318
  %428 = vst [vmem:[#allocation4 + $0x48] sm:$0xff] %v320
  %429 = vst [vmem:[#allocation4 + $0x50] sm:$0xff] %v391
  %430 = vst [vmem:[#allocation4 + $0x58] sm:$0xff] %v393
  %431 = vst [vmem:[#allocation4 + $0x60] sm:$0xff] %v322
  %432 = vst [vmem:[#allocation4 + $0x68] sm:$0xff] %v324
  %433 = vst [vmem:[#allocation4 + $0x70] sm:$0xff] %v395
  %434 = vst [vmem:[#allocation4 + $0x78] sm:$0xff] %v397
  %435 = vst [vmem:[#allocation4 + $0x80] sm:$0xff] %v328
  %436 = vst [vmem:[#allocation4 + $0x88] sm:$0xff] %v330
  %437 = vst [vmem:[#allocation4 + $0x90] sm:$0xff] %v401
  %438 = vst [vmem:[#allocation4 + $0x98] sm:$0xff] %v403
  %439 = vst [vmem:[#allocation4 + $0xa0] sm:$0xff] %v332
  %440 = vst [vmem:[#allocation4 + $0xa8] sm:$0xff] %v334
  %441 = vst [vmem:[#allocation4 + $0xb0] sm:$0xff] %v405
  %442 = vst [vmem:[#allocation4 + $0xb8] sm:$0xff] %v407
  %443 = vst [vmem:[#allocation4 + $0xc0] sm:$0xff] %v338
  %444 = vst [vmem:[#allocation4 + $0xc8] sm:$0xff] %v340
  %445 = vst [vmem:[#allocation4 + $0xd0] sm:$0xff] %v411
  %446 = vst [vmem:[#allocation4 + $0xd8] sm:$0xff] %v413
  %447 = vst [vmem:[#allocation4 + $0xe0] sm:$0xff] %v342
  %448 = vst [vmem:[#allocation4 + $0xe8] sm:$0xff] %v344
  %449 = vst [vmem:[#allocation4 + $0xf0] sm:$0xff] %v415
  %450 = vst [vmem:[#allocation4 + $0xf8] sm:$0xff] %v417
  %v451 = vld [vmem:[%s2] sm:$0xff]
  %v452 = vld [vmem:[%s2 + $0x8] sm:$0xff]
  %v453 = vld [vmem:[%s2 + $0x10] sm:$0xff]
  %v454 = vld [vmem:[%s2 + $0x18] sm:$0xff]
  %v455 = vld [vmem:[%s2 + $0x20] sm:$0xff]
  %v456 = vld [vmem:[%s2 + $0x28] sm:$0xff]
  %v457 = vld [vmem:[%s2 + $0x30] sm:$0xff]
  %v458 = vld [vmem:[%s2 + $0x38] sm:$0xff]
  %v459 = vld [vmem:[%s2 + $0x40] sm:$0xff]
  %v460 = vld [vmem:[%s2 + $0x48] sm:$0xff]
  %v461 = vld [vmem:[%s2 + $0x50] sm:$0xff]
  %v462 = vld [vmem:[%s2 + $0x58] sm:$0xff]
  %v463 = vld [vmem:[%s2 + $0x60] sm:$0xff]
  %v464 = vld [vmem:[%s2 + $0x68] sm:$0xff]
  %v465 = vld [vmem:[%s2 + $0x70] sm:$0xff]
  %v466 = vld [vmem:[%s2 + $0x78] sm:$0xff]
  %v467 = vld [vmem:[%s2 + $0x80] sm:$0xff]
  %v468 = vld [vmem:[%s2 + $0x88] sm:$0xff]
  %v469 = vld [vmem:[%s2 + $0x90] sm:$0xff]
  %v470 = vld [vmem:[%s2 + $0x98] sm:$0xff]
  %v471 = vld [vmem:[%s2 + $0xa0] sm:$0xff]
  %v472 = vld [vmem:[%s2 + $0xa8] sm:$0xff]
  %v473 = vld [vmem:[%s2 + $0xb0] sm:$0xff]
  %v474 = vld [vmem:[%s2 + $0xb8] sm:$0xff]
  %v475 = vld [vmem:[%s2 + $0xc0] sm:$0xff]
  %v476 = vld [vmem:[%s2 + $0xc8] sm:$0xff]
  %v477 = vld [vmem:[%s2 + $0xd0] sm:$0xff]
  %v478 = vld [vmem:[%s2 + $0xd8] sm:$0xff]
  %v479 = vld [vmem:[%s2 + $0xe0] sm:$0xff]
  %v480 = vld [vmem:[%s2 + $0xe8] sm:$0xff]
  %v481 = vld [vmem:[%s2 + $0xf0] sm:$0xff]
  %v482 = vld [vmem:[%s2 + $0xf8] sm:$0xff]
  %v483 = vld [vmem:[#allocation2] sm:$0xff]
  %v484 = vld [vmem:[#allocation3] sm:$0xff]
  %v485 = vld [vmem:[#allocation4] sm:$0xff]
  %v486 = vld [vmem:[#allocation4 + $0x8] sm:$0xff]
  %v487 = vld [vmem:[#allocation4 + $0x10] sm:$0xff]
  %v488 = vld [vmem:[#allocation4 + $0x18] sm:$0xff]
  %v489 = vpack.c.bf16 %v483, %v483
  %v522 = vunpack.c.l.b16 %v451
  %v523 = vunpack.c.h.b16 %v451
  %v524 = vunpack.c.l.b16 %v452
  %v525 = vunpack.c.h.b16 %v452
  %v526 = vunpack.c.l.b16 %v453
  %v527 = vunpack.c.h.b16 %v453
  %v528 = vunpack.c.l.b16 %v454
  %v529 = vunpack.c.h.b16 %v454
  %v530 = vunpack.c.l.b16 %v455
  %v531 = vunpack.c.h.b16 %v455
  %v532 = vunpack.c.l.b16 %v456
  %v533 = vunpack.c.h.b16 %v456
  %v534 = vunpack.c.l.b16 %v457
  %v535 = vunpack.c.h.b16 %v457
  %v536 = vunpack.c.l.b16 %v458
  %v537 = vunpack.c.h.b16 %v458
  %v538 = vunpack.c.l.b16 %v459
  %v539 = vunpack.c.h.b16 %v459
  %v540 = vunpack.c.l.b16 %v460
  %v541 = vunpack.c.h.b16 %v460
  %v542 = vunpack.c.l.b16 %v461
  %v543 = vunpack.c.h.b16 %v461
  %v544 = vunpack.c.l.b16 %v462
  %v545 = vunpack.c.h.b16 %v462
  %v546 = vunpack.c.l.b16 %v463
  %v547 = vunpack.c.h.b16 %v463
  %v548 = vunpack.c.l.b16 %v464
  %v549 = vunpack.c.h.b16 %v464
  %v550 = vunpack.c.l.b16 %v465
  %v551 = vunpack.c.h.b16 %v465
  %v552 = vunpack.c.l.b16 %v466
  %v553 = vunpack.c.h.b16 %v466
  %v554 = vunpack.c.l.b16 %v467
  %v555 = vunpack.c.h.b16 %v467
  %v556 = vunpack.c.l.b16 %v468
  %v557 = vunpack.c.h.b16 %v468
  %v558 = vunpack.c.l.b16 %v469
  %v559 = vunpack.c.h.b16 %v469
  %v560 = vunpack.c.l.b16 %v470
  %v561 = vunpack.c.h.b16 %v470
  %v562 = vunpack.c.l.b16 %v471
  %v563 = vunpack.c.h.b16 %v471
  %v564 = vunpack.c.l.b16 %v472
  %v565 = vunpack.c.h.b16 %v472
  %v566 = vunpack.c.l.b16 %v473
  %v567 = vunpack.c.h.b16 %v473
  %v568 = vunpack.c.l.b16 %v474
  %v569 = vunpack.c.h.b16 %v474
  %v570 = vunpack.c.l.b16 %v475
  %v571 = vunpack.c.h.b16 %v475
  %v572 = vunpack.c.l.b16 %v476
  %v573 = vunpack.c.h.b16 %v476
  %v574 = vunpack.c.l.b16 %v477
  %v575 = vunpack.c.h.b16 %v477
  %v576 = vunpack.c.l.b16 %v478
  %v577 = vunpack.c.h.b16 %v478
  %v578 = vunpack.c.l.b16 %v479
  %v579 = vunpack.c.h.b16 %v479
  %v580 = vunpack.c.l.b16 %v480
  %v581 = vunpack.c.h.b16 %v480
  %v582 = vunpack.c.l.b16 %v481
  %v583 = vunpack.c.h.b16 %v481
  %v584 = vunpack.c.l.b16 %v482
  %v585 = vunpack.c.h.b16 %v482
  %v586 = vpack.c.b16 %v526, %v522
  %v587 = vpack.c.b16 %v527, %v523
  %v588 = vpack.c.b16 %v528, %v524
  %v589 = vpack.c.b16 %v529, %v525
  %v590 = vpack.c.b16 %v534, %v530
  %v591 = vpack.c.b16 %v535, %v531
  %v592 = vpack.c.b16 %v536, %v532
  %v593 = vpack.c.b16 %v537, %v533
  %v594 = vpack.c.b16 %v542, %v538
  %v595 = vpack.c.b16 %v543, %v539
  %v596 = vpack.c.b16 %v544, %v540
  %v597 = vpack.c.b16 %v545, %v541
  %v598 = vpack.c.b16 %v550, %v546
  %v599 = vpack.c.b16 %v551, %v547
  %v600 = vpack.c.b16 %v552, %v548
  %v601 = vpack.c.b16 %v553, %v549
  %v602 = vpack.c.b16 %v558, %v554
  %v603 = vpack.c.b16 %v559, %v555
  %v604 = vpack.c.b16 %v560, %v556
  %v605 = vpack.c.b16 %v561, %v557
  %v606 = vpack.c.b16 %v566, %v562
  %v607 = vpack.c.b16 %v567, %v563
  %v608 = vpack.c.b16 %v568, %v564
  %v609 = vpack.c.b16 %v569, %v565
  %v610 = vpack.c.b16 %v574, %v570
  %v611 = vpack.c.b16 %v575, %v571
  %v612 = vpack.c.b16 %v576, %v572
  %v613 = vpack.c.b16 %v577, %v573
  %v614 = vpack.c.b16 %v582, %v578
  %v615 = vpack.c.b16 %v583, %v579
  %v616 = vpack.c.b16 %v584, %v580
  %v617 = vpack.c.b16 %v585, %v581
  %650 = vmatprep.subr.bf16.mxu0 %v587
  %651 = vmatpush1.bf16.msra.mxu0 %v586
  %652 = vmatprep.subr.bf16.mxu0 %v591
  %653 = vmatpush1.bf16.msra.mxu0 %v590
  %654 = vmatprep.subr.bf16.mxu0 %v595
  %655 = vmatpush1.bf16.msra.mxu0 %v594
  %656 = vmatprep.subr.bf16.mxu0 %v599
  %657 = vmatpush1.bf16.msra.mxu0 %v598
  %658 = vmatprep.subr.bf16.mxu0 %v603
  %659 = vmatpush1.bf16.msra.mxu0 %v602
  %660 = vmatprep.subr.bf16.mxu0 %v607
  %661 = vmatpush1.bf16.msra.mxu0 %v606
  %662 = vmatprep.subr.bf16.mxu0 %v611
  %663 = vmatpush1.bf16.msra.mxu0 %v610
  %664 = vmatprep.subr.bf16.mxu0 %v615
  %665 = vmatpush1.bf16.msra.mxu0 %v614
  %666 = vmatprep.subr.bf16.mxu0 0
  %667 = vmatpush1.bf16.msra.mxu0 0
  %668 = vmatprep.subr.bf16.mxu0 0
  %669 = vmatpush1.bf16.msra.mxu0 0
  %670 = vmatprep.subr.bf16.mxu0 0
  %671 = vmatpush1.bf16.msra.mxu0 0
  %672 = vmatprep.subr.bf16.mxu0 0
  %673 = vmatpush1.bf16.msra.mxu0 0
  %674 = vmatprep.subr.bf16.mxu0 0
  %675 = vmatpush1.bf16.msra.mxu0 0
  %676 = vmatprep.subr.bf16.mxu0 0
  %677 = vmatpush1.bf16.msra.mxu0 0
  %678 = vmatprep.subr.bf16.mxu0 0
  %679 = vmatpush1.bf16.msra.mxu0 0
  %680 = vmatprep.subr.bf16.mxu0 0
  %681 = vmatpush1.bf16.msra.mxu0 0
  %682 = vmatprep.mubr.bf16.mxu0 0
  %683 = vmatmul.mubr.bf16.gmra.mrb[0].mxu0 %v489
  %v684 = vpop.f32.mrb[0].mxu0
  %v685 = vadd.f32 0.0, %v684
  %v686 = vpop.f32.mrb[0].mxu0
  %v687 = vadd.f32 0.0, %v686
  %v688 = vpop.f32.mrb[0].mxu0
  %v689 = vpop.f32.mrb[0].mxu0
  %690 = vdwg.mxu0
  %691 = vmatprep.subr.bf16.mxu0 %v589
  %692 = vmatpush1.bf16.msra.mxu0 %v588
  %693 = vmatprep.subr.bf16.mxu0 %v593
  %694 = vmatpush1.bf16.msra.mxu0 %v592
  %695 = vmatprep.subr.bf16.mxu0 %v597
  %696 = vmatpush1.bf16.msra.mxu0 %v596
  %697 = vmatprep.subr.bf16.mxu0 %v601
  %698 = vmatpush1.bf16.msra.mxu0 %v600
  %699 = vmatprep.subr.bf16.mxu0 %v605
  %700 = vmatpush1.bf16.msra.mxu0 %v604
  %701 = vmatprep.subr.bf16.mxu0 %v609
  %702 = vmatpush1.bf16.msra.mxu0 %v608
  %703 = vmatprep.subr.bf16.mxu0 %v613
  %704 = vmatpush1.bf16.msra.mxu0 %v612
  %705 = vmatprep.subr.bf16.mxu0 %v617
  %706 = vmatpush1.bf16.msra.mxu0 %v616
  %707 = vmatprep.subr.bf16.mxu0 0
  %708 = vmatpush1.bf16.msra.mxu0 0
  %709 = vmatprep.subr.bf16.mxu0 0
  %710 = vmatpush1.bf16.msra.mxu0 0
  %711 = vmatprep.subr.bf16.mxu0 0
  %712 = vmatpush1.bf16.msra.mxu0 0
  %713 = vmatprep.subr.bf16.mxu0 0
  %714 = vmatpush1.bf16.msra.mxu0 0
  %715 = vmatprep.subr.bf16.mxu0 0
  %716 = vmatpush1.bf16.msra.mxu0 0
  %717 = vmatprep.subr.bf16.mxu0 0
  %718 = vmatpush1.bf16.msra.mxu0 0
  %719 = vmatprep.subr.bf16.mxu0 0
  %720 = vmatpush1.bf16.msra.mxu0 0
  %721 = vmatprep.subr.bf16.mxu0 0
  %722 = vmatpush1.bf16.msra.mxu0 0
  %723 = vmatprep.mubr.bf16.mxu0 0
  %724 = vmatmul.mubr.bf16.gmra.mrb[0].mxu0 %v489
  %v725 = vpop.f32.mrb[0].mxu0
  %v726 = vadd.f32 0.0, %v725
  %v727 = vpop.f32.mrb[0].mxu0
  %v728 = vadd.f32 0.0, %v727
  %v729 = vpop.f32.mrb[0].mxu0
  %v730 = vpop.f32.mrb[0].mxu0
  %731 = vdwg.mxu0
  %v732 = vadd.f32 %v485, %v685
  %v733 = vadd.f32 %v486, %v687
  %v734 = vadd.f32 %v487, %v726
  %v735 = vadd.f32 %v488, %v728
  %v736 = vmul.f32 %v732, 0.5
  %v737 = vtanh.pop %v736
  %v738 = vmul.f32 %v737, 0.5
  %v739 = vadd.f32 %v738, 0.5
  %v740 = vmul.f32 %v733, 0.5
  %v741 = vtanh.pop %v740
  %v742 = vmul.f32 %v741, 0.5
  %v743 = vadd.f32 %v742, 0.5
  %v744 = vtanh.pop %v734
  %v745 = vmul.f32 %v735, 0.5
  %v746 = vtanh.pop %v745
  %v747 = vmul.f32 %v746, 0.5
  %v748 = vadd.f32 %v747, 0.5
  %v749 = vmul.f32 %v743, %v484
  %v750 = vmul.f32 %v739, %v744
  %v751 = vadd.f32 %v749, %v750
  %v752 = vtanh.pop %v751
  %v753 = vmul.f32 %v748, %v752
  %754 = vst [vmem:[%s4] sm:$0xff] %v753
  %s755 = scalar_lea.vmem [#allocation4], 32
  %v756 = vld [vmem:[%s755] sm:$0xff]
  %v757 = vld [vmem:[%s755 + $0x8] sm:$0xff]
  %v758 = vld [vmem:[%s755 + $0x10] sm:$0xff]
  %v759 = vld [vmem:[%s755 + $0x18] sm:$0xff]
  %v760 = vpack.c.bf16 %v753, %v753
  %761 = vmatprep.subr.bf16.mxu0 %v587
  %762 = vmatpush1.bf16.msra.mxu0 %v586
  %763 = vmatprep.subr.bf16.mxu0 %v591
  %764 = vmatpush1.bf16.msra.mxu0 %v590
  %765 = vmatprep.subr.bf16.mxu0 %v595
  %766 = vmatpush1.bf16.msra.mxu0 %v594
  %767 = vmatprep.subr.bf16.mxu0 %v599
  %768 = vmatpush1.bf16.msra.mxu0 %v598
  %769 = vmatprep.subr.bf16.mxu0 %v603
  %770 = vmatpush1.bf16.msra.mxu0 %v602
  %771 = vmatprep.subr.bf16.mxu0 %v607
  %772 = vmatpush1.bf16.msra.mxu0 %v606
  %773 = vmatprep.subr.bf16.mxu0 %v611
  %774 = vmatpush1.bf16.msra.mxu0 %v610
  %775 = vmatprep.subr.bf16.mxu0 %v615
  %776 = vmatpush1.bf16.msra.mxu0 %v614
  %777 = vmatprep.subr.bf16.mxu0 0
  %778 = vmatpush1.bf16.msra.mxu0 0
  %779 = vmatprep.subr.bf16.mxu0 0
  %780 = vmatpush1.bf16.msra.mxu0 0
  %781 = vmatprep.subr.bf16.mxu0 0
  %782 = vmatpush1.bf16.msra.mxu0 0
  %783 = vmatprep.subr.bf16.mxu0 0
  %784 = vmatpush1.bf16.msra.mxu0 0
  %785 = vmatprep.subr.bf16.mxu0 0
  %786 = vmatpush1.bf16.msra.mxu0 0
  %787 = vmatprep.subr.bf16.mxu0 0
  %788 = vmatpush1.bf16.msra.mxu0 0
  %789 = vmatprep.subr.bf16.mxu0 0
  %790 = vmatpush1.bf16.msra.mxu0 0
  %791 = vmatprep.subr.bf16.mxu0 0
  %792 = vmatpush1.bf16.msra.mxu0 0
  %793 = vmatprep.mubr.bf16.mxu0 0
  %794 = vmatmul.mubr.bf16.gmra.mrb[0].mxu0 %v760
  %v795 = vpop.f32.mrb[0].mxu0
  %v796 = vadd.f32 0.0, %v795
  %v797 = vpop.f32.mrb[0].mxu0
  %v798 = vadd.f32 0.0, %v797
  %v799 = vpop.f32.mrb[0].mxu0
  %v800 = vpop.f32.mrb[0].mxu0
  %801 = vdwg.mxu0
  %802 = vmatprep.subr.bf16.mxu0 %v589
  %803 = vmatpush1.bf16.msra.mxu0 %v588
  %804 = vmatprep.subr.bf16.mxu0 %v593
  %805 = vmatpush1.bf16.msra.mxu0 %v592
  %806 = vmatprep.subr.bf16.mxu0 %v597
  %807 = vmatpush1.bf16.msra.mxu0 %v596
  %808 = vmatprep.subr.bf16.mxu0 %v601
  %809 = vmatpush1.bf16.msra.mxu0 %v600
  %810 = vmatprep.subr.bf16.mxu0 %v605
  %811 = vmatpush1.bf16.msra.mxu0 %v604
  %812 = vmatprep.subr.bf16.mxu0 %v609
  %813 = vmatpush1.bf16.msra.mxu0 %v608
  %814 = vmatprep.subr.bf16.mxu0 %v613
  %815 = vmatpush1.bf16.msra.mxu0 %v612
  %816 = vmatprep.subr.bf16.mxu0 %v617
  %817 = vmatpush1.bf16.msra.mxu0 %v616
  %818 = vmatprep.subr.bf16.mxu0 0
  %819 = vmatpush1.bf16.msra.mxu0 0
  %820 = vmatprep.subr.bf16.mxu0 0
  %821 = vmatpush1.bf16.msra.mxu0 0
  %822 = vmatprep.subr.bf16.mxu0 0
  %823 = vmatpush1.bf16.msra.mxu0 0
  %824 = vmatprep.subr.bf16.mxu0 0
  %825 = vmatpush1.bf16.msra.mxu0 0
  %826 = vmatprep.subr.bf16.mxu0 0
  %827 = vmatpush1.bf16.msra.mxu0 0
  %828 = vmatprep.subr.bf16.mxu0 0
  %829 = vmatpush1.bf16.msra.mxu0 0
  %830 = vmatprep.subr.bf16.mxu0 0
  %831 = vmatpush1.bf16.msra.mxu0 0
  %832 = vmatprep.subr.bf16.mxu0 0
  %833 = vmatpush1.bf16.msra.mxu0 0
  %834 = vmatprep.mubr.bf16.mxu0 0
  %835 = vmatmul.mubr.bf16.gmra.mrb[0].mxu0 %v760
  %v836 = vpop.f32.mrb[0].mxu0
  %v837 = vadd.f32 0.0, %v836
  %v838 = vpop.f32.mrb[0].mxu0
  %v839 = vadd.f32 0.0, %v838
  %v840 = vpop.f32.mrb[0].mxu0
  %v841 = vpop.f32.mrb[0].mxu0
  %842 = vdwg.mxu0
  %v843 = vadd.f32 %v756, %v796
  %v844 = vadd.f32 %v757, %v798
  %v845 = vadd.f32 %v758, %v837
  %v846 = vadd.f32 %v759, %v839
  %v847 = vmul.f32 %v843, 0.5
  %v848 = vtanh.pop %v847
  %v849 = vmul.f32 %v848, 0.5
  %v850 = vadd.f32 %v849, 0.5
  %v851 = vmul.f32 %v844, 0.5
  %v852 = vtanh.pop %v851
  %v853 = vmul.f32 %v852, 0.5
  %v854 = vadd.f32 %v853, 0.5
  %v855 = vtanh.pop %v845
  %v856 = vmul.f32 %v846, 0.5
  %v857 = vtanh.pop %v856
  %v858 = vmul.f32 %v857, 0.5
  %v859 = vadd.f32 %v858, 0.5
  %v860 = vmul.f32 %v854, %v751
  %v861 = vmul.f32 %v850, %v855
  %v862 = vadd.f32 %v860, %v861
  %v863 = vtanh.pop %v862
  %v864 = vmul.f32 %v859, %v863
  %s865 = scalar_lea.vmem %s4, 8
  %866 = vst [vmem:[%s865] sm:$0xff] %v864
  %s867 = scalar_lea.vmem [#allocation4], 64
  %v868 = vld [vmem:[%s867] sm:$0xff]
  %v869 = vld [vmem:[%s867 + $0x8] sm:$0xff]
  %v870 = vld [vmem:[%s867 + $0x10] sm:$0xff]
  %v871 = vld [vmem:[%s867 + $0x18] sm:$0xff]
  %v872 = vpack.c.bf16 %v864, %v864
  %873 = vmatprep.subr.bf16.mxu0 %v587
  %874 = vmatpush1.bf16.msra.mxu0 %v586
  %875 = vmatprep.subr.bf16.mxu0 %v591
  %876 = vmatpush1.bf16.msra.mxu0 %v590
  %877 = vmatprep.subr.bf16.mxu0 %v595
  %878 = vmatpush1.bf16.msra.mxu0 %v594
  %879 = vmatprep.subr.bf16.mxu0 %v599
  %880 = vmatpush1.bf16.msra.mxu0 %v598
  %881 = vmatprep.subr.bf16.mxu0 %v603
  %882 = vmatpush1.bf16.msra.mxu0 %v602
  %883 = vmatprep.subr.bf16.mxu0 %v607
  %884 = vmatpush1.bf16.msra.mxu0 %v606
  %885 = vmatprep.subr.bf16.mxu0 %v611
  %886 = vmatpush1.bf16.msra.mxu0 %v610
  %887 = vmatprep.subr.bf16.mxu0 %v615
  %888 = vmatpush1.bf16.msra.mxu0 %v614
  %889 = vmatprep.subr.bf16.mxu0 0
  %890 = vmatpush1.bf16.msra.mxu0 0
  %891 = vmatprep.subr.bf16.mxu0 0
  %892 = vmatpush1.bf16.msra.mxu0 0
  %893 = vmatprep.subr.bf16.mxu0 0
  %894 = vmatpush1.bf16.msra.mxu0 0
  %895 = vmatprep.subr.bf16.mxu0 0
  %896 = vmatpush1.bf16.msra.mxu0 0
  %897 = vmatprep.subr.bf16.mxu0 0
  %898 = vmatpush1.bf16.msra.mxu0 0
  %899 = vmatprep.subr.bf16.mxu0 0
  %900 = vmatpush1.bf16.msra.mxu0 0
  %901 = vmatprep.subr.bf16.mxu0 0
  %902 = vmatpush1.bf16.msra.mxu0 0
  %903 = vmatprep.subr.bf16.mxu0 0
  %904 = vmatpush1.bf16.msra.mxu0 0
  %905 = vmatprep.mubr.bf16.mxu0 0
  %906 = vmatmul.mubr.bf16.gmra.mrb[0].mxu0 %v872
  %v907 = vpop.f32.mrb[0].mxu0
  %v908 = vadd.f32 0.0, %v907
  %v909 = vpop.f32.mrb[0].mxu0
  %v910 = vadd.f32 0.0, %v909
  %v911 = vpop.f32.mrb[0].mxu0
  %v912 = vpop.f32.mrb[0].mxu0
  %913 = vdwg.mxu0
  %914 = vmatprep.subr.bf16.mxu0 %v589
  %915 = vmatpush1.bf16.msra.mxu0 %v588
  %916 = vmatprep.subr.bf16.mxu0 %v593
  %917 = vmatpush1.bf16.msra.mxu0 %v592
  %918 = vmatprep.subr.bf16.mxu0 %v597
  %919 = vmatpush1.bf16.msra.mxu0 %v596
  %920 = vmatprep.subr.bf16.mxu0 %v601
  %921 = vmatpush1.bf16.msra.mxu0 %v600
  %922 = vmatprep.subr.bf16.mxu0 %v605
  %923 = vmatpush1.bf16.msra.mxu0 %v604
  %924 = vmatprep.subr.bf16.mxu0 %v609
  %925 = vmatpush1.bf16.msra.mxu0 %v608
  %926 = vmatprep.subr.bf16.mxu0 %v613
  %927 = vmatpush1.bf16.msra.mxu0 %v612
  %928 = vmatprep.subr.bf16.mxu0 %v617
  %929 = vmatpush1.bf16.msra.mxu0 %v616
  %930 = vmatprep.subr.bf16.mxu0 0
  %931 = vmatpush1.bf16.msra.mxu0 0
  %932 = vmatprep.subr.bf16.mxu0 0
  %933 = vmatpush1.bf16.msra.mxu0 0
  %934 = vmatprep.subr.bf16.mxu0 0
  %935 = vmatpush1.bf16.msra.mxu0 0
  %936 = vmatprep.subr.bf16.mxu0 0
  %937 = vmatpush1.bf16.msra.mxu0 0
  %938 = vmatprep.subr.bf16.mxu0 0
  %939 = vmatpush1.bf16.msra.mxu0 0
  %940 = vmatprep.subr.bf16.mxu0 0
  %941 = vmatpush1.bf16.msra.mxu0 0
  %942 = vmatprep.subr.bf16.mxu0 0
  %943 = vmatpush1.bf16.msra.mxu0 0
  %944 = vmatprep.subr.bf16.mxu0 0
  %945 = vmatpush1.bf16.msra.mxu0 0
  %946 = vmatprep.mubr.bf16.mxu0 0
  %947 = vmatmul.mubr.bf16.gmra.mrb[0].mxu0 %v872
  %v948 = vpop.f32.mrb[0].mxu0
  %v949 = vadd.f32 0.0, %v948
  %v950 = vpop.f32.mrb[0].mxu0
  %v951 = vadd.f32 0.0, %v950
  %v952 = vpop.f32.mrb[0].mxu0
  %v953 = vpop.f32.mrb[0].mxu0
  %954 = vdwg.mxu0
  %v955 = vadd.f32 %v868, %v908
  %v956 = vadd.f32 %v869, %v910
  %v957 = vadd.f32 %v870, %v949
  %v958 = vadd.f32 %v871, %v951
  %v959 = vmul.f32 %v955, 0.5
  %v960 = vtanh.pop %v959
  %v961 = vmul.f32 %v960, 0.5
  %v962 = vadd.f32 %v961, 0.5
  %v963 = vmul.f32 %v956, 0.5
  %v964 = vtanh.pop %v963
  %v965 = vmul.f32 %v964, 0.5
  %v966 = vadd.f32 %v965, 0.5
  %v967 = vtanh.pop %v957
  %v968 = vmul.f32 %v958, 0.5
  %v969 = vtanh.pop %v968
  %v970 = vmul.f32 %v969, 0.5
  %v971 = vadd.f32 %v970, 0.5
  %v972 = vmul.f32 %v966, %v862
  %v973 = vmul.f32 %v962, %v967
  %v974 = vadd.f32 %v972, %v973
  %v975 = vtanh.pop %v974
  %v976 = vmul.f32 %v971, %v975
  %s977 = scalar_lea.vmem %s4, 16
  %978 = vst [vmem:[%s977] sm:$0xff] %v976
  %s979 = scalar_lea.vmem [#allocation4], 96
  %v980 = vld [vmem:[%s979] sm:$0xff]
  %v981 = vld [vmem:[%s979 + $0x8] sm:$0xff]
  %v982 = vld [vmem:[%s979 + $0x10] sm:$0xff]
  %v983 = vld [vmem:[%s979 + $0x18] sm:$0xff]
  %v984 = vpack.c.bf16 %v976, %v976
  %985 = vmatprep.subr.bf16.mxu0 %v587
  %986 = vmatpush1.bf16.msra.mxu0 %v586
  %987 = vmatprep.subr.bf16.mxu0 %v591
  %988 = vmatpush1.bf16.msra.mxu0 %v590
  %989 = vmatprep.subr.bf16.mxu0 %v595
  %990 = vmatpush1.bf16.msra.mxu0 %v594
  %991 = vmatprep.subr.bf16.mxu0 %v599
  %992 = vmatpush1.bf16.msra.mxu0 %v598
  %993 = vmatprep.subr.bf16.mxu0 %v603
  %994 = vmatpush1.bf16.msra.mxu0 %v602
  %995 = vmatprep.subr.bf16.mxu0 %v607
  %996 = vmatpush1.bf16.msra.mxu0 %v606
  %997 = vmatprep.subr.bf16.mxu0 %v611
  %998 = vmatpush1.bf16.msra.mxu0 %v610
  %999 = vmatprep.subr.bf16.mxu0 %v615
  %1000 = vmatpush1.bf16.msra.mxu0 %v614
  %1001 = vmatprep.subr.bf16.mxu0 0
  %1002 = vmatpush1.bf16.msra.mxu0 0
  %1003 = vmatprep.subr.bf16.mxu0 0
  %1004 = vmatpush1.bf16.msra.mxu0 0
  %1005 = vmatprep.subr.bf16.mxu0 0
  %1006 = vmatpush1.bf16.msra.mxu0 0
  %1007 = vmatprep.subr.bf16.mxu0 0
  %1008 = vmatpush1.bf16.msra.mxu0 0
  %1009 = vmatprep.subr.bf16.mxu0 0
  %1010 = vmatpush1.bf16.msra.mxu0 0
  %1011 = vmatprep.subr.bf16.mxu0 0
  %1012 = vmatpush1.bf16.msra.mxu0 0
  %1013 = vmatprep.subr.bf16.mxu0 0
  %1014 = vmatpush1.bf16.msra.mxu0 0
  %1015 = vmatprep.subr.bf16.mxu0 0
  %1016 = vmatpush1.bf16.msra.mxu0 0
  %1017 = vmatprep.mubr.bf16.mxu0 0
  %1018 = vmatmul.mubr.bf16.gmra.mrb[0].mxu0 %v984
  %v1019 = vpop.f32.mrb[0].mxu0
  %v1020 = vadd.f32 0.0, %v1019
  %v1021 = vpop.f32.mrb[0].mxu0
  %v1022 = vadd.f32 0.0, %v1021
  %v1023 = vpop.f32.mrb[0].mxu0
  %v1024 = vpop.f32.mrb[0].mxu0
  %1025 = vdwg.mxu0
  %1026 = vmatprep.subr.bf16.mxu0 %v589
  %1027 = vmatpush1.bf16.msra.mxu0 %v588
  %1028 = vmatprep.subr.bf16.mxu0 %v593
  %1029 = vmatpush1.bf16.msra.mxu0 %v592
  %1030 = vmatprep.subr.bf16.mxu0 %v597
  %1031 = vmatpush1.bf16.msra.mxu0 %v596
  %1032 = vmatprep.subr.bf16.mxu0 %v601
  %1033 = vmatpush1.bf16.msra.mxu0 %v600
  %1034 = vmatprep.subr.bf16.mxu0 %v605
  %1035 = vmatpush1.bf16.msra.mxu0 %v604
  %1036 = vmatprep.subr.bf16.mxu0 %v609
  %1037 = vmatpush1.bf16.msra.mxu0 %v608
  %1038 = vmatprep.subr.bf16.mxu0 %v613
  %1039 = vmatpush1.bf16.msra.mxu0 %v612
  %1040 = vmatprep.subr.bf16.mxu0 %v617
  %1041 = vmatpush1.bf16.msra.mxu0 %v616
  %1042 = vmatprep.subr.bf16.mxu0 0
  %1043 = vmatpush1.bf16.msra.mxu0 0
  %1044 = vmatprep.subr.bf16.mxu0 0
  %1045 = vmatpush1.bf16.msra.mxu0 0
  %1046 = vmatprep.subr.bf16.mxu0 0
  %1047 = vmatpush1.bf16.msra.mxu0 0
  %1048 = vmatprep.subr.bf16.mxu0 0
  %1049 = vmatpush1.bf16.msra.mxu0 0
  %1050 = vmatprep.subr.bf16.mxu0 0
  %1051 = vmatpush1.bf16.msra.mxu0 0
  %1052 = vmatprep.subr.bf16.mxu0 0
  %1053 = vmatpush1.bf16.msra.mxu0 0
  %1054 = vmatprep.subr.bf16.mxu0 0
  %1055 = vmatpush1.bf16.msra.mxu0 0
  %1056 = vmatprep.subr.bf16.mxu0 0
  %1057 = vmatpush1.bf16.msra.mxu0 0
  %1058 = vmatprep.mubr.bf16.mxu0 0
  %1059 = vmatmul.mubr.bf16.gmra.mrb[0].mxu0 %v984
  %v1060 = vpop.f32.mrb[0].mxu0
  %v1061 = vadd.f32 0.0, %v1060
  %v1062 = vpop.f32.mrb[0].mxu0
  %v1063 = vadd.f32 0.0, %v1062
  %v1064 = vpop.f32.mrb[0].mxu0
  %v1065 = vpop.f32.mrb[0].mxu0
  %1066 = vdwg.mxu0
  %v1067 = vadd.f32 %v980, %v1020
  %v1068 = vadd.f32 %v981, %v1022
  %v1069 = vadd.f32 %v982, %v1061
  %v1070 = vadd.f32 %v983, %v1063
  %v1071 = vmul.f32 %v1067, 0.5
  %v1072 = vtanh.pop %v1071
  %v1073 = vmul.f32 %v1072, 0.5
  %v1074 = vadd.f32 %v1073, 0.5
  %v1075 = vmul.f32 %v1068, 0.5
  %v1076 = vtanh.pop %v1075
  %v1077 = vmul.f32 %v1076, 0.5
  %v1078 = vadd.f32 %v1077, 0.5
  %v1079 = vtanh.pop %v1069
  %v1080 = vmul.f32 %v1070, 0.5
  %v1081 = vtanh.pop %v1080
  %v1082 = vmul.f32 %v1081, 0.5
  %v1083 = vadd.f32 %v1082, 0.5
  %v1084 = vmul.f32 %v1078, %v974
  %v1085 = vmul.f32 %v1074, %v1079
  %v1086 = vadd.f32 %v1084, %v1085
  %v1087 = vtanh.pop %v1086
  %v1088 = vmul.f32 %v1083, %v1087
  %s1089 = scalar_lea.vmem %s4, 24
  %1090 = vst [vmem:[%s1089] sm:$0xff] %v1088
  %s1091 = scalar_lea.vmem [#allocation4], 128
  %v1092 = vld [vmem:[%s1091] sm:$0xff]
  %v1093 = vld [vmem:[%s1091 + $0x8] sm:$0xff]
  %v1094 = vld [vmem:[%s1091 + $0x10] sm:$0xff]
  %v1095 = vld [vmem:[%s1091 + $0x18] sm:$0xff]
  %v1096 = vpack.c.bf16 %v1088, %v1088
  %1097 = vmatprep.subr.bf16.mxu0 %v587
  %1098 = vmatpush1.bf16.msra.mxu0 %v586
  %1099 = vmatprep.subr.bf16.mxu0 %v591
  %1100 = vmatpush1.bf16.msra.mxu0 %v590
  %1101 = vmatprep.subr.bf16.mxu0 %v595
  %1102 = vmatpush1.bf16.msra.mxu0 %v594
  %1103 = vmatprep.subr.bf16.mxu0 %v599
  %1104 = vmatpush1.bf16.msra.mxu0 %v598
  %1105 = vmatprep.subr.bf16.mxu0 %v603
  %1106 = vmatpush1.bf16.msra.mxu0 %v602
  %1107 = vmatprep.subr.bf16.mxu0 %v607
  %1108 = vmatpush1.bf16.msra.mxu0 %v606
  %1109 = vmatprep.subr.bf16.mxu0 %v611
  %1110 = vmatpush1.bf16.msra.mxu0 %v610
  %1111 = vmatprep.subr.bf16.mxu0 %v615
  %1112 = vmatpush1.bf16.msra.mxu0 %v614
  %1113 = vmatprep.subr.bf16.mxu0 0
  %1114 = vmatpush1.bf16.msra.mxu0 0
  %1115 = vmatprep.subr.bf16.mxu0 0
  %1116 = vmatpush1.bf16.msra.mxu0 0
  %1117 = vmatprep.subr.bf16.mxu0 0
  %1118 = vmatpush1.bf16.msra.mxu0 0
  %1119 = vmatprep.subr.bf16.mxu0 0
  %1120 = vmatpush1.bf16.msra.mxu0 0
  %1121 = vmatprep.subr.bf16.mxu0 0
  %1122 = vmatpush1.bf16.msra.mxu0 0
  %1123 = vmatprep.subr.bf16.mxu0 0
  %1124 = vmatpush1.bf16.msra.mxu0 0
  %1125 = vmatprep.subr.bf16.mxu0 0
  %1126 = vmatpush1.bf16.msra.mxu0 0
  %1127 = vmatprep.subr.bf16.mxu0 0
  %1128 = vmatpush1.bf16.msra.mxu0 0
  %1129 = vmatprep.mubr.bf16.mxu0 0
  %1130 = vmatmul.mubr.bf16.gmra.mrb[0].mxu0 %v1096
  %v1131 = vpop.f32.mrb[0].mxu0
  %v1132 = vadd.f32 0.0, %v1131
  %v1133 = vpop.f32.mrb[0].mxu0
  %v1134 = vadd.f32 0.0, %v1133
  %v1135 = vpop.f32.mrb[0].mxu0
  %v1136 = vpop.f32.mrb[0].mxu0
  %1137 = vdwg.mxu0
  %1138 = vmatprep.subr.bf16.mxu0 %v589
  %1139 = vmatpush1.bf16.msra.mxu0 %v588
  %1140 = vmatprep.subr.bf16.mxu0 %v593
  %1141 = vmatpush1.bf16.msra.mxu0 %v592
  %1142 = vmatprep.subr.bf16.mxu0 %v597
  %1143 = vmatpush1.bf16.msra.mxu0 %v596
  %1144 = vmatprep.subr.bf16.mxu0 %v601
  %1145 = vmatpush1.bf16.msra.mxu0 %v600
  %1146 = vmatprep.subr.bf16.mxu0 %v605
  %1147 = vmatpush1.bf16.msra.mxu0 %v604
  %1148 = vmatprep.subr.bf16.mxu0 %v609
  %1149 = vmatpush1.bf16.msra.mxu0 %v608
  %1150 = vmatprep.subr.bf16.mxu0 %v613
  %1151 = vmatpush1.bf16.msra.mxu0 %v612
  %1152 = vmatprep.subr.bf16.mxu0 %v617
  %1153 = vmatpush1.bf16.msra.mxu0 %v616
  %1154 = vmatprep.subr.bf16.mxu0 0
  %1155 = vmatpush1.bf16.msra.mxu0 0
  %1156 = vmatprep.subr.bf16.mxu0 0
  %1157 = vmatpush1.bf16.msra.mxu0 0
  %1158 = vmatprep.subr.bf16.mxu0 0
  %1159 = vmatpush1.bf16.msra.mxu0 0
  %1160 = vmatprep.subr.bf16.mxu0 0
  %1161 = vmatpush1.bf16.msra.mxu0 0
  %1162 = vmatprep.subr.bf16.mxu0 0
  %1163 = vmatpush1.bf16.msra.mxu0 0
  %1164 = vmatprep.subr.bf16.mxu0 0
  %1165 = vmatpush1.bf16.msra.mxu0 0
  %1166 = vmatprep.subr.bf16.mxu0 0
  %1167 = vmatpush1.bf16.msra.mxu0 0
  %1168 = vmatprep.subr.bf16.mxu0 0
  %1169 = vmatpush1.bf16.msra.mxu0 0
  %1170 = vmatprep.mubr.bf16.mxu0 0
  %1171 = vmatmul.mubr.bf16.gmra.mrb[0].mxu0 %v1096
  %v1172 = vpop.f32.mrb[0].mxu0
  %v1173 = vadd.f32 0.0, %v1172
  %v1174 = vpop.f32.mrb[0].mxu0
  %v1175 = vadd.f32 0.0, %v1174
  %v1176 = vpop.f32.mrb[0].mxu0
  %v1177 = vpop.f32.mrb[0].mxu0
  %1178 = vdwg.mxu0
  %v1179 = vadd.f32 %v1092, %v1132
  %v1180 = vadd.f32 %v1093, %v1134
  %v1181 = vadd.f32 %v1094, %v1173
  %v1182 = vadd.f32 %v1095, %v1175
  %v1183 = vmul.f32 %v1179, 0.5
  %v1184 = vtanh.pop %v1183
  %v1185 = vmul.f32 %v1184, 0.5
  %v1186 = vadd.f32 %v1185, 0.5
  %v1187 = vmul.f32 %v1180, 0.5
  %v1188 = vtanh.pop %v1187
  %v1189 = vmul.f32 %v1188, 0.5
  %v1190 = vadd.f32 %v1189, 0.5
  %v1191 = vtanh.pop %v1181
  %v1192 = vmul.f32 %v1182, 0.5
  %v1193 = vtanh.pop %v1192
  %v1194 = vmul.f32 %v1193, 0.5
  %v1195 = vadd.f32 %v1194, 0.5
  %v1196 = vmul.f32 %v1190, %v1086
  %v1197 = vmul.f32 %v1186, %v1191
  %v1198 = vadd.f32 %v1196, %v1197
  %v1199 = vtanh.pop %v1198
  %v1200 = vmul.f32 %v1195, %v1199
  %s1201 = scalar_lea.vmem %s4, 32
  %1202 = vst [vmem:[%s1201] sm:$0xff] %v1200
  %s1203 = scalar_lea.vmem [#allocation4], 160
  %v1204 = vld [vmem:[%s1203] sm:$0xff]
  %v1205 = vld [vmem:[%s1203 + $0x8] sm:$0xff]
  %v1206 = vld [vmem:[%s1203 + $0x10] sm:$0xff]
  %v1207 = vld [vmem:[%s1203 + $0x18] sm:$0xff]
  %v1208 = vpack.c.bf16 %v1200, %v1200
  %1209 = vmatprep.subr.bf16.mxu0 %v587
  %1210 = vmatpush1.bf16.msra.mxu0 %v586
  %1211 = vmatprep.subr.bf16.mxu0 %v591
  %1212 = vmatpush1.bf16.msra.mxu0 %v590
  %1213 = vmatprep.subr.bf16.mxu0 %v595
  %1214 = vmatpush1.bf16.msra.mxu0 %v594
  %1215 = vmatprep.subr.bf16.mxu0 %v599
  %1216 = vmatpush1.bf16.msra.mxu0 %v598
  %1217 = vmatprep.subr.bf16.mxu0 %v603
  %1218 = vmatpush1.bf16.msra.mxu0 %v602
  %1219 = vmatprep.subr.bf16.mxu0 %v607
  %1220 = vmatpush1.bf16.msra.mxu0 %v606
  %1221 = vmatprep.subr.bf16.mxu0 %v611
  %1222 = vmatpush1.bf16.msra.mxu0 %v610
  %1223 = vmatprep.subr.bf16.mxu0 %v615
  %1224 = vmatpush1.bf16.msra.mxu0 %v614
  %1225 = vmatprep.subr.bf16.mxu0 0
  %1226 = vmatpush1.bf16.msra.mxu0 0
  %1227 = vmatprep.subr.bf16.mxu0 0
  %1228 = vmatpush1.bf16.msra.mxu0 0
  %1229 = vmatprep.subr.bf16.mxu0 0
  %1230 = vmatpush1.bf16.msra.mxu0 0
  %1231 = vmatprep.subr.bf16.mxu0 0
  %1232 = vmatpush1.bf16.msra.mxu0 0
  %1233 = vmatprep.subr.bf16.mxu0 0
  %1234 = vmatpush1.bf16.msra.mxu0 0
  %1235 = vmatprep.subr.bf16.mxu0 0
  %1236 = vmatpush1.bf16.msra.mxu0 0
  %1237 = vmatprep.subr.bf16.mxu0 0
  %1238 = vmatpush1.bf16.msra.mxu0 0
  %1239 = vmatprep.subr.bf16.mxu0 0
  %1240 = vmatpush1.bf16.msra.mxu0 0
  %1241 = vmatprep.mubr.bf16.mxu0 0
  %1242 = vmatmul.mubr.bf16.gmra.mrb[0].mxu0 %v1208
  %v1243 = vpop.f32.mrb[0].mxu0
  %v1244 = vadd.f32 0.0, %v1243
  %v1245 = vpop.f32.mrb[0].mxu0
  %v1246 = vadd.f32 0.0, %v1245
  %v1247 = vpop.f32.mrb[0].mxu0
  %v1248 = vpop.f32.mrb[0].mxu0
  %1249 = vdwg.mxu0
  %1250 = vmatprep.subr.bf16.mxu0 %v589
  %1251 = vmatpush1.bf16.msra.mxu0 %v588
  %1252 = vmatprep.subr.bf16.mxu0 %v593
  %1253 = vmatpush1.bf16.msra.mxu0 %v592
  %1254 = vmatprep.subr.bf16.mxu0 %v597
  %1255 = vmatpush1.bf16.msra.mxu0 %v596
  %1256 = vmatprep.subr.bf16.mxu0 %v601
  %1257 = vmatpush1.bf16.msra.mxu0 %v600
  %1258 = vmatprep.subr.bf16.mxu0 %v605
  %1259 = vmatpush1.bf16.msra.mxu0 %v604
  %1260 = vmatprep.subr.bf16.mxu0 %v609
  %1261 = vmatpush1.bf16.msra.mxu0 %v608
  %1262 = vmatprep.subr.bf16.mxu0 %v613
  %1263 = vmatpush1.bf16.msra.mxu0 %v612
  %1264 = vmatprep.subr.bf16.mxu0 %v617
  %1265 = vmatpush1.bf16.msra.mxu0 %v616
  %1266 = vmatprep.subr.bf16.mxu0 0
  %1267 = vmatpush1.bf16.msra.mxu0 0
  %1268 = vmatprep.subr.bf16.mxu0 0
  %1269 = vmatpush1.bf16.msra.mxu0 0
  %1270 = vmatprep.subr.bf16.mxu0 0
  %1271 = vmatpush1.bf16.msra.mxu0 0
  %1272 = vmatprep.subr.bf16.mxu0 0
  %1273 = vmatpush1.bf16.msra.mxu0 0
  %1274 = vmatprep.subr.bf16.mxu0 0
  %1275 = vmatpush1.bf16.msra.mxu0 0
  %1276 = vmatprep.subr.bf16.mxu0 0
  %1277 = vmatpush1.bf16.msra.mxu0 0
  %1278 = vmatprep.subr.bf16.mxu0 0
  %1279 = vmatpush1.bf16.msra.mxu0 0
  %1280 = vmatprep.subr.bf16.mxu0 0
  %1281 = vmatpush1.bf16.msra.mxu0 0
  %1282 = vmatprep.mubr.bf16.mxu0 0
  %1283 = vmatmul.mubr.bf16.gmra.mrb[0].mxu0 %v1208
  %v1284 = vpop.f32.mrb[0].mxu0
  %v1285 = vadd.f32 0.0, %v1284
  %v1286 = vpop.f32.mrb[0].mxu0
  %v1287 = vadd.f32 0.0, %v1286
  %v1288 = vpop.f32.mrb[0].mxu0
  %v1289 = vpop.f32.mrb[0].mxu0
  %1290 = vdwg.mxu0
  %v1291 = vadd.f32 %v1204, %v1244
  %v1292 = vadd.f32 %v1205, %v1246
  %v1293 = vadd.f32 %v1206, %v1285
  %v1294 = vadd.f32 %v1207, %v1287
  %v1295 = vmul.f32 %v1291, 0.5
  %v1296 = vtanh.pop %v1295
  %v1297 = vmul.f32 %v1296, 0.5
  %v1298 = vadd.f32 %v1297, 0.5
  %v1299 = vmul.f32 %v1292, 0.5
  %v1300 = vtanh.pop %v1299
  %v1301 = vmul.f32 %v1300, 0.5
  %v1302 = vadd.f32 %v1301, 0.5
  %v1303 = vtanh.pop %v1293
  %v1304 = vmul.f32 %v1294, 0.5
  %v1305 = vtanh.pop %v1304
  %v1306 = vmul.f32 %v1305, 0.5
  %v1307 = vadd.f32 %v1306, 0.5
  %v1308 = vmul.f32 %v1302, %v1198
  %v1309 = vmul.f32 %v1298, %v1303
  %v1310 = vadd.f32 %v1308, %v1309
  %v1311 = vtanh.pop %v1310
  %v1312 = vmul.f32 %v1307, %v1311
  %s1313 = scalar_lea.vmem %s4, 40
  %1314 = vst [vmem:[%s1313] sm:$0xff] %v1312
  %s1315 = scalar_lea.vmem [#allocation4], 192
  %v1316 = vld [vmem:[%s1315] sm:$0xff]
  %v1317 = vld [vmem:[%s1315 + $0x8] sm:$0xff]
  %v1318 = vld [vmem:[%s1315 + $0x10] sm:$0xff]
  %v1319 = vld [vmem:[%s1315 + $0x18] sm:$0xff]
  %v1320 = vpack.c.bf16 %v1312, %v1312
  %1321 = vmatprep.subr.bf16.mxu0 %v587
  %1322 = vmatpush1.bf16.msra.mxu0 %v586
  %1323 = vmatprep.subr.bf16.mxu0 %v591
  %1324 = vmatpush1.bf16.msra.mxu0 %v590
  %1325 = vmatprep.subr.bf16.mxu0 %v595
  %1326 = vmatpush1.bf16.msra.mxu0 %v594
  %1327 = vmatprep.subr.bf16.mxu0 %v599
  %1328 = vmatpush1.bf16.msra.mxu0 %v598
  %1329 = vmatprep.subr.bf16.mxu0 %v603
  %1330 = vmatpush1.bf16.msra.mxu0 %v602
  %1331 = vmatprep.subr.bf16.mxu0 %v607
  %1332 = vmatpush1.bf16.msra.mxu0 %v606
  %1333 = vmatprep.subr.bf16.mxu0 %v611
  %1334 = vmatpush1.bf16.msra.mxu0 %v610
  %1335 = vmatprep.subr.bf16.mxu0 %v615
  %1336 = vmatpush1.bf16.msra.mxu0 %v614
  %1337 = vmatprep.subr.bf16.mxu0 0
  %1338 = vmatpush1.bf16.msra.mxu0 0
  %1339 = vmatprep.subr.bf16.mxu0 0
  %1340 = vmatpush1.bf16.msra.mxu0 0
  %1341 = vmatprep.subr.bf16.mxu0 0
  %1342 = vmatpush1.bf16.msra.mxu0 0
  %1343 = vmatprep.subr.bf16.mxu0 0
  %1344 = vmatpush1.bf16.msra.mxu0 0
  %1345 = vmatprep.subr.bf16.mxu0 0
  %1346 = vmatpush1.bf16.msra.mxu0 0
  %1347 = vmatprep.subr.bf16.mxu0 0
  %1348 = vmatpush1.bf16.msra.mxu0 0
  %1349 = vmatprep.subr.bf16.mxu0 0
  %1350 = vmatpush1.bf16.msra.mxu0 0
  %1351 = vmatprep.subr.bf16.mxu0 0
  %1352 = vmatpush1.bf16.msra.mxu0 0
  %1353 = vmatprep.mubr.bf16.mxu0 0
  %1354 = vmatmul.mubr.bf16.gmra.mrb[0].mxu0 %v1320
  %v1355 = vpop.f32.mrb[0].mxu0
  %v1356 = vadd.f32 0.0, %v1355
  %v1357 = vpop.f32.mrb[0].mxu0
  %v1358 = vadd.f32 0.0, %v1357
  %v1359 = vpop.f32.mrb[0].mxu0
  %v1360 = vpop.f32.mrb[0].mxu0
  %1361 = vdwg.mxu0
  %1362 = vmatprep.subr.bf16.mxu0 %v589
  %1363 = vmatpush1.bf16.msra.mxu0 %v588
  %1364 = vmatprep.subr.bf16.mxu0 %v593
  %1365 = vmatpush1.bf16.msra.mxu0 %v592
  %1366 = vmatprep.subr.bf16.mxu0 %v597
  %1367 = vmatpush1.bf16.msra.mxu0 %v596
  %1368 = vmatprep.subr.bf16.mxu0 %v601
  %1369 = vmatpush1.bf16.msra.mxu0 %v600
  %1370 = vmatprep.subr.bf16.mxu0 %v605
  %1371 = vmatpush1.bf16.msra.mxu0 %v604
  %1372 = vmatprep.subr.bf16.mxu0 %v609
  %1373 = vmatpush1.bf16.msra.mxu0 %v608
  %1374 = vmatprep.subr.bf16.mxu0 %v613
  %1375 = vmatpush1.bf16.msra.mxu0 %v612
  %1376 = vmatprep.subr.bf16.mxu0 %v617
  %1377 = vmatpush1.bf16.msra.mxu0 %v616
  %1378 = vmatprep.subr.bf16.mxu0 0
  %1379 = vmatpush1.bf16.msra.mxu0 0
  %1380 = vmatprep.subr.bf16.mxu0 0
  %1381 = vmatpush1.bf16.msra.mxu0 0
  %1382 = vmatprep.subr.bf16.mxu0 0
  %1383 = vmatpush1.bf16.msra.mxu0 0
  %1384 = vmatprep.subr.bf16.mxu0 0
  %1385 = vmatpush1.bf16.msra.mxu0 0
  %1386 = vmatprep.subr.bf16.mxu0 0
  %1387 = vmatpush1.bf16.msra.mxu0 0
  %1388 = vmatprep.subr.bf16.mxu0 0
  %1389 = vmatpush1.bf16.msra.mxu0 0
  %1390 = vmatprep.subr.bf16.mxu0 0
  %1391 = vmatpush1.bf16.msra.mxu0 0
  %1392 = vmatprep.subr.bf16.mxu0 0
  %1393 = vmatpush1.bf16.msra.mxu0 0
  %1394 = vmatprep.mubr.bf16.mxu0 0
  %1395 = vmatmul.mubr.bf16.gmra.mrb[0].mxu0 %v1320
  %v1396 = vpop.f32.mrb[0].mxu0
  %v1397 = vadd.f32 0.0, %v1396
  %v1398 = vpop.f32.mrb[0].mxu0
  %v1399 = vadd.f32 0.0, %v1398
  %v1400 = vpop.f32.mrb[0].mxu0
  %v1401 = vpop.f32.mrb[0].mxu0
  %1402 = vdwg.mxu0
  %v1403 = vadd.f32 %v1316, %v1356
  %v1404 = vadd.f32 %v1317, %v1358
  %v1405 = vadd.f32 %v1318, %v1397
  %v1406 = vadd.f32 %v1319, %v1399
  %v1407 = vmul.f32 %v1403, 0.5
  %v1408 = vtanh.pop %v1407
  %v1409 = vmul.f32 %v1408, 0.5
  %v1410 = vadd.f32 %v1409, 0.5
  %v1411 = vmul.f32 %v1404, 0.5
  %v1412 = vtanh.pop %v1411
  %v1413 = vmul.f32 %v1412, 0.5
  %v1414 = vadd.f32 %v1413, 0.5
  %v1415 = vtanh.pop %v1405
  %v1416 = vmul.f32 %v1406, 0.5
  %v1417 = vtanh.pop %v1416
  %v1418 = vmul.f32 %v1417, 0.5
  %v1419 = vadd.f32 %v1418, 0.5
  %v1420 = vmul.f32 %v1414, %v1310
  %v1421 = vmul.f32 %v1410, %v1415
  %v1422 = vadd.f32 %v1420, %v1421
  %v1423 = vtanh.pop %v1422
  %v1424 = vmul.f32 %v1419, %v1423
  %s1425 = scalar_lea.vmem %s4, 48
  %1426 = vst [vmem:[%s1425] sm:$0xff] %v1424
  %s1427 = scalar_lea.vmem [#allocation4], 224
  %v1428 = vld [vmem:[%s1427] sm:$0xff]
  %v1429 = vld [vmem:[%s1427 + $0x8] sm:$0xff]
  %v1430 = vld [vmem:[%s1427 + $0x10] sm:$0xff]
  %v1431 = vld [vmem:[%s1427 + $0x18] sm:$0xff]
  %v1432 = vpack.c.bf16 %v1424, %v1424
  %1433 = vmatprep.subr.bf16.mxu0 %v587
  %1434 = vmatpush1.bf16.msra.mxu0 %v586
  %1435 = vmatprep.subr.bf16.mxu0 %v591
  %1436 = vmatpush1.bf16.msra.mxu0 %v590
  %1437 = vmatprep.subr.bf16.mxu0 %v595
  %1438 = vmatpush1.bf16.msra.mxu0 %v594
  %1439 = vmatprep.subr.bf16.mxu0 %v599
  %1440 = vmatpush1.bf16.msra.mxu0 %v598
  %1441 = vmatprep.subr.bf16.mxu0 %v603
  %1442 = vmatpush1.bf16.msra.mxu0 %v602
  %1443 = vmatprep.subr.bf16.mxu0 %v607
  %1444 = vmatpush1.bf16.msra.mxu0 %v606
  %1445 = vmatprep.subr.bf16.mxu0 %v611
  %1446 = vmatpush1.bf16.msra.mxu0 %v610
  %1447 = vmatprep.subr.bf16.mxu0 %v615
  %1448 = vmatpush1.bf16.msra.mxu0 %v614
  %1449 = vmatprep.subr.bf16.mxu0 0
  %1450 = vmatpush1.bf16.msra.mxu0 0
  %1451 = vmatprep.subr.bf16.mxu0 0
  %1452 = vmatpush1.bf16.msra.mxu0 0
  %1453 = vmatprep.subr.bf16.mxu0 0
  %1454 = vmatpush1.bf16.msra.mxu0 0
  %1455 = vmatprep.subr.bf16.mxu0 0
  %1456 = vmatpush1.bf16.msra.mxu0 0
  %1457 = vmatprep.subr.bf16.mxu0 0
  %1458 = vmatpush1.bf16.msra.mxu0 0
  %1459 = vmatprep.subr.bf16.mxu0 0
  %1460 = vmatpush1.bf16.msra.mxu0 0
  %1461 = vmatprep.subr.bf16.mxu0 0
  %1462 = vmatpush1.bf16.msra.mxu0 0
  %1463 = vmatprep.subr.bf16.mxu0 0
  %1464 = vmatpush1.bf16.msra.mxu0 0
  %1465 = vmatprep.mubr.bf16.mxu0 0
  %1466 = vmatmul.mubr.bf16.gmra.mrb[0].mxu0 %v1432
  %v1467 = vpop.f32.mrb[0].mxu0
  %v1468 = vadd.f32 0.0, %v1467
  %v1469 = vpop.f32.mrb[0].mxu0
  %v1470 = vadd.f32 0.0, %v1469
  %v1471 = vpop.f32.mrb[0].mxu0
  %v1472 = vpop.f32.mrb[0].mxu0
  %1473 = vdwg.mxu0
  %1474 = vmatprep.subr.bf16.mxu0 %v589
  %1475 = vmatpush1.bf16.msra.mxu0 %v588
  %1476 = vmatprep.subr.bf16.mxu0 %v593
  %1477 = vmatpush1.bf16.msra.mxu0 %v592
  %1478 = vmatprep.subr.bf16.mxu0 %v597
  %1479 = vmatpush1.bf16.msra.mxu0 %v596
  %1480 = vmatprep.subr.bf16.mxu0 %v601
  %1481 = vmatpush1.bf16.msra.mxu0 %v600
  %1482 = vmatprep.subr.bf16.mxu0 %v605
  %1483 = vmatpush1.bf16.msra.mxu0 %v604
  %1484 = vmatprep.subr.bf16.mxu0 %v609
  %1485 = vmatpush1.bf16.msra.mxu0 %v608
  %1486 = vmatprep.subr.bf16.mxu0 %v613
  %1487 = vmatpush1.bf16.msra.mxu0 %v612
  %1488 = vmatprep.subr.bf16.mxu0 %v617
  %1489 = vmatpush1.bf16.msra.mxu0 %v616
  %1490 = vmatprep.subr.bf16.mxu0 0
  %1491 = vmatpush1.bf16.msra.mxu0 0
  %1492 = vmatprep.subr.bf16.mxu0 0
  %1493 = vmatpush1.bf16.msra.mxu0 0
  %1494 = vmatprep.subr.bf16.mxu0 0
  %1495 = vmatpush1.bf16.msra.mxu0 0
  %1496 = vmatprep.subr.bf16.mxu0 0
  %1497 = vmatpush1.bf16.msra.mxu0 0
  %1498 = vmatprep.subr.bf16.mxu0 0
  %1499 = vmatpush1.bf16.msra.mxu0 0
  %1500 = vmatprep.subr.bf16.mxu0 0
  %1501 = vmatpush1.bf16.msra.mxu0 0
  %1502 = vmatprep.subr.bf16.mxu0 0
  %1503 = vmatpush1.bf16.msra.mxu0 0
  %1504 = vmatprep.subr.bf16.mxu0 0
  %1505 = vmatpush1.bf16.msra.mxu0 0
  %1506 = vmatprep.mubr.bf16.mxu0 0
  %1507 = vmatmul.mubr.bf16.gmra.mrb[0].mxu0 %v1432
  %v1508 = vpop.f32.mrb[0].mxu0
  %v1509 = vadd.f32 0.0, %v1508
  %v1510 = vpop.f32.mrb[0].mxu0
  %v1511 = vadd.f32 0.0, %v1510
  %v1512 = vpop.f32.mrb[0].mxu0
  %v1513 = vpop.f32.mrb[0].mxu0
  %1514 = vdwg.mxu0
  %v1515 = vadd.f32 %v1428, %v1468
  %v1516 = vadd.f32 %v1429, %v1470
  %v1517 = vadd.f32 %v1430, %v1509
  %v1518 = vadd.f32 %v1431, %v1511
  %v1519 = vmul.f32 %v1515, 0.5
  %v1520 = vtanh.pop %v1519
  %v1521 = vmul.f32 %v1520, 0.5
  %v1522 = vadd.f32 %v1521, 0.5
  %v1523 = vmul.f32 %v1516, 0.5
  %v1524 = vtanh.pop %v1523
  %v1525 = vmul.f32 %v1524, 0.5
  %v1526 = vadd.f32 %v1525, 0.5
  %v1527 = vtanh.pop %v1517
  %v1528 = vmul.f32 %v1518, 0.5
  %v1529 = vtanh.pop %v1528
  %v1530 = vmul.f32 %v1529, 0.5
  %v1531 = vadd.f32 %v1530, 0.5
  %v1532 = vmul.f32 %v1526, %v1422
  %v1533 = vmul.f32 %v1522, %v1527
  %v1534 = vadd.f32 %v1532, %v1533
  %v1535 = vtanh.pop %v1534
  %v1536 = vmul.f32 %v1531, %v1535
  %s1537 = scalar_lea.vmem %s4, 56
  %1538 = vst [vmem:[%s1537] sm:$0xff] %v1536
  %1539 = vst [vmem:[#allocation2] sm:$0xff] %v1536
  %1540 = vst [vmem:[#allocation3] sm:$0xff] %v1534
  // Predicated region
  $region22: #{encoder_forward.3} parent=0 // pred_check
    %p1541 = pneg %p21
  $region23: #{encoder_forward.3} parent=0 // pred_check_branch
    %1543 = sbr.rel (%p1541) target = $region25
  $region24: #{encoder_forward.3} parent=0 // pred_region
    %1544 = vst [vmem:[%s5] sm:$0xff] %v1536
    %1545 = vst [vmem:[%s6] sm:$0xff] %v1534
  $region25: #{encoder_forward.3} parent=0 // pred_fallthru
    _
  // Predicated region
  $region26: #{encoder_forward.3} parent=0 // pred_check
    _
  $region27: #{encoder_forward.3} parent=0 // pred_check_branch
    %1547 = sbr.rel (0) target = $region29
  $region28: #{encoder_forward.3} parent=0 // pred_region
    _
  $region29: #{encoder_forward.3} parent=0 // pred_fallthru
    _
  // Predicated region
  $region30: #{encoder_forward.3} parent=0 // pred_check
    _
  $region31: #{encoder_forward.3} parent=0 // pred_check_branch
    %1549 = sbr.rel (0) target = $region33
  $region32: #{encoder_forward.3} parent=0 // pred_region
    _
  $region33: #{encoder_forward.3} parent=0 // pred_fallthru
    _
  // Predicated region
  $region34: #{encoder_forward.3} parent=0 // pred_check
    _
  $region35: #{encoder_forward.3} parent=0 // pred_check_branch
    %1551 = sbr.rel (0) target = $region37
  $region36: #{encoder_forward.3} parent=0 // pred_region
    _
  $region37: #{encoder_forward.3} parent=0 // pred_fallthru
    _
  // Predicated region
  $region38: #{encoder_forward.3} parent=0 // pred_check
    _
  $region39: #{encoder_forward.3} parent=0 // pred_check_branch
    %1553 = sbr.rel (0) target = $region41
  $region40: #{encoder_forward.3} parent=0 // pred_region
    _
  $region41: #{encoder_forward.3} parent=0 // pred_fallthru
    _
  // Predicated region
  $region42: #{encoder_forward.3} parent=0 // pred_check
    _
  $region43: #{encoder_forward.3} parent=0 // pred_check_branch
    %1555 = sbr.rel (0) target = $region45
  $region44: #{encoder_forward.3} parent=0 // pred_region
    _
  $region45: #{encoder_forward.3} parent=0 // pred_fallthru
    _
  // Predicated region
  $region46: #{encoder_forward.3} parent=0 // pred_check
    _
  $region47: #{encoder_forward.3} parent=0 // pred_check_branch
    %1557 = sbr.rel (0) target = $region49
  $region48: #{encoder_forward.3} parent=0 // pred_region
    _
  $region49: #{encoder_forward.3} parent=0 // pred_fallthru
    _

</llo_original>
